<compile_context>
chip_gen: v7x
topology: tpu7x:2x2x1
jax: 0.10.0
libtpu: 0.0.40
codegen_flags: <defaults>
</compile_context>

<pallas_src>
import functools

import jax
import jax.numpy as jnp
from jax.experimental import pallas as pl
from jax.experimental.pallas import tpu as pltpu

BN_EPS = 1e-5


def _round_up(x, m):
    return ((x + m - 1) // m) * m


def _tpu_info():
    """Best-effort (vmem_capacity_bytes, is_v7x) query with safe fallbacks."""
    vmem_cap = 128 << 20
    is_v7 = False
    try:
        kind = jax.devices()[0].device_kind.lower()
        is_v7 = ("v7" in kind) or ("7x" in kind)
    except Exception:
        pass
    try:
        info = pltpu.get_tpu_info()
        vmem_cap = int(getattr(info, "vmem_capacity_bytes", vmem_cap))
    except Exception:
        pass
    if is_v7:
        vmem_cap = min(vmem_cap, 64 << 20)
    return vmem_cap, is_v7


def lmsps_kernel(prelu_ref, *refs, num_paths):
    """One node-tile of the fused LMSPS_Se forward.

    refs = [x_0..x_{C-1}, w_0..w_{C-1}, wout, lres_w_t, bias, labemb, out]
      x_c      : (tile_n, F_c) f32  raw features of sampled path c
      w_c      : (F_c, H)      bf16 softmax(alpha)-scaled projection weight
      wout     : (H, nclass)   bf16 lr_output weight with BN(eval) folded in
      lres_w_t : (nclass, nclass) bf16 label_res_fc weight (transposed)
      bias     : (1, nclass)   f32  BN shift + label_res_fc bias
      labemb   : (tile_n, nclass) f32
    """
    x_refs = refs[:num_paths]
    w_refs = refs[num_paths:2 * num_paths]
    wout_ref, lresw_ref, bias_ref, labemb_ref, o_ref = refs[2 * num_paths:]

    # sum_c softmax(alpha)_c * (x_c @ W_c): weights pre-scaled in the wrapper,
    # one small bf16 MXU matmul per sampled path, f32 accumulation.
    acc = jnp.dot(x_refs[0][...].astype(jnp.bfloat16), w_refs[0][...],
                  preferred_element_type=jnp.float32)
    for c in range(1, num_paths):
        acc = acc + jnp.dot(x_refs[c][...].astype(jnp.bfloat16), w_refs[c][...],
                            preferred_element_type=jnp.float32)

    # PReLU with the single shared slope (scalar broadcast from SMEM).
    pa = prelu_ref[0]
    acc = jnp.where(acc > 0.0, acc, pa * acc)

    # lr_output Linear with eval-mode BatchNorm folded into weight/bias, plus
    # the label-residual Linear (its bias folded into bias_ref).
    y = jnp.dot(acc.astype(jnp.bfloat16), wout_ref[...],
                preferred_element_type=jnp.float32)
    y = y + jnp.dot(labemb_ref[...].astype(jnp.bfloat16), lresw_ref[...],
                    preferred_element_type=jnp.float32)
    y = y + bias_ref[...]

    o_ref[...] = y.astype(o_ref.dtype)


def lmsps_forward(alpha_sampled, feat_list, femb_list, label_feat_list,
                  lemb_list, prelu_alpha, w_out, bn_params, lres_w, lres_b,
                  label_emb, *, tile_n=None, bn_eps=BN_EPS,
                  vmem_limit_bytes=None, out_dtype=jnp.float32):
    """Fused LMSPS_Se forward (eval mode).

    feat_list[i]:       (N, F_i) raw features of sampled feature meta-path i
    femb_list[i]:       (F_i, H) projection weight for that path
    label_feat_list[j]: (N, nclass) sampled label meta-path features
    lemb_list[j]:       (nclass, H) projection weight for that label path
    w_out:              (nclass, H)  lr_output Linear weight (torch layout)
    bn_params:          (gamma, beta, running_mean, running_var), each (nclass,)
    lres_w, lres_b:     label_res_fc weight (nclass, nclass) / bias (nclass,)
    label_emb:          (N, nclass)
    """
    x_list = [jnp.asarray(x, jnp.float32)
              for x in list(feat_list) + list(label_feat_list)]
    emb_list = list(femb_list) + list(lemb_list)
    assert len(x_list) == len(emb_list) and len(x_list) > 0
    N = int(x_list[0].shape[0])
    H = int(emb_list[0].shape[-1])
    nclass = int(w_out.shape[0])
    ctot = len(x_list)
    k_sizes = [int(w.shape[0]) for w in emb_list]
    kcat = sum(k_sizes)

    # ---- softmax over sampled alphas + per-path weight scaling (tiny, hoisted) --
    ws = jax.nn.softmax(jnp.asarray(alpha_sampled, jnp.float32).reshape(-1))
    w_scaled = [(ws[c] * jnp.asarray(emb_list[c], jnp.float32)).astype(jnp.bfloat16)
                for c in range(ctot)]

    # ---- fold eval-mode BatchNorm + label-residual bias into output weight/bias --
    gamma, beta, mean, var = bn_params
    scale = gamma * jax.lax.rsqrt(var + bn_eps)
    wout_folded = (jnp.asarray(w_out, jnp.float32).T
                   * scale[None, :]).astype(jnp.bfloat16)            # (H, nclass)
    bias = (beta - mean * scale + lres_b).reshape(1, nclass).astype(jnp.float32)
    lres_w_t = jnp.asarray(lres_w, jnp.float32).T.astype(jnp.bfloat16)
    prelu1d = jnp.asarray(prelu_alpha, jnp.float32).reshape(1)
    labemb = jnp.asarray(label_emb, jnp.float32)

    # ---- generation-aware tile size and scoped-VMEM limit ----
    vmem_cap, is_v7 = _tpu_info()
    if tile_n is None:
        # v7x HBM is ~3.2 TB/s per TC -> needs bigger tiles to amortize the
        # ~0.35 us per-grid-step fixed cost; v5e/v6e are fine at 8192.
        tile_n = 16384 if is_v7 else 8192
    tile_n = min(int(tile_n), N)
    if tile_n < N:
        tile_n = max(16, (tile_n // 16) * 16)

    out_bytes = 2 if out_dtype == jnp.bfloat16 else 4
    row_bytes = 4 * kcat + 4 * nclass + out_bytes * nclass   # per-node stream bytes
    weight_bytes = 2 * (kcat * H + H * nclass + nclass * nclass) + 4 * (nclass + 1)
    cap = min(int(0.75 * vmem_cap), 64 << 20)                # ~48 MiB on v7x

    while tile_n > 16 and 2 * tile_n * row_bytes + 4 * weight_bytes > cap - (2 << 20):
        new_t = max(16, ((tile_n // 2) // 16) * 16)
        if new_t == tile_n:
            break
        tile_n = new_t

    step_bytes = 2 * tile_n * row_bytes + 4 * weight_bytes
    cparams = {"dimension_semantics": ("parallel",)}
    # TODO(synk): on v7x, profile that the "parallel" axis actually shards work
    # across both TensorCores; if not, add an explicit 2-way core split.
    if vmem_limit_bytes is None and step_bytes > (12 << 20):
        vmem_limit_bytes = int(min(step_bytes + (4 << 20), cap))
    if vmem_limit_bytes is not None:
        cparams["vmem_limit_bytes"] = int(vmem_limit_bytes)

    grid = (pl.cdiv(N, tile_n),)

    in_specs = (
        # PReLU slope: a single scalar, lives in SMEM (scalar broadcast).
        [pl.BlockSpec(memory_space=pltpu.MemorySpace.SMEM)]
        # Per-path raw features, streamed as f32 node-tiles.
        + [pl.BlockSpec((tile_n, k_sizes[c]), lambda i: (i, 0)) for c in range(ctot)]
        # Per-path softmax-scaled projection weights (tiny, grid-invariant).
        + [pl.BlockSpec((k_sizes[c], H), lambda i: (0, 0)) for c in range(ctot)]
        + [pl.BlockSpec((H, nclass), lambda i: (0, 0)),          # BN-folded out weight
           pl.BlockSpec((nclass, nclass), lambda i: (0, 0)),     # label_res_fc weight.T
           pl.BlockSpec((1, nclass), lambda i: (0, 0)),          # folded bias
           pl.BlockSpec((tile_n, nclass), lambda i: (i, 0))]     # label_emb tile
    )

    kernel = functools.partial(lmsps_kernel, num_paths=ctot)
    out = pl.pallas_call(
        kernel,
        out_shape=jax.ShapeDtypeStruct((N, nclass), out_dtype),
        grid_spec=pltpu.PrefetchScalarGridSpec(
            num_scalar_prefetch=0,
            grid=grid,
            in_specs=in_specs,
            out_specs=pl.BlockSpec((tile_n, nclass), lambda i: (i, 0)),
        ),
        compiler_params=pltpu.CompilerParams(**cparams),
    )(prelu1d, *x_list, *w_scaled, wout_folded, lres_w_t, bias, labemb)
    return out


def reference_forward(alpha_sampled, feat_list, femb_list, label_feat_list,
                      lemb_list, prelu_alpha, w_out, bn_params, lres_w, lres_b,
                      label_emb, bn_eps=BN_EPS):
    """Pure-JAX f32 reference mirroring the PyTorch module (eval mode)."""
    ws = jax.nn.softmax(jnp.asarray(alpha_sampled, jnp.float32).reshape(-1))
    xs = list(feat_list) + list(label_feat_list)
    wsmb = list(femb_list) + list(lemb_list)
    projs = [x @ w for x, w in zip(xs, wsmb)]
    x = jnp.stack(projs, axis=1)                       # (N, Ctot, H)
    x = jnp.einsum('bcd,c->bd', x, ws)
    pa = jnp.asarray(prelu_alpha, jnp.float32).reshape(())
    x = jnp.where(x > 0, x, pa * x)
    x = x @ w_out.T
    gamma, beta, mean, var = bn_params
    x = (x - mean) * gamma / jnp.sqrt(var + bn_eps) + beta
    x = x + label_emb @ lres_w.T + lres_b
    return x


if __name__ == "__main__":
    key = jax.random.PRNGKey(0)

    # ------------------------- module config (small) -------------------------
    N = 1000         # number of nodes (deliberately NOT a tile multiple)
    F = 32           # raw feature dim (data_size[k] for every key)
    H = 32           # hidden
    NCLASS = 16      # nclass
    feat_keys = ["P", "PA", "PF", "PAP"]          # num_feats = 4
    label_keys = ["PPL", "PAPL"]                  # num_label_feats = 2
    num_paths = len(feat_keys) + len(label_keys)  # 6
    epoch_sampled = [0, 2, 4]                     # num_sampled = 3

    ks = jax.random.split(key, 20)

    # ------------------------- inputs -------------------------
    feats_dict = {k: jax.random.normal(ks[i], (N, F), jnp.float32)
                  for i, k in enumerate(feat_keys)}
    label_feats_dict = {k: jax.random.uniform(ks[4 + i], (N, NCLASS), jnp.float32)
                        for i, k in enumerate(label_keys)}
    label_emb = jax.random.normal(ks[6], (N, NCLASS), jnp.float32)

    # ------------------------- parameters -------------------------
    embeding = {k: jax.random.uniform(ks[7 + i], (F, H), jnp.float32, -0.5, 0.5)
                for i, k in enumerate(feat_keys)}
    labels_embeding = {k: jax.random.uniform(ks[11 + i], (NCLASS, H), jnp.float32, -0.5, 0.5)
                       for i, k in enumerate(label_keys)}
    alpha = jnp.ones((num_paths,), jnp.float32) + 0.1 * jnp.arange(num_paths, dtype=jnp.float32)
    bound = (2.0 ** 0.5) * (6.0 / (H + NCLASS)) ** 0.5     # xavier_uniform, gain=sqrt(2)
    w_out = jax.random.uniform(ks[13], (NCLASS, H), jnp.float32, -bound, bound)
    bn_gamma = jnp.ones((NCLASS,), jnp.float32)
    bn_beta = jnp.zeros((NCLASS,), jnp.float32)
    bn_mean = jnp.zeros((NCLASS,), jnp.float32)
    bn_var = jnp.ones((NCLASS,), jnp.float32)
    prelu_a = jnp.full((1,), 0.25, jnp.float32)
    lb = 1.0 / (NCLASS ** 0.5)
    lres_w = jax.random.uniform(ks[14], (NCLASS, NCLASS), jnp.float32, -lb, lb)
    lres_b = jax.random.uniform(ks[15], (NCLASS,), jnp.float32, -lb, lb)

    # ------------------------- path sampling (forward glue) -------------------------
    all_meta_path = feat_keys + label_keys
    meta_path_sampled = [all_meta_path[i] for i in range(len(feat_keys))
                         if i in epoch_sampled]
    label_meta_path_sampled = [all_meta_path[i]
                               for i in range(len(feat_keys), num_paths)
                               if i in epoch_sampled]

    feat_list = [feats_dict[k] for k in meta_path_sampled]
    femb_list = [embeding[k] for k in meta_path_sampled]
    label_feat_list = [label_feats_dict[k] for k in label_meta_path_sampled]
    lemb_list = [labels_embeding[k] for k in label_meta_path_sampled]
    alpha_sampled = alpha[jnp.array(epoch_sampled)]
    bn_params = (bn_gamma, bn_beta, bn_mean, bn_var)

    ref = reference_forward(alpha_sampled, feat_list, femb_list, label_feat_list,
                            lemb_list, prelu_a, w_out, bn_params, lres_w, lres_b,
                            label_emb)

    # ---- run 1: default (generation-aware) tile -> single full-size block ----
    out = lmsps_forward(alpha_sampled, feat_list, femb_list, label_feat_list,
                        lemb_list, prelu_a, w_out, bn_params, lres_w, lres_b,
                        label_emb)
    out = jax.block_until_ready(out)
    assert out.shape == (N, NCLASS)
    # bf16 matmuls (f32 accumulation) -> loosened tolerance vs pure-f32 reference
    assert jnp.allclose(out, ref, rtol=5e-2, atol=5e-2), (
        "mismatch vs reference (default tile); max abs diff = "
        f"{float(jnp.max(jnp.abs(out - ref)))}")

    # ---- run 2: small explicit tile -> multi-step grid with a partial last block
    out2 = lmsps_forward(alpha_sampled, feat_list, femb_list, label_feat_list,
                         lemb_list, prelu_a, w_out, bn_params, lres_w, lres_b,
                         label_emb, tile_n=256)
    out2 = jax.block_until_ready(out2)
    assert out2.shape == (N, NCLASS)
    assert jnp.allclose(out2, ref, rtol=5e-2, atol=5e-2), (
        "mismatch vs reference (tiled); max abs diff = "
        f"{float(jnp.max(jnp.abs(out2 - ref)))}")

    print("KERNEL_OK")
</pallas_src>

<mosaic_0001>
module attributes {stable_mosaic.version = 11 : i64} {
  func.func @lmsps_kernel(%arg0: i32, %arg1: memref<1xf32, #tpu.memory_space<smem>>, %arg2: memref<1000x32xf32, #tpu.memory_space<vmem>>, %arg3: memref<1000x32xf32, #tpu.memory_space<vmem>>, %arg4: memref<1000x16xf32, #tpu.memory_space<vmem>>, %arg5: memref<32x32xbf16, #tpu.memory_space<vmem>>, %arg6: memref<32x32xbf16, #tpu.memory_space<vmem>>, %arg7: memref<16x32xbf16, #tpu.memory_space<vmem>>, %arg8: memref<32x16xbf16, #tpu.memory_space<vmem>>, %arg9: memref<16x16xbf16, #tpu.memory_space<vmem>>, %arg10: memref<1x16xf32, #tpu.memory_space<vmem>>, %arg11: memref<1000x16xf32, #tpu.memory_space<vmem>>, %arg12: memref<1000x16xf32, #tpu.memory_space<vmem>>) attributes {dimension_semantics = [#tpu.dimension_semantics<parallel>], iteration_bounds = array<i64: 1>, scalar_prefetch = 0 : i64, scratch_operands = 0 : i64, tpu.core_type = #tpu.core_type<tc>, window_params = [{transform_indices = @transform_0, window_bounds = array<i64: 1>}, {transform_indices = @transform_1, window_bounds = array<i64: 1000, 32>}, {transform_indices = @transform_2, window_bounds = array<i64: 1000, 32>}, {transform_indices = @transform_3, window_bounds = array<i64: 1000, 16>}, {pipeline_mode = #tpu.pipeline_mode<synchronous>, transform_indices = @transform_4, window_bounds = array<i64: 32, 32>}, {pipeline_mode = #tpu.pipeline_mode<synchronous>, transform_indices = @transform_5, window_bounds = array<i64: 32, 32>}, {pipeline_mode = #tpu.pipeline_mode<synchronous>, transform_indices = @transform_6, window_bounds = array<i64: 16, 32>}, {pipeline_mode = #tpu.pipeline_mode<synchronous>, transform_indices = @transform_7, window_bounds = array<i64: 32, 16>}, {pipeline_mode = #tpu.pipeline_mode<synchronous>, transform_indices = @transform_8, window_bounds = array<i64: 16, 16>}, {pipeline_mode = #tpu.pipeline_mode<synchronous>, transform_indices = @transform_9, window_bounds = array<i64: 1, 16>}, {transform_indices = @transform_10, window_bounds = array<i64: 1000, 16>}, {transform_indices = @transform_11, window_bounds = array<i64: 1000, 16>}]} {
    %c0 = arith.constant 0 : index
    %c0_0 = arith.constant 0 : index
    %0 = vector.load %arg2[%c0, %c0_0] : memref<1000x32xf32, #tpu.memory_space<vmem>>, vector<1000x32xf32>
    %1 = arith.truncf %0 : vector<1000x32xf32> to vector<1000x32xbf16>
    %c0_1 = arith.constant 0 : index
    %c0_2 = arith.constant 0 : index
    %2 = vector.load %arg5[%c0_1, %c0_2] : memref<32x32xbf16, #tpu.memory_space<vmem>>, vector<32x32xbf16>
    %cst = arith.constant dense<0.000000e+00> : vector<1000x32xf32>
    %3 = tpu.matmul %1, %2, %cst {dimension_numbers = #tpu.dot_dimension_numbers<[1], [0], [0], [1], [0, 0, 1, 1], [], []>} : vector<1000x32xbf16>, vector<32x32xbf16>, vector<1000x32xf32> -> vector<1000x32xf32>
    %c0_3 = arith.constant 0 : index
    %c0_4 = arith.constant 0 : index
    %4 = vector.load %arg3[%c0_3, %c0_4] : memref<1000x32xf32, #tpu.memory_space<vmem>>, vector<1000x32xf32>
    %5 = arith.truncf %4 : vector<1000x32xf32> to vector<1000x32xbf16>
    %c0_5 = arith.constant 0 : index
    %c0_6 = arith.constant 0 : index
    %6 = vector.load %arg6[%c0_5, %c0_6] : memref<32x32xbf16, #tpu.memory_space<vmem>>, vector<32x32xbf16>
    %cst_7 = arith.constant dense<0.000000e+00> : vector<1000x32xf32>
    %7 = tpu.matmul %5, %6, %cst_7 {dimension_numbers = #tpu.dot_dimension_numbers<[1], [0], [0], [1], [0, 0, 1, 1], [], []>} : vector<1000x32xbf16>, vector<32x32xbf16>, vector<1000x32xf32> -> vector<1000x32xf32>
    %8 = arith.addf %3, %7 : vector<1000x32xf32>
    %c0_8 = arith.constant 0 : index
    %c0_9 = arith.constant 0 : index
    %9 = vector.load %arg4[%c0_8, %c0_9] : memref<1000x16xf32, #tpu.memory_space<vmem>>, vector<1000x16xf32>
    %10 = arith.truncf %9 : vector<1000x16xf32> to vector<1000x16xbf16>
    %c0_10 = arith.constant 0 : index
    %c0_11 = arith.constant 0 : index
    %11 = vector.load %arg7[%c0_10, %c0_11] : memref<16x32xbf16, #tpu.memory_space<vmem>>, vector<16x32xbf16>
    %cst_12 = arith.constant dense<0.000000e+00> : vector<1000x32xf32>
    %12 = tpu.matmul %10, %11, %cst_12 {dimension_numbers = #tpu.dot_dimension_numbers<[1], [0], [0], [1], [0, 0, 1, 1], [], []>} : vector<1000x16xbf16>, vector<16x32xbf16>, vector<1000x32xf32> -> vector<1000x32xf32>
    %13 = arith.addf %8, %12 : vector<1000x32xf32>
    %c0_13 = arith.constant 0 : index
    %14 = memref.load %arg1[%c0_13] : memref<1xf32, #tpu.memory_space<smem>>
    %cst_14 = arith.constant 0.000000e+00 : f32
    %15 = vector.broadcast %cst_14 : f32 to vector<1000x32xf32>
    %16 = arith.cmpf ogt, %13, %15 : vector<1000x32xf32>
    %17 = vector.broadcast %14 : f32 to vector<1000x32xf32>
    %18 = arith.mulf %17, %13 : vector<1000x32xf32>
    %19 = arith.select %16, %13, %18 : vector<1000x32xi1>, vector<1000x32xf32>
    %20 = arith.truncf %19 : vector<1000x32xf32> to vector<1000x32xbf16>
    %c0_15 = arith.constant 0 : index
    %c0_16 = arith.constant 0 : index
    %21 = vector.load %arg8[%c0_15, %c0_16] : memref<32x16xbf16, #tpu.memory_space<vmem>>, vector<32x16xbf16>
    %cst_17 = arith.constant dense<0.000000e+00> : vector<1000x16xf32>
    %22 = tpu.matmul %20, %21, %cst_17 {dimension_numbers = #tpu.dot_dimension_numbers<[1], [0], [0], [1], [0, 0, 1, 1], [], []>} : vector<1000x32xbf16>, vector<32x16xbf16>, vector<1000x16xf32> -> vector<1000x16xf32>
    %c0_18 = arith.constant 0 : index
    %c0_19 = arith.constant 0 : index
    %23 = vector.load %arg11[%c0_18, %c0_19] : memref<1000x16xf32, #tpu.memory_space<vmem>>, vector<1000x16xf32>
    %24 = arith.truncf %23 : vector<1000x16xf32> to vector<1000x16xbf16>
    %c0_20 = arith.constant 0 : index
    %c0_21 = arith.constant 0 : index
    %25 = vector.load %arg9[%c0_20, %c0_21] : memref<16x16xbf16, #tpu.memory_space<vmem>>, vector<16x16xbf16>
    %cst_22 = arith.constant dense<0.000000e+00> : vector<1000x16xf32>
    %26 = tpu.matmul %24, %25, %cst_22 {dimension_numbers = #tpu.dot_dimension_numbers<[1], [0], [0], [1], [0, 0, 1, 1], [], []>} : vector<1000x16xbf16>, vector<16x16xbf16>, vector<1000x16xf32> -> vector<1000x16xf32>
    %27 = arith.addf %22, %26 : vector<1000x16xf32>
    %c0_23 = arith.constant 0 : index
    %c0_24 = arith.constant 0 : index
    %28 = vector.load %arg10[%c0_23, %c0_24] : memref<1x16xf32, #tpu.memory_space<vmem>>, vector<1x16xf32>
    %29 = vector.broadcast %28 : vector<1x16xf32> to vector<1000x16xf32>
    %30 = arith.addf %27, %29 : vector<1000x16xf32>
    %c0_25 = arith.constant 0 : index
    %c0_26 = arith.constant 0 : index
    %31 = vector.load %arg12[%c0_25, %c0_26] : memref<1000x16xf32, #tpu.memory_space<vmem>>, vector<1000x16xf32>
    tpu.vector_store %arg12[%c0_25, %c0_26], %30 {strides = array<i32>} : memref<1000x16xf32, #tpu.memory_space<vmem>>, vector<1000x16xf32>,
    return
  }
  func.func @transform_0(%arg0: i32) -> i32 {
    %c0_i32 = arith.constant 0 : i32
    %c0_i32_0 = arith.constant 0 : i32
    return %c0_i32 : i32
  }
  func.func @transform_1(%arg0: i32) -> (i32, i32) {
    %c0_i32 = arith.constant 0 : i32
    %c0_i32_0 = arith.constant 0 : i32
    return %arg0, %c0_i32 : i32, i32
  }
  func.func @transform_2(%arg0: i32) -> (i32, i32) {
    %c0_i32 = arith.constant 0 : i32
    %c0_i32_0 = arith.constant 0 : i32
    return %arg0, %c0_i32 : i32, i32
  }
  func.func @transform_3(%arg0: i32) -> (i32, i32) {
    %c0_i32 = arith.constant 0 : i32
    %c0_i32_0 = arith.constant 0 : i32
    return %arg0, %c0_i32 : i32, i32
  }
  func.func @transform_4(%arg0: i32) -> (i32, i32) {
    %c0_i32 = arith.constant 0 : i32
    %c0_i32_0 = arith.constant 0 : i32
    %c0_i32_1 = arith.constant 0 : i32
    return %c0_i32, %c0_i32_0 : i32, i32
  }
  func.func @transform_5(%arg0: i32) -> (i32, i32) {
    %c0_i32 = arith.constant 0 : i32
    %c0_i32_0 = arith.constant 0 : i32
    %c0_i32_1 = arith.constant 0 : i32
    return %c0_i32, %c0_i32_0 : i32, i32
  }
  func.func @transform_6(%arg0: i32) -> (i32, i32) {
    %c0_i32 = arith.constant 0 : i32
    %c0_i32_0 = arith.constant 0 : i32
    %c0_i32_1 = arith.constant 0 : i32
    return %c0_i32, %c0_i32_0 : i32, i32
  }
  func.func @transform_7(%arg0: i32) -> (i32, i32) {
    %c0_i32 = arith.constant 0 : i32
    %c0_i32_0 = arith.constant 0 : i32
    %c0_i32_1 = arith.constant 0 : i32
    return %c0_i32, %c0_i32_0 : i32, i32
  }
  func.func @transform_8(%arg0: i32) -> (i32, i32) {
    %c0_i32 = arith.constant 0 : i32
    %c0_i32_0 = arith.constant 0 : i32
    %c0_i32_1 = arith.constant 0 : i32
    return %c0_i32, %c0_i32_0 : i32, i32
  }
  func.func @transform_9(%arg0: i32) -> (i32, i32) {
    %c0_i32 = arith.constant 0 : i32
    %c0_i32_0 = arith.constant 0 : i32
    %c0_i32_1 = arith.constant 0 : i32
    return %c0_i32, %c0_i32_0 : i32, i32
  }
  func.func @transform_10(%arg0: i32) -> (i32, i32) {
    %c0_i32 = arith.constant 0 : i32
    %c0_i32_0 = arith.constant 0 : i32
    return %arg0, %c0_i32 : i32, i32
  }
  func.func @transform_11(%arg0: i32) -> (i32, i32) {
    %c0_i32 = arith.constant 0 : i32
    %c0_i32_0 = arith.constant 0 : i32
    return %arg0, %c0_i32 : i32, i32
  }
}

</mosaic_0001>

<llo_original>
// kernel: tpu_custom_call.1
$region0: #{tpu_custom_call.1}
  #allocation0 [shape = 'u32[]', space=smem, size = 0x4, offset = 0x4, fixed_abs, tag = 'smem constant byte address 0x4 - core index']
  #allocation1 [shape = 'u32[144,128]{1,0:T(1,128)}', space=vmem, size = 0x12000, scoped, tag = 'internal scratch']
  #allocation2 [shape = 'f32[1]{0:T(128)S(6)}', space=smem, size = 0x200, scoped, tag = 'scoped memory for tpu_custom_call.1']
  %s0 = inlined_call_operand.<no memory space> [shape: f32[1], index: 0, kind: input, shape index: {}]
  %s1 = inlined_call_operand.vmem [shape: f32[1000,32], index: 1, kind: input, shape index: {}]
  %s2 = inlined_call_operand.vmem [shape: f32[1000,32], index: 2, kind: input, shape index: {}]
  %s3 = inlined_call_operand.vmem [shape: f32[1000,16], index: 3, kind: input, shape index: {}]
  %s4 = inlined_call_operand.vmem [shape: bf16[32,32], index: 4, kind: input, shape index: {}]
  %s5 = inlined_call_operand.vmem [shape: bf16[32,32], index: 5, kind: input, shape index: {}]
  %s6 = inlined_call_operand.vmem [shape: bf16[16,32], index: 6, kind: input, shape index: {}]
  %s7 = inlined_call_operand.vmem [shape: bf16[32,16], index: 7, kind: input, shape index: {}]
  %s8 = inlined_call_operand.vmem [shape: bf16[16,16], index: 8, kind: input, shape index: {}]
  %s9 = inlined_call_operand.vmem [shape: f32[1,16], index: 9, kind: input, shape index: {}]
  %s10 = inlined_call_operand.vmem [shape: f32[1000,16], index: 10, kind: input, shape index: {}]
  %s11 = inlined_call_operand.vmem [shape: f32[1000,16], index: 11, kind: output, shape index: {}]
  %s12 = sld [smem:[#allocation0]]
  $region54: #{tpu_custom_call.1} parent=0
    _
  %s14 = ssub.s32 1, %s12
  %s15 = scalar_select 0, %s14, %s12
  %16 = sst [smem:[#allocation2]] %s0
  // Predicated region
  $region2: #{tpu_custom_call.1} parent=0 // pred_check
    _
  $region3: #{tpu_custom_call.1} parent=0 // pred_check_branch
    %18 = sbr.rel (0) target = $region5
  $region4: #{tpu_custom_call.1} parent=0 // pred_region
    _
  $region5: #{tpu_custom_call.1} parent=0 // pred_fallthru
    _
  // Predicated region
  $region6: #{tpu_custom_call.1} parent=0 // pred_check
    _
  $region7: #{tpu_custom_call.1} parent=0 // pred_check_branch
    %20 = sbr.rel (0) target = $region9
  $region8: #{tpu_custom_call.1} parent=0 // pred_region
    _
  $region9: #{tpu_custom_call.1} parent=0 // pred_fallthru
    _
  // Predicated region
  $region10: #{tpu_custom_call.1} parent=0 // pred_check
    _
  $region11: #{tpu_custom_call.1} parent=0 // pred_check_branch
    %22 = sbr.rel (0) target = $region13
  $region12: #{tpu_custom_call.1} parent=0 // pred_region
    _
  $region13: #{tpu_custom_call.1} parent=0 // pred_fallthru
    _
  // Predicated region
  $region14: #{tpu_custom_call.1} parent=0 // pred_check
    _
  $region15: #{tpu_custom_call.1} parent=0 // pred_check_branch
    %24 = sbr.rel (0) target = $region17
  $region16: #{tpu_custom_call.1} parent=0 // pred_region
    _
  $region17: #{tpu_custom_call.1} parent=0 // pred_fallthru
    _
  // Predicated region
  $region18: #{tpu_custom_call.1} parent=0 // pred_check
    _
  $region19: #{tpu_custom_call.1} parent=0 // pred_check_branch
    %26 = sbr.rel (0) target = $region21
  $region20: #{tpu_custom_call.1} parent=0 // pred_region
    _
  $region21: #{tpu_custom_call.1} parent=0 // pred_fallthru
    _
  // Predicated region
  $region22: #{tpu_custom_call.1} parent=0 // pred_check
    _
  $region23: #{tpu_custom_call.1} parent=0 // pred_check_branch
    %28 = sbr.rel (0) target = $region25
  $region24: #{tpu_custom_call.1} parent=0 // pred_region
    _
  $region25: #{tpu_custom_call.1} parent=0 // pred_fallthru
    _
  // Predicated region
  $region26: #{tpu_custom_call.1} parent=0 // pred_check
    _
  $region27: #{tpu_custom_call.1} parent=0 // pred_check_branch
    %30 = sbr.rel (0) target = $region29
  $region28: #{tpu_custom_call.1} parent=0 // pred_region
    _
  $region29: #{tpu_custom_call.1} parent=0 // pred_fallthru
    _
  // Predicated region
  $region30: #{tpu_custom_call.1} parent=0 // pred_check
    _
  $region31: #{tpu_custom_call.1} parent=0 // pred_check_branch
    %32 = sbr.rel (0) target = $region33
  $region32: #{tpu_custom_call.1} parent=0 // pred_region
    _
  $region33: #{tpu_custom_call.1} parent=0 // pred_fallthru
    _
  // Predicated region
  $region34: #{tpu_custom_call.1} parent=0 // pred_check
    _
  $region35: #{tpu_custom_call.1} parent=0 // pred_check_branch
    %34 = sbr.rel (0) target = $region37
  $region36: #{tpu_custom_call.1} parent=0 // pred_region
    _
  $region37: #{tpu_custom_call.1} parent=0 // pred_fallthru
    _
  // Predicated region
  $region38: #{tpu_custom_call.1} parent=0 // pred_check
    _
  $region39: #{tpu_custom_call.1} parent=0 // pred_check_branch
    %36 = sbr.rel (0) target = $region41
  $region40: #{tpu_custom_call.1} parent=0 // pred_region
    _
  $region41: #{tpu_custom_call.1} parent=0 // pred_fallthru
    _
  // Predicated region
  $region42: #{tpu_custom_call.1} parent=0 // pred_check
    _
  $region43: #{tpu_custom_call.1} parent=0 // pred_check_branch
    %38 = sbr.rel (0) target = $region45
  $region44: #{tpu_custom_call.1} parent=0 // pred_region
    _
  $region45: #{tpu_custom_call.1} parent=0 // pred_fallthru
    _
  %v40 = vld [vmem:[%s1] sm:$0xff]
  %v41 = vld [vmem:[%s1 + $0x8] sm:$0xff]
  %v42 = vld [vmem:[%s1 + $0x10] sm:$0xff]
  %v43 = vld [vmem:[%s1 + $0x18] sm:$0xff]
  %v44 = vld [vmem:[%s1 + $0x20] sm:$0xff]
  %v45 = vld [vmem:[%s1 + $0x28] sm:$0xff]
  %v46 = vld [vmem:[%s1 + $0x30] sm:$0xff]
  %v47 = vld [vmem:[%s1 + $0x38] sm:$0xff]
  %v48 = vld [vmem:[%s1 + $0x40] sm:$0xff]
  %v49 = vld [vmem:[%s1 + $0x48] sm:$0xff]
  %v50 = vld [vmem:[%s1 + $0x50] sm:$0xff]
  %v51 = vld [vmem:[%s1 + $0x58] sm:$0xff]
  %v52 = vld [vmem:[%s1 + $0x60] sm:$0xff]
  %v53 = vld [vmem:[%s1 + $0x68] sm:$0xff]
  %v54 = vld [vmem:[%s1 + $0x70] sm:$0xff]
  %v55 = vld [vmem:[%s1 + $0x78] sm:$0xff]
  %v56 = vld [vmem:[%s1 + $0x80] sm:$0xff]
  %v57 = vld [vmem:[%s1 + $0x88] sm:$0xff]
  %v58 = vld [vmem:[%s1 + $0x90] sm:$0xff]
  %v59 = vld [vmem:[%s1 + $0x98] sm:$0xff]
  %v60 = vld [vmem:[%s1 + $0xa0] sm:$0xff]
  %v61 = vld [vmem:[%s1 + $0xa8] sm:$0xff]
  %v62 = vld [vmem:[%s1 + $0xb0] sm:$0xff]
  %v63 = vld [vmem:[%s1 + $0xb8] sm:$0xff]
  %v64 = vld [vmem:[%s1 + $0xc0] sm:$0xff]
  %v65 = vld [vmem:[%s1 + $0xc8] sm:$0xff]
  %v66 = vld [vmem:[%s1 + $0xd0] sm:$0xff]
  %v67 = vld [vmem:[%s1 + $0xd8] sm:$0xff]
  %v68 = vld [vmem:[%s1 + $0xe0] sm:$0xff]
  %v69 = vld [vmem:[%s1 + $0xe8] sm:$0xff]
  %v70 = vld [vmem:[%s1 + $0xf0] sm:$0xff]
  %v71 = vld [vmem:[%s1 + $0xf8] sm:$0xff]
  %v72 = vld [vmem:[%s1 + $0x100] sm:$0xff]
  %v73 = vld [vmem:[%s1 + $0x108] sm:$0xff]
  %v74 = vld [vmem:[%s1 + $0x110] sm:$0xff]
  %v75 = vld [vmem:[%s1 + $0x118] sm:$0xff]
  %v76 = vld [vmem:[%s1 + $0x120] sm:$0xff]
  %v77 = vld [vmem:[%s1 + $0x128] sm:$0xff]
  %v78 = vld [vmem:[%s1 + $0x130] sm:$0xff]
  %v79 = vld [vmem:[%s1 + $0x138] sm:$0xff]
  %v80 = vld [vmem:[%s1 + $0x140] sm:$0xff]
  %v81 = vld [vmem:[%s1 + $0x148] sm:$0xff]
  %v82 = vld [vmem:[%s1 + $0x150] sm:$0xff]
  %v83 = vld [vmem:[%s1 + $0x158] sm:$0xff]
  %v84 = vld [vmem:[%s1 + $0x160] sm:$0xff]
  %v85 = vld [vmem:[%s1 + $0x168] sm:$0xff]
  %v86 = vld [vmem:[%s1 + $0x170] sm:$0xff]
  %v87 = vld [vmem:[%s1 + $0x178] sm:$0xff]
  %v88 = vld [vmem:[%s1 + $0x180] sm:$0xff]
  %v89 = vld [vmem:[%s1 + $0x188] sm:$0xff]
  %v90 = vld [vmem:[%s1 + $0x190] sm:$0xff]
  %v91 = vld [vmem:[%s1 + $0x198] sm:$0xff]
  %v92 = vld [vmem:[%s1 + $0x1a0] sm:$0xff]
  %v93 = vld [vmem:[%s1 + $0x1a8] sm:$0xff]
  %v94 = vld [vmem:[%s1 + $0x1b0] sm:$0xff]
  %v95 = vld [vmem:[%s1 + $0x1b8] sm:$0xff]
  %v96 = vld [vmem:[%s1 + $0x1c0] sm:$0xff]
  %v97 = vld [vmem:[%s1 + $0x1c8] sm:$0xff]
  %v98 = vld [vmem:[%s1 + $0x1d0] sm:$0xff]
  %v99 = vld [vmem:[%s1 + $0x1d8] sm:$0xff]
  %v100 = vld [vmem:[%s1 + $0x1e0] sm:$0xff]
  %v101 = vld [vmem:[%s1 + $0x1e8] sm:$0xff]
  %v102 = vld [vmem:[%s1 + $0x1f0] sm:$0xff]
  %v103 = vld [vmem:[%s1 + $0x1f8] sm:$0xff]
  %v104 = vld [vmem:[%s1 + $0x200] sm:$0xff]
  %v105 = vld [vmem:[%s1 + $0x208] sm:$0xff]
  %v106 = vld [vmem:[%s1 + $0x210] sm:$0xff]
  %v107 = vld [vmem:[%s1 + $0x218] sm:$0xff]
  %v108 = vld [vmem:[%s1 + $0x220] sm:$0xff]
  %v109 = vld [vmem:[%s1 + $0x228] sm:$0xff]
  %v110 = vld [vmem:[%s1 + $0x230] sm:$0xff]
  %v111 = vld [vmem:[%s1 + $0x238] sm:$0xff]
  %v112 = vld [vmem:[%s1 + $0x240] sm:$0xff]
  %v113 = vld [vmem:[%s1 + $0x248] sm:$0xff]
  %v114 = vld [vmem:[%s1 + $0x250] sm:$0xff]
  %v115 = vld [vmem:[%s1 + $0x258] sm:$0xff]
  %v116 = vld [vmem:[%s1 + $0x260] sm:$0xff]
  %v117 = vld [vmem:[%s1 + $0x268] sm:$0xff]
  %v118 = vld [vmem:[%s1 + $0x270] sm:$0xff]
  %v119 = vld [vmem:[%s1 + $0x278] sm:$0xff]
  %v120 = vld [vmem:[%s1 + $0x280] sm:$0xff]
  %v121 = vld [vmem:[%s1 + $0x288] sm:$0xff]
  %v122 = vld [vmem:[%s1 + $0x290] sm:$0xff]
  %v123 = vld [vmem:[%s1 + $0x298] sm:$0xff]
  %v124 = vld [vmem:[%s1 + $0x2a0] sm:$0xff]
  %v125 = vld [vmem:[%s1 + $0x2a8] sm:$0xff]
  %v126 = vld [vmem:[%s1 + $0x2b0] sm:$0xff]
  %v127 = vld [vmem:[%s1 + $0x2b8] sm:$0xff]
  %v128 = vld [vmem:[%s1 + $0x2c0] sm:$0xff]
  %v129 = vld [vmem:[%s1 + $0x2c8] sm:$0xff]
  %v130 = vld [vmem:[%s1 + $0x2d0] sm:$0xff]
  %v131 = vld [vmem:[%s1 + $0x2d8] sm:$0xff]
  %v132 = vld [vmem:[%s1 + $0x2e0] sm:$0xff]
  %v133 = vld [vmem:[%s1 + $0x2e8] sm:$0xff]
  %v134 = vld [vmem:[%s1 + $0x2f0] sm:$0xff]
  %v135 = vld [vmem:[%s1 + $0x2f8] sm:$0xff]
  %v136 = vld [vmem:[%s1 + $0x300] sm:$0xff]
  %v137 = vld [vmem:[%s1 + $0x308] sm:$0xff]
  %v138 = vld [vmem:[%s1 + $0x310] sm:$0xff]
  %v139 = vld [vmem:[%s1 + $0x318] sm:$0xff]
  %v140 = vld [vmem:[%s1 + $0x320] sm:$0xff]
  %v141 = vld [vmem:[%s1 + $0x328] sm:$0xff]
  %v142 = vld [vmem:[%s1 + $0x330] sm:$0xff]
  %v143 = vld [vmem:[%s1 + $0x338] sm:$0xff]
  %v144 = vld [vmem:[%s1 + $0x340] sm:$0xff]
  %v145 = vld [vmem:[%s1 + $0x348] sm:$0xff]
  %v146 = vld [vmem:[%s1 + $0x350] sm:$0xff]
  %v147 = vld [vmem:[%s1 + $0x358] sm:$0xff]
  %v148 = vld [vmem:[%s1 + $0x360] sm:$0xff]
  %v149 = vld [vmem:[%s1 + $0x368] sm:$0xff]
  %v150 = vld [vmem:[%s1 + $0x370] sm:$0xff]
  %v151 = vld [vmem:[%s1 + $0x378] sm:$0xff]
  %v152 = vld [vmem:[%s1 + $0x380] sm:$0xff]
  %v153 = vld [vmem:[%s1 + $0x388] sm:$0xff]
  %v154 = vld [vmem:[%s1 + $0x390] sm:$0xff]
  %v155 = vld [vmem:[%s1 + $0x398] sm:$0xff]
  %v156 = vld [vmem:[%s1 + $0x3a0] sm:$0xff]
  %v157 = vld [vmem:[%s1 + $0x3a8] sm:$0xff]
  %v158 = vld [vmem:[%s1 + $0x3b0] sm:$0xff]
  %v159 = vld [vmem:[%s1 + $0x3b8] sm:$0xff]
  %v160 = vld [vmem:[%s1 + $0x3c0] sm:$0xff]
  %v161 = vld [vmem:[%s1 + $0x3c8] sm:$0xff]
  %v162 = vld [vmem:[%s1 + $0x3d0] sm:$0xff]
  %v163 = vld [vmem:[%s1 + $0x3d8] sm:$0xff]
  %v164 = vld [vmem:[%s1 + $0x3e0] sm:$0xff]
  %v165 = vpack.c.bf16 %v41, %v40
  %v166 = vpack.c.bf16 %v43, %v42
  %v167 = vpack.c.bf16 %v45, %v44
  %v168 = vpack.c.bf16 %v47, %v46
  %v169 = vpack.c.bf16 %v49, %v48
  %v170 = vpack.c.bf16 %v51, %v50
  %v171 = vpack.c.bf16 %v53, %v52
  %v172 = vpack.c.bf16 %v55, %v54
  %v173 = vpack.c.bf16 %v57, %v56
  %v174 = vpack.c.bf16 %v59, %v58
  %v175 = vpack.c.bf16 %v61, %v60
  %v176 = vpack.c.bf16 %v63, %v62
  %v177 = vpack.c.bf16 %v65, %v64
  %v178 = vpack.c.bf16 %v67, %v66
  %v179 = vpack.c.bf16 %v69, %v68
  %v180 = vpack.c.bf16 %v71, %v70
  %v181 = vpack.c.bf16 %v73, %v72
  %v182 = vpack.c.bf16 %v75, %v74
  %v183 = vpack.c.bf16 %v77, %v76
  %v184 = vpack.c.bf16 %v79, %v78
  %v185 = vpack.c.bf16 %v81, %v80
  %v186 = vpack.c.bf16 %v83, %v82
  %v187 = vpack.c.bf16 %v85, %v84
  %v188 = vpack.c.bf16 %v87, %v86
  %v189 = vpack.c.bf16 %v89, %v88
  %v190 = vpack.c.bf16 %v91, %v90
  %v191 = vpack.c.bf16 %v93, %v92
  %v192 = vpack.c.bf16 %v95, %v94
  %v193 = vpack.c.bf16 %v97, %v96
  %v194 = vpack.c.bf16 %v99, %v98
  %v195 = vpack.c.bf16 %v101, %v100
  %v196 = vpack.c.bf16 %v103, %v102
  %v197 = vpack.c.bf16 %v105, %v104
  %v198 = vpack.c.bf16 %v107, %v106
  %v199 = vpack.c.bf16 %v109, %v108
  %v200 = vpack.c.bf16 %v111, %v110
  %v201 = vpack.c.bf16 %v113, %v112
  %v202 = vpack.c.bf16 %v115, %v114
  %v203 = vpack.c.bf16 %v117, %v116
  %v204 = vpack.c.bf16 %v119, %v118
  %v205 = vpack.c.bf16 %v121, %v120
  %v206 = vpack.c.bf16 %v123, %v122
  %v207 = vpack.c.bf16 %v125, %v124
  %v208 = vpack.c.bf16 %v127, %v126
  %v209 = vpack.c.bf16 %v129, %v128
  %v210 = vpack.c.bf16 %v131, %v130
  %v211 = vpack.c.bf16 %v133, %v132
  %v212 = vpack.c.bf16 %v135, %v134
  %v213 = vpack.c.bf16 %v137, %v136
  %v214 = vpack.c.bf16 %v139, %v138
  %v215 = vpack.c.bf16 %v141, %v140
  %v216 = vpack.c.bf16 %v143, %v142
  %v217 = vpack.c.bf16 %v145, %v144
  %v218 = vpack.c.bf16 %v147, %v146
  %v219 = vpack.c.bf16 %v149, %v148
  %v220 = vpack.c.bf16 %v151, %v150
  %v221 = vpack.c.bf16 %v153, %v152
  %v222 = vpack.c.bf16 %v155, %v154
  %v223 = vpack.c.bf16 %v157, %v156
  %v224 = vpack.c.bf16 %v159, %v158
  %v225 = vpack.c.bf16 %v161, %v160
  %v226 = vpack.c.bf16 %v163, %v162
  %v227 = vpack.c.bf16 %v164, %v164
  %v228 = vld [vmem:[%s4] sm:$0xf]
  %v229 = vld [vmem:[%s4 + $0x4] sm:$0xf]
  %v230 = vld [vmem:[%s4 + $0x8] sm:$0xf]
  %v231 = vld [vmem:[%s4 + $0xc] sm:$0xf]
  %v232 = vld [vmem:[%s2] sm:$0xff]
  %v233 = vld [vmem:[%s2 + $0x8] sm:$0xff]
  %v234 = vld [vmem:[%s2 + $0x10] sm:$0xff]
  %v235 = vld [vmem:[%s2 + $0x18] sm:$0xff]
  %v236 = vld [vmem:[%s2 + $0x20] sm:$0xff]
  %v237 = vld [vmem:[%s2 + $0x28] sm:$0xff]
  %v238 = vld [vmem:[%s2 + $0x30] sm:$0xff]
  %v239 = vld [vmem:[%s2 + $0x38] sm:$0xff]
  %v240 = vld [vmem:[%s2 + $0x40] sm:$0xff]
  %v241 = vld [vmem:[%s2 + $0x48] sm:$0xff]
  %v242 = vld [vmem:[%s2 + $0x50] sm:$0xff]
  %v243 = vld [vmem:[%s2 + $0x58] sm:$0xff]
  %v244 = vld [vmem:[%s2 + $0x60] sm:$0xff]
  %v245 = vld [vmem:[%s2 + $0x68] sm:$0xff]
  %v246 = vld [vmem:[%s2 + $0x70] sm:$0xff]
  %v247 = vld [vmem:[%s2 + $0x78] sm:$0xff]
  %v248 = vld [vmem:[%s2 + $0x80] sm:$0xff]
  %v249 = vld [vmem:[%s2 + $0x88] sm:$0xff]
  %v250 = vld [vmem:[%s2 + $0x90] sm:$0xff]
  %v251 = vld [vmem:[%s2 + $0x98] sm:$0xff]
  %v252 = vld [vmem:[%s2 + $0xa0] sm:$0xff]
  %v253 = vld [vmem:[%s2 + $0xa8] sm:$0xff]
  %v254 = vld [vmem:[%s2 + $0xb0] sm:$0xff]
  %v255 = vld [vmem:[%s2 + $0xb8] sm:$0xff]
  %v256 = vld [vmem:[%s2 + $0xc0] sm:$0xff]
  %v257 = vld [vmem:[%s2 + $0xc8] sm:$0xff]
  %v258 = vld [vmem:[%s2 + $0xd0] sm:$0xff]
  %v259 = vld [vmem:[%s2 + $0xd8] sm:$0xff]
  %v260 = vld [vmem:[%s2 + $0xe0] sm:$0xff]
  %v261 = vld [vmem:[%s2 + $0xe8] sm:$0xff]
  %v262 = vld [vmem:[%s2 + $0xf0] sm:$0xff]
  %v263 = vld [vmem:[%s2 + $0xf8] sm:$0xff]
  %v264 = vld [vmem:[%s2 + $0x100] sm:$0xff]
  %v265 = vld [vmem:[%s2 + $0x108] sm:$0xff]
  %v266 = vld [vmem:[%s2 + $0x110] sm:$0xff]
  %v267 = vld [vmem:[%s2 + $0x118] sm:$0xff]
  %v268 = vld [vmem:[%s2 + $0x120] sm:$0xff]
  %v269 = vld [vmem:[%s2 + $0x128] sm:$0xff]
  %v270 = vld [vmem:[%s2 + $0x130] sm:$0xff]
  %v271 = vld [vmem:[%s2 + $0x138] sm:$0xff]
  %v272 = vld [vmem:[%s2 + $0x140] sm:$0xff]
  %v273 = vld [vmem:[%s2 + $0x148] sm:$0xff]
  %v274 = vld [vmem:[%s2 + $0x150] sm:$0xff]
  %v275 = vld [vmem:[%s2 + $0x158] sm:$0xff]
  %v276 = vld [vmem:[%s2 + $0x160] sm:$0xff]
  %v277 = vld [vmem:[%s2 + $0x168] sm:$0xff]
  %v278 = vld [vmem:[%s2 + $0x170] sm:$0xff]
  %v279 = vld [vmem:[%s2 + $0x178] sm:$0xff]
  %v280 = vld [vmem:[%s2 + $0x180] sm:$0xff]
  %v281 = vld [vmem:[%s2 + $0x188] sm:$0xff]
  %v282 = vld [vmem:[%s2 + $0x190] sm:$0xff]
  %v283 = vld [vmem:[%s2 + $0x198] sm:$0xff]
  %v284 = vld [vmem:[%s2 + $0x1a0] sm:$0xff]
  %v285 = vld [vmem:[%s2 + $0x1a8] sm:$0xff]
  %v286 = vld [vmem:[%s2 + $0x1b0] sm:$0xff]
  %v287 = vld [vmem:[%s2 + $0x1b8] sm:$0xff]
  %v288 = vld [vmem:[%s2 + $0x1c0] sm:$0xff]
  %v289 = vld [vmem:[%s2 + $0x1c8] sm:$0xff]
  %v290 = vld [vmem:[%s2 + $0x1d0] sm:$0xff]
  %v291 = vld [vmem:[%s2 + $0x1d8] sm:$0xff]
  %v292 = vld [vmem:[%s2 + $0x1e0] sm:$0xff]
  %v293 = vld [vmem:[%s2 + $0x1e8] sm:$0xff]
  %v294 = vld [vmem:[%s2 + $0x1f0] sm:$0xff]
  %v295 = vld [vmem:[%s2 + $0x1f8] sm:$0xff]
  %v296 = vld [vmem:[%s2 + $0x200] sm:$0xff]
  %v297 = vld [vmem:[%s2 + $0x208] sm:$0xff]
  %v298 = vld [vmem:[%s2 + $0x210] sm:$0xff]
  %v299 = vld [vmem:[%s2 + $0x218] sm:$0xff]
  %v300 = vld [vmem:[%s2 + $0x220] sm:$0xff]
  %v301 = vld [vmem:[%s2 + $0x228] sm:$0xff]
  %v302 = vld [vmem:[%s2 + $0x230] sm:$0xff]
  %v303 = vld [vmem:[%s2 + $0x238] sm:$0xff]
  %v304 = vld [vmem:[%s2 + $0x240] sm:$0xff]
  %v305 = vld [vmem:[%s2 + $0x248] sm:$0xff]
  %v306 = vld [vmem:[%s2 + $0x250] sm:$0xff]
  %v307 = vld [vmem:[%s2 + $0x258] sm:$0xff]
  %v308 = vld [vmem:[%s2 + $0x260] sm:$0xff]
  %v309 = vld [vmem:[%s2 + $0x268] sm:$0xff]
  %v310 = vld [vmem:[%s2 + $0x270] sm:$0xff]
  %v311 = vld [vmem:[%s2 + $0x278] sm:$0xff]
  %v312 = vld [vmem:[%s2 + $0x280] sm:$0xff]
  %v313 = vld [vmem:[%s2 + $0x288] sm:$0xff]
  %v314 = vld [vmem:[%s2 + $0x290] sm:$0xff]
  %v315 = vld [vmem:[%s2 + $0x298] sm:$0xff]
  %v316 = vld [vmem:[%s2 + $0x2a0] sm:$0xff]
  %v317 = vld [vmem:[%s2 + $0x2a8] sm:$0xff]
  %v318 = vld [vmem:[%s2 + $0x2b0] sm:$0xff]
  %v319 = vld [vmem:[%s2 + $0x2b8] sm:$0xff]
  %v320 = vld [vmem:[%s2 + $0x2c0] sm:$0xff]
  %v321 = vld [vmem:[%s2 + $0x2c8] sm:$0xff]
  %v322 = vld [vmem:[%s2 + $0x2d0] sm:$0xff]
  %v323 = vld [vmem:[%s2 + $0x2d8] sm:$0xff]
  %v324 = vld [vmem:[%s2 + $0x2e0] sm:$0xff]
  %v325 = vld [vmem:[%s2 + $0x2e8] sm:$0xff]
  %v326 = vld [vmem:[%s2 + $0x2f0] sm:$0xff]
  %v327 = vld [vmem:[%s2 + $0x2f8] sm:$0xff]
  %v328 = vld [vmem:[%s2 + $0x300] sm:$0xff]
  %v329 = vld [vmem:[%s2 + $0x308] sm:$0xff]
  %v330 = vld [vmem:[%s2 + $0x310] sm:$0xff]
  %v331 = vld [vmem:[%s2 + $0x318] sm:$0xff]
  %v332 = vld [vmem:[%s2 + $0x320] sm:$0xff]
  %v333 = vld [vmem:[%s2 + $0x328] sm:$0xff]
  %v334 = vld [vmem:[%s2 + $0x330] sm:$0xff]
  %v335 = vld [vmem:[%s2 + $0x338] sm:$0xff]
  %v336 = vld [vmem:[%s2 + $0x340] sm:$0xff]
  %v337 = vld [vmem:[%s2 + $0x348] sm:$0xff]
  %v338 = vld [vmem:[%s2 + $0x350] sm:$0xff]
  %v339 = vld [vmem:[%s2 + $0x358] sm:$0xff]
  %v340 = vld [vmem:[%s2 + $0x360] sm:$0xff]
  %v341 = vld [vmem:[%s2 + $0x368] sm:$0xff]
  %v342 = vld [vmem:[%s2 + $0x370] sm:$0xff]
  %v343 = vld [vmem:[%s2 + $0x378] sm:$0xff]
  %v344 = vld [vmem:[%s2 + $0x380] sm:$0xff]
  %v345 = vld [vmem:[%s2 + $0x388] sm:$0xff]
  %v346 = vld [vmem:[%s2 + $0x390] sm:$0xff]
  %v347 = vld [vmem:[%s2 + $0x398] sm:$0xff]
  %v348 = vld [vmem:[%s2 + $0x3a0] sm:$0xff]
  %v349 = vld [vmem:[%s2 + $0x3a8] sm:$0xff]
  %v350 = vld [vmem:[%s2 + $0x3b0] sm:$0xff]
  %v351 = vld [vmem:[%s2 + $0x3b8] sm:$0xff]
  %v352 = vld [vmem:[%s2 + $0x3c0] sm:$0xff]
  %v353 = vld [vmem:[%s2 + $0x3c8] sm:$0xff]
  %v354 = vld [vmem:[%s2 + $0x3d0] sm:$0xff]
  %v355 = vld [vmem:[%s2 + $0x3d8] sm:$0xff]
  %v356 = vld [vmem:[%s2 + $0x3e0] sm:$0xff]
  %v357 = vpack.c.bf16 %v233, %v232
  %v358 = vpack.c.bf16 %v235, %v234
  %v359 = vpack.c.bf16 %v237, %v236
  %v360 = vpack.c.bf16 %v239, %v238
  %v361 = vpack.c.bf16 %v241, %v240
  %v362 = vpack.c.bf16 %v243, %v242
  %v363 = vpack.c.bf16 %v245, %v244
  %v364 = vpack.c.bf16 %v247, %v246
  %v365 = vpack.c.bf16 %v249, %v248
  %v366 = vpack.c.bf16 %v251, %v250
  %v367 = vpack.c.bf16 %v253, %v252
  %v368 = vpack.c.bf16 %v255, %v254
  %v369 = vpack.c.bf16 %v257, %v256
  %v370 = vpack.c.bf16 %v259, %v258
  %v371 = vpack.c.bf16 %v261, %v260
  %v372 = vpack.c.bf16 %v263, %v262
  %v373 = vpack.c.bf16 %v265, %v264
  %v374 = vpack.c.bf16 %v267, %v266
  %v375 = vpack.c.bf16 %v269, %v268
  %v376 = vpack.c.bf16 %v271, %v270
  %v377 = vpack.c.bf16 %v273, %v272
  %v378 = vpack.c.bf16 %v275, %v274
  %v379 = vpack.c.bf16 %v277, %v276
  %v380 = vpack.c.bf16 %v279, %v278
  %v381 = vpack.c.bf16 %v281, %v280
  %v382 = vpack.c.bf16 %v283, %v282
  %v383 = vpack.c.bf16 %v285, %v284
  %v384 = vpack.c.bf16 %v287, %v286
  %v385 = vpack.c.bf16 %v289, %v288
  %v386 = vpack.c.bf16 %v291, %v290
  %v387 = vpack.c.bf16 %v293, %v292
  %v388 = vpack.c.bf16 %v295, %v294
  %v389 = vpack.c.bf16 %v297, %v296
  %v390 = vpack.c.bf16 %v299, %v298
  %v391 = vpack.c.bf16 %v301, %v300
  %v392 = vpack.c.bf16 %v303, %v302
  %v393 = vpack.c.bf16 %v305, %v304
  %v394 = vpack.c.bf16 %v307, %v306
  %v395 = vpack.c.bf16 %v309, %v308
  %v396 = vpack.c.bf16 %v311, %v310
  %v397 = vpack.c.bf16 %v313, %v312
  %v398 = vpack.c.bf16 %v315, %v314
  %v399 = vpack.c.bf16 %v317, %v316
  %v400 = vpack.c.bf16 %v319, %v318
  %v401 = vpack.c.bf16 %v321, %v320
  %v402 = vpack.c.bf16 %v323, %v322
  %v403 = vpack.c.bf16 %v325, %v324
  %v404 = vpack.c.bf16 %v327, %v326
  %v405 = vpack.c.bf16 %v329, %v328
  %v406 = vpack.c.bf16 %v331, %v330
  %v407 = vpack.c.bf16 %v333, %v332
  %v408 = vpack.c.bf16 %v335, %v334
  %v409 = vpack.c.bf16 %v337, %v336
  %v410 = vpack.c.bf16 %v339, %v338
  %v411 = vpack.c.bf16 %v341, %v340
  %v412 = vpack.c.bf16 %v343, %v342
  %v413 = vpack.c.bf16 %v345, %v344
  %v414 = vpack.c.bf16 %v347, %v346
  %v415 = vpack.c.bf16 %v349, %v348
  %v416 = vpack.c.bf16 %v351, %v350
  %v417 = vpack.c.bf16 %v353, %v352
  %v418 = vpack.c.bf16 %v355, %v354
  %v419 = vpack.c.bf16 %v356, %v356
  %v420 = vld [vmem:[%s5] sm:$0xf]
  %v421 = vld [vmem:[%s5 + $0x4] sm:$0xf]
  %v422 = vld [vmem:[%s5 + $0x8] sm:$0xf]
  %v423 = vld [vmem:[%s5 + $0xc] sm:$0xf]
  %v428 = vunpack.c.l.b16 %v420
  %v429 = vunpack.c.l.b16 %v421
  %v430 = vunpack.c.l.b16 %v422
  %v431 = vunpack.c.l.b16 %v423
  %v432 = vpack.c.b16 %v429, %v428
  %v433 = vpack.c.b16 %v431, %v430
  %vm436 = vcmask 261120
  %v438 = vsel %vm436, %v357, 0
  %v441 = vsel %vm436, %v358, 0
  %v444 = vsel %vm436, %v359, 0
  %v447 = vsel %vm436, %v360, 0
  %v450 = vsel %vm436, %v361, 0
  %v453 = vsel %vm436, %v362, 0
  %v456 = vsel %vm436, %v363, 0
  %v459 = vsel %vm436, %v364, 0
  %v462 = vsel %vm436, %v365, 0
  %v465 = vsel %vm436, %v366, 0
  %v468 = vsel %vm436, %v367, 0
  %v471 = vsel %vm436, %v368, 0
  %v474 = vsel %vm436, %v369, 0
  %v477 = vsel %vm436, %v370, 0
  %v480 = vsel %vm436, %v371, 0
  %v483 = vsel %vm436, %v372, 0
  %v486 = vsel %vm436, %v373, 0
  %v489 = vsel %vm436, %v374, 0
  %v492 = vsel %vm436, %v375, 0
  %v495 = vsel %vm436, %v376, 0
  %v498 = vsel %vm436, %v377, 0
  %v501 = vsel %vm436, %v378, 0
  %v504 = vsel %vm436, %v379, 0
  %v507 = vsel %vm436, %v380, 0
  %v510 = vsel %vm436, %v381, 0
  %v513 = vsel %vm436, %v382, 0
  %v516 = vsel %vm436, %v383, 0
  %v519 = vsel %vm436, %v384, 0
  %v522 = vsel %vm436, %v385, 0
  %v525 = vsel %vm436, %v386, 0
  %v528 = vsel %vm436, %v387, 0
  %v531 = vsel %vm436, %v388, 0
  %v534 = vsel %vm436, %v389, 0
  %v537 = vsel %vm436, %v390, 0
  %v540 = vsel %vm436, %v391, 0
  %v543 = vsel %vm436, %v392, 0
  %v546 = vsel %vm436, %v393, 0
  %v549 = vsel %vm436, %v394, 0
  %v552 = vsel %vm436, %v395, 0
  %v555 = vsel %vm436, %v396, 0
  %v558 = vsel %vm436, %v397, 0
  %v561 = vsel %vm436, %v398, 0
  %v564 = vsel %vm436, %v399, 0
  %v567 = vsel %vm436, %v400, 0
  %v570 = vsel %vm436, %v401, 0
  %v573 = vsel %vm436, %v402, 0
  %v576 = vsel %vm436, %v403, 0
  %v579 = vsel %vm436, %v404, 0
  %v582 = vsel %vm436, %v405, 0
  %v585 = vsel %vm436, %v406, 0
  %v588 = vsel %vm436, %v407, 0
  %v591 = vsel %vm436, %v408, 0
  %v594 = vsel %vm436, %v409, 0
  %v597 = vsel %vm436, %v410, 0
  %v600 = vsel %vm436, %v411, 0
  %v603 = vsel %vm436, %v412, 0
  %v606 = vsel %vm436, %v413, 0
  %v609 = vsel %vm436, %v414, 0
  %v612 = vsel %vm436, %v415, 0
  %v615 = vsel %vm436, %v416, 0
  %v618 = vsel %vm436, %v417, 0
  %v621 = vsel %vm436, %v418, 0
  %v624 = vsel %vm436, %v419, 0
  %626 = vmatprep.subr.bf16.mxu0 0
  %627 = vmatpush1.bf16.msra.mxu0 %v432
  %628 = vmatprep.subr.bf16.mxu0 0
  %629 = vmatpush1.bf16.msra.mxu0 %v433
  %630 = vmatprep.subr.bf16.mxu0 0
  %631 = vmatpush1.bf16.msra.mxu0 0
  %632 = vmatprep.subr.bf16.mxu0 0
  %633 = vmatpush1.bf16.msra.mxu0 0
  %634 = vmatprep.subr.bf16.mxu0 0
  %635 = vmatpush1.bf16.msra.mxu0 0
  %636 = vmatprep.subr.bf16.mxu0 0
  %637 = vmatpush1.bf16.msra.mxu0 0
  %638 = vmatprep.subr.bf16.mxu0 0
  %639 = vmatpush1.bf16.msra.mxu0 0
  %640 = vmatprep.subr.bf16.mxu0 0
  %641 = vmatpush1.bf16.msra.mxu0 0
  %642 = vmatprep.subr.bf16.mxu0 0
  %643 = vmatpush1.bf16.msra.mxu0 0
  %644 = vmatprep.subr.bf16.mxu0 0
  %645 = vmatpush1.bf16.msra.mxu0 0
  %646 = vmatprep.subr.bf16.mxu0 0
  %647 = vmatpush1.bf16.msra.mxu0 0
  %648 = vmatprep.subr.bf16.mxu0 0
  %649 = vmatpush1.bf16.msra.mxu0 0
  %650 = vmatprep.subr.bf16.mxu0 0
  %651 = vmatpush1.bf16.msra.mxu0 0
  %652 = vmatprep.subr.bf16.mxu0 0
  %653 = vmatpush1.bf16.msra.mxu0 0
  %654 = vmatprep.subr.bf16.mxu0 0
  %655 = vmatpush1.bf16.msra.mxu0 0
  %656 = vmatprep.subr.bf16.mxu0 0
  %657 = vmatpush1.bf16.msra.mxu0 0
  %658 = vmatprep.mubr.bf16.mxu0 0
  %659 = vmatmul.mubr.bf16.gmra.mrb[0].mxu0 %v438
  %v660 = vpop.f32.mrb[0].mxu0
  %v661 = vadd.f32 0.0, %v660
  %v662 = vpop.f32.mrb[0].mxu0
  %v663 = vpop.f32.mrb[0].mxu0
  %v664 = vadd.f32 0.0, %v663
  %v665 = vpop.f32.mrb[0].mxu0
  %666 = vmatprep.mubr.bf16.mxu0 0
  %667 = vmatmul.mubr.bf16.gmra.mrb[0].mxu0 %v441
  %v668 = vpop.f32.mrb[0].mxu0
  %v669 = vadd.f32 0.0, %v668
  %v670 = vpop.f32.mrb[0].mxu0
  %v671 = vpop.f32.mrb[0].mxu0
  %v672 = vadd.f32 0.0, %v671
  %v673 = vpop.f32.mrb[0].mxu0
  %674 = vmatprep.mubr.bf16.mxu0 0
  %675 = vmatmul.mubr.bf16.gmra.mrb[0].mxu0 %v444
  %v676 = vpop.f32.mrb[0].mxu0
  %v677 = vadd.f32 0.0, %v676
  %v678 = vpop.f32.mrb[0].mxu0
  %v679 = vpop.f32.mrb[0].mxu0
  %v680 = vadd.f32 0.0, %v679
  %v681 = vpop.f32.mrb[0].mxu0
  %682 = vmatprep.mubr.bf16.mxu0 0
  %683 = vmatmul.mubr.bf16.gmra.mrb[0].mxu0 %v447
  %v684 = vpop.f32.mrb[0].mxu0
  %v685 = vadd.f32 0.0, %v684
  %v686 = vpop.f32.mrb[0].mxu0
  %v687 = vpop.f32.mrb[0].mxu0
  %v688 = vadd.f32 0.0, %v687
  %v689 = vpop.f32.mrb[0].mxu0
  %690 = vmatprep.mubr.bf16.mxu0 0
  %691 = vmatmul.mubr.bf16.gmra.mrb[0].mxu0 %v450
  %v692 = vpop.f32.mrb[0].mxu0
  %v693 = vadd.f32 0.0, %v692
  %v694 = vpop.f32.mrb[0].mxu0
  %v695 = vpop.f32.mrb[0].mxu0
  %v696 = vadd.f32 0.0, %v695
  %v697 = vpop.f32.mrb[0].mxu0
  %698 = vmatprep.mubr.bf16.mxu0 0
  %699 = vmatmul.mubr.bf16.gmra.mrb[0].mxu0 %v453
  %v700 = vpop.f32.mrb[0].mxu0
  %v701 = vadd.f32 0.0, %v700
  %v702 = vpop.f32.mrb[0].mxu0
  %v703 = vpop.f32.mrb[0].mxu0
  %v704 = vadd.f32 0.0, %v703
  %v705 = vpop.f32.mrb[0].mxu0
  %706 = vmatprep.mubr.bf16.mxu0 0
  %707 = vmatmul.mubr.bf16.gmra.mrb[0].mxu0 %v456
  %v708 = vpop.f32.mrb[0].mxu0
  %v709 = vadd.f32 0.0, %v708
  %v710 = vpop.f32.mrb[0].mxu0
  %v711 = vpop.f32.mrb[0].mxu0
  %v712 = vadd.f32 0.0, %v711
  %v713 = vpop.f32.mrb[0].mxu0
  %714 = vmatprep.mubr.bf16.mxu0 0
  %715 = vmatmul.mubr.bf16.gmra.mrb[0].mxu0 %v459
  %v716 = vpop.f32.mrb[0].mxu0
  %v717 = vadd.f32 0.0, %v716
  %v718 = vpop.f32.mrb[0].mxu0
  %v719 = vpop.f32.mrb[0].mxu0
  %v720 = vadd.f32 0.0, %v719
  %v721 = vpop.f32.mrb[0].mxu0
  %722 = vmatprep.mubr.bf16.mxu0 0
  %723 = vmatmul.mubr.bf16.gmra.mrb[0].mxu0 %v462
  %v724 = vpop.f32.mrb[0].mxu0
  %v725 = vadd.f32 0.0, %v724
  %v726 = vpop.f32.mrb[0].mxu0
  %v727 = vpop.f32.mrb[0].mxu0
  %v728 = vadd.f32 0.0, %v727
  %v729 = vpop.f32.mrb[0].mxu0
  %730 = vmatprep.mubr.bf16.mxu0 0
  %731 = vmatmul.mubr.bf16.gmra.mrb[0].mxu0 %v465
  %v732 = vpop.f32.mrb[0].mxu0
  %v733 = vadd.f32 0.0, %v732
  %v734 = vpop.f32.mrb[0].mxu0
  %v735 = vpop.f32.mrb[0].mxu0
  %v736 = vadd.f32 0.0, %v735
  %v737 = vpop.f32.mrb[0].mxu0
  %738 = vmatprep.mubr.bf16.mxu0 0
  %739 = vmatmul.mubr.bf16.gmra.mrb[0].mxu0 %v468
  %v740 = vpop.f32.mrb[0].mxu0
  %v741 = vadd.f32 0.0, %v740
  %v742 = vpop.f32.mrb[0].mxu0
  %v743 = vpop.f32.mrb[0].mxu0
  %v744 = vadd.f32 0.0, %v743
  %v745 = vpop.f32.mrb[0].mxu0
  %746 = vmatprep.mubr.bf16.mxu0 0
  %747 = vmatmul.mubr.bf16.gmra.mrb[0].mxu0 %v471
  %v748 = vpop.f32.mrb[0].mxu0
  %v749 = vadd.f32 0.0, %v748
  %v750 = vpop.f32.mrb[0].mxu0
  %v751 = vpop.f32.mrb[0].mxu0
  %v752 = vadd.f32 0.0, %v751
  %v753 = vpop.f32.mrb[0].mxu0
  %754 = vmatprep.mubr.bf16.mxu0 0
  %755 = vmatmul.mubr.bf16.gmra.mrb[0].mxu0 %v474
  %v756 = vpop.f32.mrb[0].mxu0
  %v757 = vadd.f32 0.0, %v756
  %v758 = vpop.f32.mrb[0].mxu0
  %v759 = vpop.f32.mrb[0].mxu0
  %v760 = vadd.f32 0.0, %v759
  %v761 = vpop.f32.mrb[0].mxu0
  %762 = vmatprep.mubr.bf16.mxu0 0
  %763 = vmatmul.mubr.bf16.gmra.mrb[0].mxu0 %v477
  %v764 = vpop.f32.mrb[0].mxu0
  %v765 = vadd.f32 0.0, %v764
  %v766 = vpop.f32.mrb[0].mxu0
  %v767 = vpop.f32.mrb[0].mxu0
  %v768 = vadd.f32 0.0, %v767
  %v769 = vpop.f32.mrb[0].mxu0
  %770 = vmatprep.mubr.bf16.mxu0 0
  %771 = vmatmul.mubr.bf16.gmra.mrb[0].mxu0 %v480
  %v772 = vpop.f32.mrb[0].mxu0
  %v773 = vadd.f32 0.0, %v772
  %v774 = vpop.f32.mrb[0].mxu0
  %v775 = vpop.f32.mrb[0].mxu0
  %v776 = vadd.f32 0.0, %v775
  %v777 = vpop.f32.mrb[0].mxu0
  %778 = vmatprep.mubr.bf16.mxu0 0
  %779 = vmatmul.mubr.bf16.gmra.mrb[0].mxu0 %v483
  %v780 = vpop.f32.mrb[0].mxu0
  %v781 = vadd.f32 0.0, %v780
  %v782 = vpop.f32.mrb[0].mxu0
  %v783 = vpop.f32.mrb[0].mxu0
  %v784 = vadd.f32 0.0, %v783
  %v785 = vpop.f32.mrb[0].mxu0
  %786 = vmatprep.mubr.bf16.mxu0 0
  %787 = vmatmul.mubr.bf16.gmra.mrb[0].mxu0 %v486
  %v788 = vpop.f32.mrb[0].mxu0
  %v789 = vadd.f32 0.0, %v788
  %v790 = vpop.f32.mrb[0].mxu0
  %v791 = vpop.f32.mrb[0].mxu0
  %v792 = vadd.f32 0.0, %v791
  %v793 = vpop.f32.mrb[0].mxu0
  %794 = vmatprep.mubr.bf16.mxu0 0
  %795 = vmatmul.mubr.bf16.gmra.mrb[0].mxu0 %v489
  %v796 = vpop.f32.mrb[0].mxu0
  %v797 = vadd.f32 0.0, %v796
  %v798 = vpop.f32.mrb[0].mxu0
  %v799 = vpop.f32.mrb[0].mxu0
  %v800 = vadd.f32 0.0, %v799
  %v801 = vpop.f32.mrb[0].mxu0
  %802 = vmatprep.mubr.bf16.mxu0 0
  %803 = vmatmul.mubr.bf16.gmra.mrb[0].mxu0 %v492
  %v804 = vpop.f32.mrb[0].mxu0
  %v805 = vadd.f32 0.0, %v804
  %v806 = vpop.f32.mrb[0].mxu0
  %v807 = vpop.f32.mrb[0].mxu0
  %v808 = vadd.f32 0.0, %v807
  %v809 = vpop.f32.mrb[0].mxu0
  %810 = vmatprep.mubr.bf16.mxu0 0
  %811 = vmatmul.mubr.bf16.gmra.mrb[0].mxu0 %v495
  %v812 = vpop.f32.mrb[0].mxu0
  %v813 = vadd.f32 0.0, %v812
  %v814 = vpop.f32.mrb[0].mxu0
  %v815 = vpop.f32.mrb[0].mxu0
  %v816 = vadd.f32 0.0, %v815
  %v817 = vpop.f32.mrb[0].mxu0
  %818 = vmatprep.mubr.bf16.mxu0 0
  %819 = vmatmul.mubr.bf16.gmra.mrb[0].mxu0 %v498
  %v820 = vpop.f32.mrb[0].mxu0
  %v821 = vadd.f32 0.0, %v820
  %v822 = vpop.f32.mrb[0].mxu0
  %v823 = vpop.f32.mrb[0].mxu0
  %v824 = vadd.f32 0.0, %v823
  %v825 = vpop.f32.mrb[0].mxu0
  %826 = vmatprep.mubr.bf16.mxu0 0
  %827 = vmatmul.mubr.bf16.gmra.mrb[0].mxu0 %v501
  %v828 = vpop.f32.mrb[0].mxu0
  %v829 = vadd.f32 0.0, %v828
  %v830 = vpop.f32.mrb[0].mxu0
  %v831 = vpop.f32.mrb[0].mxu0
  %v832 = vadd.f32 0.0, %v831
  %v833 = vpop.f32.mrb[0].mxu0
  %834 = vmatprep.mubr.bf16.mxu0 0
  %835 = vmatmul.mubr.bf16.gmra.mrb[0].mxu0 %v504
  %v836 = vpop.f32.mrb[0].mxu0
  %v837 = vadd.f32 0.0, %v836
  %v838 = vpop.f32.mrb[0].mxu0
  %v839 = vpop.f32.mrb[0].mxu0
  %v840 = vadd.f32 0.0, %v839
  %v841 = vpop.f32.mrb[0].mxu0
  %842 = vmatprep.mubr.bf16.mxu0 0
  %843 = vmatmul.mubr.bf16.gmra.mrb[0].mxu0 %v507
  %v844 = vpop.f32.mrb[0].mxu0
  %v845 = vadd.f32 0.0, %v844
  %v846 = vpop.f32.mrb[0].mxu0
  %v847 = vpop.f32.mrb[0].mxu0
  %v848 = vadd.f32 0.0, %v847
  %v849 = vpop.f32.mrb[0].mxu0
  %850 = vmatprep.mubr.bf16.mxu0 0
  %851 = vmatmul.mubr.bf16.gmra.mrb[0].mxu0 %v510
  %v852 = vpop.f32.mrb[0].mxu0
  %v853 = vadd.f32 0.0, %v852
  %v854 = vpop.f32.mrb[0].mxu0
  %v855 = vpop.f32.mrb[0].mxu0
  %v856 = vadd.f32 0.0, %v855
  %v857 = vpop.f32.mrb[0].mxu0
  %858 = vmatprep.mubr.bf16.mxu0 0
  %859 = vmatmul.mubr.bf16.gmra.mrb[0].mxu0 %v513
  %v860 = vpop.f32.mrb[0].mxu0
  %v861 = vadd.f32 0.0, %v860
  %v862 = vpop.f32.mrb[0].mxu0
  %v863 = vpop.f32.mrb[0].mxu0
  %v864 = vadd.f32 0.0, %v863
  %v865 = vpop.f32.mrb[0].mxu0
  %866 = vmatprep.mubr.bf16.mxu0 0
  %867 = vmatmul.mubr.bf16.gmra.mrb[0].mxu0 %v516
  %v868 = vpop.f32.mrb[0].mxu0
  %v869 = vadd.f32 0.0, %v868
  %v870 = vpop.f32.mrb[0].mxu0
  %v871 = vpop.f32.mrb[0].mxu0
  %v872 = vadd.f32 0.0, %v871
  %v873 = vpop.f32.mrb[0].mxu0
  %874 = vmatprep.mubr.bf16.mxu0 0
  %875 = vmatmul.mubr.bf16.gmra.mrb[0].mxu0 %v519
  %v876 = vpop.f32.mrb[0].mxu0
  %v877 = vadd.f32 0.0, %v876
  %v878 = vpop.f32.mrb[0].mxu0
  %v879 = vpop.f32.mrb[0].mxu0
  %v880 = vadd.f32 0.0, %v879
  %v881 = vpop.f32.mrb[0].mxu0
  %882 = vmatprep.mubr.bf16.mxu0 0
  %883 = vmatmul.mubr.bf16.gmra.mrb[0].mxu0 %v522
  %v884 = vpop.f32.mrb[0].mxu0
  %v885 = vadd.f32 0.0, %v884
  %v886 = vpop.f32.mrb[0].mxu0
  %v887 = vpop.f32.mrb[0].mxu0
  %v888 = vadd.f32 0.0, %v887
  %v889 = vpop.f32.mrb[0].mxu0
  %890 = vmatprep.mubr.bf16.mxu0 0
  %891 = vmatmul.mubr.bf16.gmra.mrb[0].mxu0 %v525
  %v892 = vpop.f32.mrb[0].mxu0
  %v893 = vadd.f32 0.0, %v892
  %v894 = vpop.f32.mrb[0].mxu0
  %v895 = vpop.f32.mrb[0].mxu0
  %v896 = vadd.f32 0.0, %v895
  %v897 = vpop.f32.mrb[0].mxu0
  %898 = vmatprep.mubr.bf16.mxu0 0
  %899 = vmatmul.mubr.bf16.gmra.mrb[0].mxu0 %v528
  %v900 = vpop.f32.mrb[0].mxu0
  %v901 = vadd.f32 0.0, %v900
  %v902 = vpop.f32.mrb[0].mxu0
  %v903 = vpop.f32.mrb[0].mxu0
  %v904 = vadd.f32 0.0, %v903
  %v905 = vpop.f32.mrb[0].mxu0
  %906 = vmatprep.mubr.bf16.mxu0 0
  %907 = vmatmul.mubr.bf16.gmra.mrb[0].mxu0 %v531
  %v908 = vpop.f32.mrb[0].mxu0
  %v909 = vadd.f32 0.0, %v908
  %v910 = vpop.f32.mrb[0].mxu0
  %v911 = vpop.f32.mrb[0].mxu0
  %v912 = vadd.f32 0.0, %v911
  %v913 = vpop.f32.mrb[0].mxu0
  %914 = vmatprep.mubr.bf16.mxu0 0
  %915 = vmatmul.mubr.bf16.gmra.mrb[0].mxu0 %v534
  %v916 = vpop.f32.mrb[0].mxu0
  %v917 = vadd.f32 0.0, %v916
  %v918 = vpop.f32.mrb[0].mxu0
  %v919 = vpop.f32.mrb[0].mxu0
  %v920 = vadd.f32 0.0, %v919
  %v921 = vpop.f32.mrb[0].mxu0
  %922 = vmatprep.mubr.bf16.mxu0 0
  %923 = vmatmul.mubr.bf16.gmra.mrb[0].mxu0 %v537
  %v924 = vpop.f32.mrb[0].mxu0
  %v925 = vadd.f32 0.0, %v924
  %v926 = vpop.f32.mrb[0].mxu0
  %v927 = vpop.f32.mrb[0].mxu0
  %v928 = vadd.f32 0.0, %v927
  %v929 = vpop.f32.mrb[0].mxu0
  %930 = vmatprep.mubr.bf16.mxu0 0
  %931 = vmatmul.mubr.bf16.gmra.mrb[0].mxu0 %v540
  %v932 = vpop.f32.mrb[0].mxu0
  %v933 = vadd.f32 0.0, %v932
  %v934 = vpop.f32.mrb[0].mxu0
  %v935 = vpop.f32.mrb[0].mxu0
  %v936 = vadd.f32 0.0, %v935
  %v937 = vpop.f32.mrb[0].mxu0
  %938 = vmatprep.mubr.bf16.mxu0 0
  %939 = vmatmul.mubr.bf16.gmra.mrb[0].mxu0 %v543
  %v940 = vpop.f32.mrb[0].mxu0
  %v941 = vadd.f32 0.0, %v940
  %v942 = vpop.f32.mrb[0].mxu0
  %v943 = vpop.f32.mrb[0].mxu0
  %v944 = vadd.f32 0.0, %v943
  %v945 = vpop.f32.mrb[0].mxu0
  %946 = vmatprep.mubr.bf16.mxu0 0
  %947 = vmatmul.mubr.bf16.gmra.mrb[0].mxu0 %v546
  %v948 = vpop.f32.mrb[0].mxu0
  %v949 = vadd.f32 0.0, %v948
  %v950 = vpop.f32.mrb[0].mxu0
  %v951 = vpop.f32.mrb[0].mxu0
  %v952 = vadd.f32 0.0, %v951
  %v953 = vpop.f32.mrb[0].mxu0
  %954 = vmatprep.mubr.bf16.mxu0 0
  %955 = vmatmul.mubr.bf16.gmra.mrb[0].mxu0 %v549
  %v956 = vpop.f32.mrb[0].mxu0
  %v957 = vadd.f32 0.0, %v956
  %v958 = vpop.f32.mrb[0].mxu0
  %v959 = vpop.f32.mrb[0].mxu0
  %v960 = vadd.f32 0.0, %v959
  %v961 = vpop.f32.mrb[0].mxu0
  %962 = vmatprep.mubr.bf16.mxu0 0
  %963 = vmatmul.mubr.bf16.gmra.mrb[0].mxu0 %v552
  %v964 = vpop.f32.mrb[0].mxu0
  %v965 = vadd.f32 0.0, %v964
  %v966 = vpop.f32.mrb[0].mxu0
  %v967 = vpop.f32.mrb[0].mxu0
  %v968 = vadd.f32 0.0, %v967
  %v969 = vpop.f32.mrb[0].mxu0
  %970 = vmatprep.mubr.bf16.mxu0 0
  %971 = vmatmul.mubr.bf16.gmra.mrb[0].mxu0 %v555
  %v972 = vpop.f32.mrb[0].mxu0
  %v973 = vadd.f32 0.0, %v972
  %v974 = vpop.f32.mrb[0].mxu0
  %v975 = vpop.f32.mrb[0].mxu0
  %v976 = vadd.f32 0.0, %v975
  %v977 = vpop.f32.mrb[0].mxu0
  %978 = vmatprep.mubr.bf16.mxu0 0
  %979 = vmatmul.mubr.bf16.gmra.mrb[0].mxu0 %v558
  %v980 = vpop.f32.mrb[0].mxu0
  %v981 = vadd.f32 0.0, %v980
  %v982 = vpop.f32.mrb[0].mxu0
  %v983 = vpop.f32.mrb[0].mxu0
  %v984 = vadd.f32 0.0, %v983
  %v985 = vpop.f32.mrb[0].mxu0
  %986 = vmatprep.mubr.bf16.mxu0 0
  %987 = vmatmul.mubr.bf16.gmra.mrb[0].mxu0 %v561
  %v988 = vpop.f32.mrb[0].mxu0
  %v989 = vadd.f32 0.0, %v988
  %v990 = vpop.f32.mrb[0].mxu0
  %v991 = vpop.f32.mrb[0].mxu0
  %v992 = vadd.f32 0.0, %v991
  %v993 = vpop.f32.mrb[0].mxu0
  %994 = vmatprep.mubr.bf16.mxu0 0
  %995 = vmatmul.mubr.bf16.gmra.mrb[0].mxu0 %v564
  %v996 = vpop.f32.mrb[0].mxu0
  %v997 = vadd.f32 0.0, %v996
  %v998 = vpop.f32.mrb[0].mxu0
  %v999 = vpop.f32.mrb[0].mxu0
  %v1000 = vadd.f32 0.0, %v999
  %v1001 = vpop.f32.mrb[0].mxu0
  %1002 = vmatprep.mubr.bf16.mxu0 0
  %1003 = vmatmul.mubr.bf16.gmra.mrb[0].mxu0 %v567
  %v1004 = vpop.f32.mrb[0].mxu0
  %v1005 = vadd.f32 0.0, %v1004
  %v1006 = vpop.f32.mrb[0].mxu0
  %v1007 = vpop.f32.mrb[0].mxu0
  %v1008 = vadd.f32 0.0, %v1007
  %v1009 = vpop.f32.mrb[0].mxu0
  %1010 = vmatprep.mubr.bf16.mxu0 0
  %1011 = vmatmul.mubr.bf16.gmra.mrb[0].mxu0 %v570
  %v1012 = vpop.f32.mrb[0].mxu0
  %v1013 = vadd.f32 0.0, %v1012
  %v1014 = vpop.f32.mrb[0].mxu0
  %v1015 = vpop.f32.mrb[0].mxu0
  %v1016 = vadd.f32 0.0, %v1015
  %v1017 = vpop.f32.mrb[0].mxu0
  %1018 = vmatprep.mubr.bf16.mxu0 0
  %1019 = vmatmul.mubr.bf16.gmra.mrb[0].mxu0 %v573
  %v1020 = vpop.f32.mrb[0].mxu0
  %v1021 = vadd.f32 0.0, %v1020
  %v1022 = vpop.f32.mrb[0].mxu0
  %v1023 = vpop.f32.mrb[0].mxu0
  %v1024 = vadd.f32 0.0, %v1023
  %v1025 = vpop.f32.mrb[0].mxu0
  %1026 = vmatprep.mubr.bf16.mxu0 0
  %1027 = vmatmul.mubr.bf16.gmra.mrb[0].mxu0 %v576
  %v1028 = vpop.f32.mrb[0].mxu0
  %v1029 = vadd.f32 0.0, %v1028
  %v1030 = vpop.f32.mrb[0].mxu0
  %v1031 = vpop.f32.mrb[0].mxu0
  %v1032 = vadd.f32 0.0, %v1031
  %v1033 = vpop.f32.mrb[0].mxu0
  %1034 = vmatprep.mubr.bf16.mxu0 0
  %1035 = vmatmul.mubr.bf16.gmra.mrb[0].mxu0 %v579
  %v1036 = vpop.f32.mrb[0].mxu0
  %v1037 = vadd.f32 0.0, %v1036
  %v1038 = vpop.f32.mrb[0].mxu0
  %v1039 = vpop.f32.mrb[0].mxu0
  %v1040 = vadd.f32 0.0, %v1039
  %v1041 = vpop.f32.mrb[0].mxu0
  %1042 = vmatprep.mubr.bf16.mxu0 0
  %1043 = vmatmul.mubr.bf16.gmra.mrb[0].mxu0 %v582
  %v1044 = vpop.f32.mrb[0].mxu0
  %v1045 = vadd.f32 0.0, %v1044
  %v1046 = vpop.f32.mrb[0].mxu0
  %v1047 = vpop.f32.mrb[0].mxu0
  %v1048 = vadd.f32 0.0, %v1047
  %v1049 = vpop.f32.mrb[0].mxu0
  %1050 = vmatprep.mubr.bf16.mxu0 0
  %1051 = vmatmul.mubr.bf16.gmra.mrb[0].mxu0 %v585
  %v1052 = vpop.f32.mrb[0].mxu0
  %v1053 = vadd.f32 0.0, %v1052
  %v1054 = vpop.f32.mrb[0].mxu0
  %v1055 = vpop.f32.mrb[0].mxu0
  %v1056 = vadd.f32 0.0, %v1055
  %v1057 = vpop.f32.mrb[0].mxu0
  %1058 = vmatprep.mubr.bf16.mxu0 0
  %1059 = vmatmul.mubr.bf16.gmra.mrb[0].mxu0 %v588
  %v1060 = vpop.f32.mrb[0].mxu0
  %v1061 = vadd.f32 0.0, %v1060
  %v1062 = vpop.f32.mrb[0].mxu0
  %v1063 = vpop.f32.mrb[0].mxu0
  %v1064 = vadd.f32 0.0, %v1063
  %v1065 = vpop.f32.mrb[0].mxu0
  %1066 = vmatprep.mubr.bf16.mxu0 0
  %1067 = vmatmul.mubr.bf16.gmra.mrb[0].mxu0 %v591
  %v1068 = vpop.f32.mrb[0].mxu0
  %v1069 = vadd.f32 0.0, %v1068
  %v1070 = vpop.f32.mrb[0].mxu0
  %v1071 = vpop.f32.mrb[0].mxu0
  %v1072 = vadd.f32 0.0, %v1071
  %v1073 = vpop.f32.mrb[0].mxu0
  %1074 = vmatprep.mubr.bf16.mxu0 0
  %1075 = vmatmul.mubr.bf16.gmra.mrb[0].mxu0 %v594
  %v1076 = vpop.f32.mrb[0].mxu0
  %v1077 = vadd.f32 0.0, %v1076
  %v1078 = vpop.f32.mrb[0].mxu0
  %v1079 = vpop.f32.mrb[0].mxu0
  %v1080 = vadd.f32 0.0, %v1079
  %v1081 = vpop.f32.mrb[0].mxu0
  %1082 = vmatprep.mubr.bf16.mxu0 0
  %1083 = vmatmul.mubr.bf16.gmra.mrb[0].mxu0 %v597
  %v1084 = vpop.f32.mrb[0].mxu0
  %v1085 = vadd.f32 0.0, %v1084
  %v1086 = vpop.f32.mrb[0].mxu0
  %v1087 = vpop.f32.mrb[0].mxu0
  %v1088 = vadd.f32 0.0, %v1087
  %v1089 = vpop.f32.mrb[0].mxu0
  %1090 = vmatprep.mubr.bf16.mxu0 0
  %1091 = vmatmul.mubr.bf16.gmra.mrb[0].mxu0 %v600
  %v1092 = vpop.f32.mrb[0].mxu0
  %v1093 = vadd.f32 0.0, %v1092
  %v1094 = vpop.f32.mrb[0].mxu0
  %v1095 = vpop.f32.mrb[0].mxu0
  %v1096 = vadd.f32 0.0, %v1095
  %v1097 = vpop.f32.mrb[0].mxu0
  %1098 = vmatprep.mubr.bf16.mxu0 0
  %1099 = vmatmul.mubr.bf16.gmra.mrb[0].mxu0 %v603
  %v1100 = vpop.f32.mrb[0].mxu0
  %v1101 = vadd.f32 0.0, %v1100
  %v1102 = vpop.f32.mrb[0].mxu0
  %v1103 = vpop.f32.mrb[0].mxu0
  %v1104 = vadd.f32 0.0, %v1103
  %v1105 = vpop.f32.mrb[0].mxu0
  %1106 = vmatprep.mubr.bf16.mxu0 0
  %1107 = vmatmul.mubr.bf16.gmra.mrb[0].mxu0 %v606
  %v1108 = vpop.f32.mrb[0].mxu0
  %v1109 = vadd.f32 0.0, %v1108
  %v1110 = vpop.f32.mrb[0].mxu0
  %v1111 = vpop.f32.mrb[0].mxu0
  %v1112 = vadd.f32 0.0, %v1111
  %v1113 = vpop.f32.mrb[0].mxu0
  %1114 = vmatprep.mubr.bf16.mxu0 0
  %1115 = vmatmul.mubr.bf16.gmra.mrb[0].mxu0 %v609
  %v1116 = vpop.f32.mrb[0].mxu0
  %v1117 = vadd.f32 0.0, %v1116
  %v1118 = vpop.f32.mrb[0].mxu0
  %v1119 = vpop.f32.mrb[0].mxu0
  %v1120 = vadd.f32 0.0, %v1119
  %v1121 = vpop.f32.mrb[0].mxu0
  %1122 = vmatprep.mubr.bf16.mxu0 0
  %1123 = vmatmul.mubr.bf16.gmra.mrb[0].mxu0 %v612
  %v1124 = vpop.f32.mrb[0].mxu0
  %v1125 = vadd.f32 0.0, %v1124
  %v1126 = vpop.f32.mrb[0].mxu0
  %v1127 = vpop.f32.mrb[0].mxu0
  %v1128 = vadd.f32 0.0, %v1127
  %v1129 = vpop.f32.mrb[0].mxu0
  %1130 = vmatprep.mubr.bf16.mxu0 0
  %1131 = vmatmul.mubr.bf16.gmra.mrb[0].mxu0 %v615
  %v1132 = vpop.f32.mrb[0].mxu0
  %v1133 = vadd.f32 0.0, %v1132
  %v1134 = vpop.f32.mrb[0].mxu0
  %v1135 = vpop.f32.mrb[0].mxu0
  %v1136 = vadd.f32 0.0, %v1135
  %v1137 = vpop.f32.mrb[0].mxu0
  %1138 = vmatprep.mubr.bf16.mxu0 0
  %1139 = vmatmul.mubr.bf16.gmra.mrb[0].mxu0 %v618
  %v1140 = vpop.f32.mrb[0].mxu0
  %v1141 = vadd.f32 0.0, %v1140
  %v1142 = vpop.f32.mrb[0].mxu0
  %v1143 = vpop.f32.mrb[0].mxu0
  %v1144 = vadd.f32 0.0, %v1143
  %v1145 = vpop.f32.mrb[0].mxu0
  %1146 = vmatprep.mubr.bf16.mxu0 0
  %1147 = vmatmul.mubr.bf16.gmra.mrb[0].mxu0 %v621
  %v1148 = vpop.f32.mrb[0].mxu0
  %v1149 = vadd.f32 0.0, %v1148
  %v1150 = vpop.f32.mrb[0].mxu0
  %v1151 = vpop.f32.mrb[0].mxu0
  %v1152 = vadd.f32 0.0, %v1151
  %v1153 = vpop.f32.mrb[0].mxu0
  %1154 = vmatprep.mubr.bf16.mxu0 0
  %1155 = vmatmul.mubr.bf16.gmra.mrb[0].mxu0 %v624
  %v1156 = vpop.f32.mrb[0].mxu0
  %v1157 = vadd.f32 0.0, %v1156
  %v1158 = vpop.f32.mrb[0].mxu0
  %v1159 = vpop.f32.mrb[0].mxu0
  %v1160 = vpop.f32.mrb[0].mxu0
  %1161 = vdwg.mxu0
  %v1166 = vunpack.c.l.b16 %v228
  %v1167 = vunpack.c.l.b16 %v229
  %v1168 = vunpack.c.l.b16 %v230
  %v1169 = vunpack.c.l.b16 %v231
  %v1170 = vpack.c.b16 %v1167, %v1166
  %v1171 = vpack.c.b16 %v1169, %v1168
  %v1175 = vsel %vm436, %v165, 0
  %v1178 = vsel %vm436, %v166, 0
  %v1181 = vsel %vm436, %v167, 0
  %v1184 = vsel %vm436, %v168, 0
  %v1187 = vsel %vm436, %v169, 0
  %v1190 = vsel %vm436, %v170, 0
  %v1193 = vsel %vm436, %v171, 0
  %v1196 = vsel %vm436, %v172, 0
  %v1199 = vsel %vm436, %v173, 0
  %v1202 = vsel %vm436, %v174, 0
  %v1205 = vsel %vm436, %v175, 0
  %v1208 = vsel %vm436, %v176, 0
  %v1211 = vsel %vm436, %v177, 0
  %v1214 = vsel %vm436, %v178, 0
  %v1217 = vsel %vm436, %v179, 0
  %v1220 = vsel %vm436, %v180, 0
  %v1223 = vsel %vm436, %v181, 0
  %v1226 = vsel %vm436, %v182, 0
  %v1229 = vsel %vm436, %v183, 0
  %v1232 = vsel %vm436, %v184, 0
  %v1235 = vsel %vm436, %v185, 0
  %v1238 = vsel %vm436, %v186, 0
  %v1241 = vsel %vm436, %v187, 0
  %v1244 = vsel %vm436, %v188, 0
  %v1247 = vsel %vm436, %v189, 0
  %v1250 = vsel %vm436, %v190, 0
  %v1253 = vsel %vm436, %v191, 0
  %v1256 = vsel %vm436, %v192, 0
  %v1259 = vsel %vm436, %v193, 0
  %v1262 = vsel %vm436, %v194, 0
  %v1265 = vsel %vm436, %v195, 0
  %v1268 = vsel %vm436, %v196, 0
  %v1271 = vsel %vm436, %v197, 0
  %v1274 = vsel %vm436, %v198, 0
  %v1277 = vsel %vm436, %v199, 0
  %v1280 = vsel %vm436, %v200, 0
  %v1283 = vsel %vm436, %v201, 0
  %v1286 = vsel %vm436, %v202, 0
  %v1289 = vsel %vm436, %v203, 0
  %v1292 = vsel %vm436, %v204, 0
  %v1295 = vsel %vm436, %v205, 0
  %v1298 = vsel %vm436, %v206, 0
  %v1301 = vsel %vm436, %v207, 0
  %v1304 = vsel %vm436, %v208, 0
  %v1307 = vsel %vm436, %v209, 0
  %v1310 = vsel %vm436, %v210, 0
  %v1313 = vsel %vm436, %v211, 0
  %v1316 = vsel %vm436, %v212, 0
  %v1319 = vsel %vm436, %v213, 0
  %v1322 = vsel %vm436, %v214, 0
  %v1325 = vsel %vm436, %v215, 0
  %v1328 = vsel %vm436, %v216, 0
  %v1331 = vsel %vm436, %v217, 0
  %v1334 = vsel %vm436, %v218, 0
  %v1337 = vsel %vm436, %v219, 0
  %v1340 = vsel %vm436, %v220, 0
  %v1343 = vsel %vm436, %v221, 0
  %v1346 = vsel %vm436, %v222, 0
  %v1349 = vsel %vm436, %v223, 0
  %v1352 = vsel %vm436, %v224, 0
  %v1355 = vsel %vm436, %v225, 0
  %v1358 = vsel %vm436, %v226, 0
  %v1361 = vsel %vm436, %v227, 0
  %1363 = vmatprep.subr.bf16.mxu0 0
  %1364 = vmatpush1.bf16.msra.mxu0 %v1170
  %1365 = vmatprep.subr.bf16.mxu0 0
  %1366 = vmatpush1.bf16.msra.mxu0 %v1171
  %1367 = vmatprep.subr.bf16.mxu0 0
  %1368 = vmatpush1.bf16.msra.mxu0 0
  %1369 = vmatprep.subr.bf16.mxu0 0
  %1370 = vmatpush1.bf16.msra.mxu0 0
  %1371 = vmatprep.subr.bf16.mxu0 0
  %1372 = vmatpush1.bf16.msra.mxu0 0
  %1373 = vmatprep.subr.bf16.mxu0 0
  %1374 = vmatpush1.bf16.msra.mxu0 0
  %1375 = vmatprep.subr.bf16.mxu0 0
  %1376 = vmatpush1.bf16.msra.mxu0 0
  %1377 = vmatprep.subr.bf16.mxu0 0
  %1378 = vmatpush1.bf16.msra.mxu0 0
  %1379 = vmatprep.subr.bf16.mxu0 0
  %1380 = vmatpush1.bf16.msra.mxu0 0
  %1381 = vmatprep.subr.bf16.mxu0 0
  %1382 = vmatpush1.bf16.msra.mxu0 0
  %1383 = vmatprep.subr.bf16.mxu0 0
  %1384 = vmatpush1.bf16.msra.mxu0 0
  %1385 = vmatprep.subr.bf16.mxu0 0
  %1386 = vmatpush1.bf16.msra.mxu0 0
  %1387 = vmatprep.subr.bf16.mxu0 0
  %1388 = vmatpush1.bf16.msra.mxu0 0
  %1389 = vmatprep.subr.bf16.mxu0 0
  %1390 = vmatpush1.bf16.msra.mxu0 0
  %1391 = vmatprep.subr.bf16.mxu0 0
  %1392 = vmatpush1.bf16.msra.mxu0 0
  %1393 = vmatprep.subr.bf16.mxu0 0
  %1394 = vmatpush1.bf16.msra.mxu0 0
  %1395 = vmatprep.mubr.bf16.mxu0 0
  %1396 = vmatmul.mubr.bf16.gmra.mrb[0].mxu0 %v1175
  %v1397 = vpop.f32.mrb[0].mxu0
  %v1398 = vadd.f32 %v661, %v1397
  %v1399 = vpop.f32.mrb[0].mxu0
  %v1400 = vpop.f32.mrb[0].mxu0
  %v1401 = vadd.f32 %v664, %v1400
  %v1402 = vpop.f32.mrb[0].mxu0
  %1403 = vmatprep.mubr.bf16.mxu0 0
  %1404 = vmatmul.mubr.bf16.gmra.mrb[0].mxu0 %v1178
  %v1405 = vpop.f32.mrb[0].mxu0
  %v1406 = vadd.f32 %v669, %v1405
  %v1407 = vpop.f32.mrb[0].mxu0
  %v1408 = vpop.f32.mrb[0].mxu0
  %v1409 = vadd.f32 %v672, %v1408
  %v1410 = vpop.f32.mrb[0].mxu0
  %1411 = vmatprep.mubr.bf16.mxu0 0
  %1412 = vmatmul.mubr.bf16.gmra.mrb[0].mxu0 %v1181
  %v1413 = vpop.f32.mrb[0].mxu0
  %v1414 = vadd.f32 %v677, %v1413
  %v1415 = vpop.f32.mrb[0].mxu0
  %v1416 = vpop.f32.mrb[0].mxu0
  %v1417 = vadd.f32 %v680, %v1416
  %v1418 = vpop.f32.mrb[0].mxu0
  %1419 = vmatprep.mubr.bf16.mxu0 0
  %1420 = vmatmul.mubr.bf16.gmra.mrb[0].mxu0 %v1184
  %v1421 = vpop.f32.mrb[0].mxu0
  %v1422 = vadd.f32 %v685, %v1421
  %v1423 = vpop.f32.mrb[0].mxu0
  %v1424 = vpop.f32.mrb[0].mxu0
  %v1425 = vadd.f32 %v688, %v1424
  %v1426 = vpop.f32.mrb[0].mxu0
  %1427 = vmatprep.mubr.bf16.mxu0 0
  %1428 = vmatmul.mubr.bf16.gmra.mrb[0].mxu0 %v1187
  %v1429 = vpop.f32.mrb[0].mxu0
  %v1430 = vadd.f32 %v693, %v1429
  %v1431 = vpop.f32.mrb[0].mxu0
  %v1432 = vpop.f32.mrb[0].mxu0
  %v1433 = vadd.f32 %v696, %v1432
  %v1434 = vpop.f32.mrb[0].mxu0
  %1435 = vmatprep.mubr.bf16.mxu0 0
  %1436 = vmatmul.mubr.bf16.gmra.mrb[0].mxu0 %v1190
  %v1437 = vpop.f32.mrb[0].mxu0
  %v1438 = vadd.f32 %v701, %v1437
  %v1439 = vpop.f32.mrb[0].mxu0
  %v1440 = vpop.f32.mrb[0].mxu0
  %v1441 = vadd.f32 %v704, %v1440
  %v1442 = vpop.f32.mrb[0].mxu0
  %1443 = vmatprep.mubr.bf16.mxu0 0
  %1444 = vmatmul.mubr.bf16.gmra.mrb[0].mxu0 %v1193
  %v1445 = vpop.f32.mrb[0].mxu0
  %v1446 = vadd.f32 %v709, %v1445
  %v1447 = vpop.f32.mrb[0].mxu0
  %v1448 = vpop.f32.mrb[0].mxu0
  %v1449 = vadd.f32 %v712, %v1448
  %v1450 = vpop.f32.mrb[0].mxu0
  %1451 = vmatprep.mubr.bf16.mxu0 0
  %1452 = vmatmul.mubr.bf16.gmra.mrb[0].mxu0 %v1196
  %v1453 = vpop.f32.mrb[0].mxu0
  %v1454 = vadd.f32 %v717, %v1453
  %v1455 = vpop.f32.mrb[0].mxu0
  %v1456 = vpop.f32.mrb[0].mxu0
  %v1457 = vadd.f32 %v720, %v1456
  %v1458 = vpop.f32.mrb[0].mxu0
  %1459 = vmatprep.mubr.bf16.mxu0 0
  %1460 = vmatmul.mubr.bf16.gmra.mrb[0].mxu0 %v1199
  %v1461 = vpop.f32.mrb[0].mxu0
  %v1462 = vadd.f32 %v725, %v1461
  %v1463 = vpop.f32.mrb[0].mxu0
  %v1464 = vpop.f32.mrb[0].mxu0
  %v1465 = vadd.f32 %v728, %v1464
  %v1466 = vpop.f32.mrb[0].mxu0
  %1467 = vmatprep.mubr.bf16.mxu0 0
  %1468 = vmatmul.mubr.bf16.gmra.mrb[0].mxu0 %v1202
  %v1469 = vpop.f32.mrb[0].mxu0
  %v1470 = vadd.f32 %v733, %v1469
  %v1471 = vpop.f32.mrb[0].mxu0
  %v1472 = vpop.f32.mrb[0].mxu0
  %v1473 = vadd.f32 %v736, %v1472
  %v1474 = vpop.f32.mrb[0].mxu0
  %1475 = vmatprep.mubr.bf16.mxu0 0
  %1476 = vmatmul.mubr.bf16.gmra.mrb[0].mxu0 %v1205
  %v1477 = vpop.f32.mrb[0].mxu0
  %v1478 = vadd.f32 %v741, %v1477
  %v1479 = vpop.f32.mrb[0].mxu0
  %v1480 = vpop.f32.mrb[0].mxu0
  %v1481 = vadd.f32 %v744, %v1480
  %v1482 = vpop.f32.mrb[0].mxu0
  %1483 = vmatprep.mubr.bf16.mxu0 0
  %1484 = vmatmul.mubr.bf16.gmra.mrb[0].mxu0 %v1208
  %v1485 = vpop.f32.mrb[0].mxu0
  %v1486 = vadd.f32 %v749, %v1485
  %v1487 = vpop.f32.mrb[0].mxu0
  %v1488 = vpop.f32.mrb[0].mxu0
  %v1489 = vadd.f32 %v752, %v1488
  %v1490 = vpop.f32.mrb[0].mxu0
  %1491 = vmatprep.mubr.bf16.mxu0 0
  %1492 = vmatmul.mubr.bf16.gmra.mrb[0].mxu0 %v1211
  %v1493 = vpop.f32.mrb[0].mxu0
  %v1494 = vadd.f32 %v757, %v1493
  %v1495 = vpop.f32.mrb[0].mxu0
  %v1496 = vpop.f32.mrb[0].mxu0
  %v1497 = vadd.f32 %v760, %v1496
  %v1498 = vpop.f32.mrb[0].mxu0
  %1499 = vmatprep.mubr.bf16.mxu0 0
  %1500 = vmatmul.mubr.bf16.gmra.mrb[0].mxu0 %v1214
  %v1501 = vpop.f32.mrb[0].mxu0
  %v1502 = vadd.f32 %v765, %v1501
  %v1503 = vpop.f32.mrb[0].mxu0
  %v1504 = vpop.f32.mrb[0].mxu0
  %v1505 = vadd.f32 %v768, %v1504
  %v1506 = vpop.f32.mrb[0].mxu0
  %1507 = vmatprep.mubr.bf16.mxu0 0
  %1508 = vmatmul.mubr.bf16.gmra.mrb[0].mxu0 %v1217
  %v1509 = vpop.f32.mrb[0].mxu0
  %v1510 = vadd.f32 %v773, %v1509
  %v1511 = vpop.f32.mrb[0].mxu0
  %v1512 = vpop.f32.mrb[0].mxu0
  %v1513 = vadd.f32 %v776, %v1512
  %v1514 = vpop.f32.mrb[0].mxu0
  %1515 = vmatprep.mubr.bf16.mxu0 0
  %1516 = vmatmul.mubr.bf16.gmra.mrb[0].mxu0 %v1220
  %v1517 = vpop.f32.mrb[0].mxu0
  %v1518 = vadd.f32 %v781, %v1517
  %v1519 = vpop.f32.mrb[0].mxu0
  %v1520 = vpop.f32.mrb[0].mxu0
  %v1521 = vadd.f32 %v784, %v1520
  %v1522 = vpop.f32.mrb[0].mxu0
  %1523 = vmatprep.mubr.bf16.mxu0 0
  %1524 = vmatmul.mubr.bf16.gmra.mrb[0].mxu0 %v1223
  %v1525 = vpop.f32.mrb[0].mxu0
  %v1526 = vadd.f32 %v789, %v1525
  %v1527 = vpop.f32.mrb[0].mxu0
  %v1528 = vpop.f32.mrb[0].mxu0
  %v1529 = vadd.f32 %v792, %v1528
  %v1530 = vpop.f32.mrb[0].mxu0
  %1531 = vmatprep.mubr.bf16.mxu0 0
  %1532 = vmatmul.mubr.bf16.gmra.mrb[0].mxu0 %v1226
  %v1533 = vpop.f32.mrb[0].mxu0
  %v1534 = vadd.f32 %v797, %v1533
  %v1535 = vpop.f32.mrb[0].mxu0
  %v1536 = vpop.f32.mrb[0].mxu0
  %v1537 = vadd.f32 %v800, %v1536
  %v1538 = vpop.f32.mrb[0].mxu0
  %1539 = vmatprep.mubr.bf16.mxu0 0
  %1540 = vmatmul.mubr.bf16.gmra.mrb[0].mxu0 %v1229
  %v1541 = vpop.f32.mrb[0].mxu0
  %v1542 = vadd.f32 %v805, %v1541
  %v1543 = vpop.f32.mrb[0].mxu0
  %v1544 = vpop.f32.mrb[0].mxu0
  %v1545 = vadd.f32 %v808, %v1544
  %v1546 = vpop.f32.mrb[0].mxu0
  %1547 = vmatprep.mubr.bf16.mxu0 0
  %1548 = vmatmul.mubr.bf16.gmra.mrb[0].mxu0 %v1232
  %v1549 = vpop.f32.mrb[0].mxu0
  %v1550 = vadd.f32 %v813, %v1549
  %v1551 = vpop.f32.mrb[0].mxu0
  %v1552 = vpop.f32.mrb[0].mxu0
  %v1553 = vadd.f32 %v816, %v1552
  %v1554 = vpop.f32.mrb[0].mxu0
  %1555 = vmatprep.mubr.bf16.mxu0 0
  %1556 = vmatmul.mubr.bf16.gmra.mrb[0].mxu0 %v1235
  %v1557 = vpop.f32.mrb[0].mxu0
  %v1558 = vadd.f32 %v821, %v1557
  %v1559 = vpop.f32.mrb[0].mxu0
  %v1560 = vpop.f32.mrb[0].mxu0
  %v1561 = vadd.f32 %v824, %v1560
  %v1562 = vpop.f32.mrb[0].mxu0
  %1563 = vmatprep.mubr.bf16.mxu0 0
  %1564 = vmatmul.mubr.bf16.gmra.mrb[0].mxu0 %v1238
  %v1565 = vpop.f32.mrb[0].mxu0
  %v1566 = vadd.f32 %v829, %v1565
  %v1567 = vpop.f32.mrb[0].mxu0
  %v1568 = vpop.f32.mrb[0].mxu0
  %v1569 = vadd.f32 %v832, %v1568
  %v1570 = vpop.f32.mrb[0].mxu0
  %1571 = vmatprep.mubr.bf16.mxu0 0
  %1572 = vmatmul.mubr.bf16.gmra.mrb[0].mxu0 %v1241
  %v1573 = vpop.f32.mrb[0].mxu0
  %v1574 = vadd.f32 %v837, %v1573
  %v1575 = vpop.f32.mrb[0].mxu0
  %v1576 = vpop.f32.mrb[0].mxu0
  %v1577 = vadd.f32 %v840, %v1576
  %v1578 = vpop.f32.mrb[0].mxu0
  %1579 = vmatprep.mubr.bf16.mxu0 0
  %1580 = vmatmul.mubr.bf16.gmra.mrb[0].mxu0 %v1244
  %v1581 = vpop.f32.mrb[0].mxu0
  %v1582 = vadd.f32 %v845, %v1581
  %v1583 = vpop.f32.mrb[0].mxu0
  %v1584 = vpop.f32.mrb[0].mxu0
  %v1585 = vadd.f32 %v848, %v1584
  %v1586 = vpop.f32.mrb[0].mxu0
  %1587 = vmatprep.mubr.bf16.mxu0 0
  %1588 = vmatmul.mubr.bf16.gmra.mrb[0].mxu0 %v1247
  %v1589 = vpop.f32.mrb[0].mxu0
  %v1590 = vadd.f32 %v853, %v1589
  %v1591 = vpop.f32.mrb[0].mxu0
  %v1592 = vpop.f32.mrb[0].mxu0
  %v1593 = vadd.f32 %v856, %v1592
  %v1594 = vpop.f32.mrb[0].mxu0
  %1595 = vmatprep.mubr.bf16.mxu0 0
  %1596 = vmatmul.mubr.bf16.gmra.mrb[0].mxu0 %v1250
  %v1597 = vpop.f32.mrb[0].mxu0
  %v1598 = vadd.f32 %v861, %v1597
  %v1599 = vpop.f32.mrb[0].mxu0
  %v1600 = vpop.f32.mrb[0].mxu0
  %v1601 = vadd.f32 %v864, %v1600
  %v1602 = vpop.f32.mrb[0].mxu0
  %1603 = vmatprep.mubr.bf16.mxu0 0
  %1604 = vmatmul.mubr.bf16.gmra.mrb[0].mxu0 %v1253
  %v1605 = vpop.f32.mrb[0].mxu0
  %v1606 = vadd.f32 %v869, %v1605
  %v1607 = vpop.f32.mrb[0].mxu0
  %v1608 = vpop.f32.mrb[0].mxu0
  %v1609 = vadd.f32 %v872, %v1608
  %v1610 = vpop.f32.mrb[0].mxu0
  %1611 = vmatprep.mubr.bf16.mxu0 0
  %1612 = vmatmul.mubr.bf16.gmra.mrb[0].mxu0 %v1256
  %v1613 = vpop.f32.mrb[0].mxu0
  %v1614 = vadd.f32 %v877, %v1613
  %v1615 = vpop.f32.mrb[0].mxu0
  %v1616 = vpop.f32.mrb[0].mxu0
  %v1617 = vadd.f32 %v880, %v1616
  %v1618 = vpop.f32.mrb[0].mxu0
  %1619 = vmatprep.mubr.bf16.mxu0 0
  %1620 = vmatmul.mubr.bf16.gmra.mrb[0].mxu0 %v1259
  %v1621 = vpop.f32.mrb[0].mxu0
  %v1622 = vadd.f32 %v885, %v1621
  %v1623 = vpop.f32.mrb[0].mxu0
  %v1624 = vpop.f32.mrb[0].mxu0
  %v1625 = vadd.f32 %v888, %v1624
  %v1626 = vpop.f32.mrb[0].mxu0
  %1627 = vmatprep.mubr.bf16.mxu0 0
  %1628 = vmatmul.mubr.bf16.gmra.mrb[0].mxu0 %v1262
  %v1629 = vpop.f32.mrb[0].mxu0
  %v1630 = vadd.f32 %v893, %v1629
  %v1631 = vpop.f32.mrb[0].mxu0
  %v1632 = vpop.f32.mrb[0].mxu0
  %v1633 = vadd.f32 %v896, %v1632
  %v1634 = vpop.f32.mrb[0].mxu0
  %1635 = vmatprep.mubr.bf16.mxu0 0
  %1636 = vmatmul.mubr.bf16.gmra.mrb[0].mxu0 %v1265
  %v1637 = vpop.f32.mrb[0].mxu0
  %v1638 = vadd.f32 %v901, %v1637
  %v1639 = vpop.f32.mrb[0].mxu0
  %v1640 = vpop.f32.mrb[0].mxu0
  %v1641 = vadd.f32 %v904, %v1640
  %v1642 = vpop.f32.mrb[0].mxu0
  %1643 = vmatprep.mubr.bf16.mxu0 0
  %1644 = vmatmul.mubr.bf16.gmra.mrb[0].mxu0 %v1268
  %v1645 = vpop.f32.mrb[0].mxu0
  %v1646 = vadd.f32 %v909, %v1645
  %v1647 = vpop.f32.mrb[0].mxu0
  %v1648 = vpop.f32.mrb[0].mxu0
  %v1649 = vadd.f32 %v912, %v1648
  %v1650 = vpop.f32.mrb[0].mxu0
  %1651 = vmatprep.mubr.bf16.mxu0 0
  %1652 = vmatmul.mubr.bf16.gmra.mrb[0].mxu0 %v1271
  %v1653 = vpop.f32.mrb[0].mxu0
  %v1654 = vadd.f32 %v917, %v1653
  %v1655 = vpop.f32.mrb[0].mxu0
  %v1656 = vpop.f32.mrb[0].mxu0
  %v1657 = vadd.f32 %v920, %v1656
  %v1658 = vpop.f32.mrb[0].mxu0
  %1659 = vmatprep.mubr.bf16.mxu0 0
  %1660 = vmatmul.mubr.bf16.gmra.mrb[0].mxu0 %v1274
  %v1661 = vpop.f32.mrb[0].mxu0
  %v1662 = vadd.f32 %v925, %v1661
  %v1663 = vpop.f32.mrb[0].mxu0
  %v1664 = vpop.f32.mrb[0].mxu0
  %v1665 = vadd.f32 %v928, %v1664
  %v1666 = vpop.f32.mrb[0].mxu0
  %1667 = vmatprep.mubr.bf16.mxu0 0
  %1668 = vmatmul.mubr.bf16.gmra.mrb[0].mxu0 %v1277
  %v1669 = vpop.f32.mrb[0].mxu0
  %v1670 = vadd.f32 %v933, %v1669
  %v1671 = vpop.f32.mrb[0].mxu0
  %v1672 = vpop.f32.mrb[0].mxu0
  %v1673 = vadd.f32 %v936, %v1672
  %v1674 = vpop.f32.mrb[0].mxu0
  %1675 = vmatprep.mubr.bf16.mxu0 0
  %1676 = vmatmul.mubr.bf16.gmra.mrb[0].mxu0 %v1280
  %v1677 = vpop.f32.mrb[0].mxu0
  %v1678 = vadd.f32 %v941, %v1677
  %v1679 = vpop.f32.mrb[0].mxu0
  %v1680 = vpop.f32.mrb[0].mxu0
  %v1681 = vadd.f32 %v944, %v1680
  %v1682 = vpop.f32.mrb[0].mxu0
  %1683 = vmatprep.mubr.bf16.mxu0 0
  %1684 = vmatmul.mubr.bf16.gmra.mrb[0].mxu0 %v1283
  %v1685 = vpop.f32.mrb[0].mxu0
  %v1686 = vadd.f32 %v949, %v1685
  %v1687 = vpop.f32.mrb[0].mxu0
  %v1688 = vpop.f32.mrb[0].mxu0
  %v1689 = vadd.f32 %v952, %v1688
  %v1690 = vpop.f32.mrb[0].mxu0
  %1691 = vmatprep.mubr.bf16.mxu0 0
  %1692 = vmatmul.mubr.bf16.gmra.mrb[0].mxu0 %v1286
  %v1693 = vpop.f32.mrb[0].mxu0
  %v1694 = vadd.f32 %v957, %v1693
  %v1695 = vpop.f32.mrb[0].mxu0
  %v1696 = vpop.f32.mrb[0].mxu0
  %v1697 = vadd.f32 %v960, %v1696
  %v1698 = vpop.f32.mrb[0].mxu0
  %1699 = vmatprep.mubr.bf16.mxu0 0
  %1700 = vmatmul.mubr.bf16.gmra.mrb[0].mxu0 %v1289
  %v1701 = vpop.f32.mrb[0].mxu0
  %v1702 = vadd.f32 %v965, %v1701
  %v1703 = vpop.f32.mrb[0].mxu0
  %v1704 = vpop.f32.mrb[0].mxu0
  %v1705 = vadd.f32 %v968, %v1704
  %v1706 = vpop.f32.mrb[0].mxu0
  %1707 = vmatprep.mubr.bf16.mxu0 0
  %1708 = vmatmul.mubr.bf16.gmra.mrb[0].mxu0 %v1292
  %v1709 = vpop.f32.mrb[0].mxu0
  %v1710 = vadd.f32 %v973, %v1709
  %v1711 = vpop.f32.mrb[0].mxu0
  %v1712 = vpop.f32.mrb[0].mxu0
  %v1713 = vadd.f32 %v976, %v1712
  %v1714 = vpop.f32.mrb[0].mxu0
  %1715 = vmatprep.mubr.bf16.mxu0 0
  %1716 = vmatmul.mubr.bf16.gmra.mrb[0].mxu0 %v1295
  %v1717 = vpop.f32.mrb[0].mxu0
  %v1718 = vadd.f32 %v981, %v1717
  %v1719 = vpop.f32.mrb[0].mxu0
  %v1720 = vpop.f32.mrb[0].mxu0
  %v1721 = vadd.f32 %v984, %v1720
  %v1722 = vpop.f32.mrb[0].mxu0
  %1723 = vmatprep.mubr.bf16.mxu0 0
  %1724 = vmatmul.mubr.bf16.gmra.mrb[0].mxu0 %v1298
  %v1725 = vpop.f32.mrb[0].mxu0
  %v1726 = vadd.f32 %v989, %v1725
  %v1727 = vpop.f32.mrb[0].mxu0
  %v1728 = vpop.f32.mrb[0].mxu0
  %v1729 = vadd.f32 %v992, %v1728
  %v1730 = vpop.f32.mrb[0].mxu0
  %1731 = vmatprep.mubr.bf16.mxu0 0
  %1732 = vmatmul.mubr.bf16.gmra.mrb[0].mxu0 %v1301
  %v1733 = vpop.f32.mrb[0].mxu0
  %v1734 = vadd.f32 %v997, %v1733
  %v1735 = vpop.f32.mrb[0].mxu0
  %v1736 = vpop.f32.mrb[0].mxu0
  %v1737 = vadd.f32 %v1000, %v1736
  %v1738 = vpop.f32.mrb[0].mxu0
  %1739 = vmatprep.mubr.bf16.mxu0 0
  %1740 = vmatmul.mubr.bf16.gmra.mrb[0].mxu0 %v1304
  %v1741 = vpop.f32.mrb[0].mxu0
  %v1742 = vadd.f32 %v1005, %v1741
  %v1743 = vpop.f32.mrb[0].mxu0
  %v1744 = vpop.f32.mrb[0].mxu0
  %v1745 = vadd.f32 %v1008, %v1744
  %v1746 = vpop.f32.mrb[0].mxu0
  %1747 = vmatprep.mubr.bf16.mxu0 0
  %1748 = vmatmul.mubr.bf16.gmra.mrb[0].mxu0 %v1307
  %v1749 = vpop.f32.mrb[0].mxu0
  %v1750 = vadd.f32 %v1013, %v1749
  %v1751 = vpop.f32.mrb[0].mxu0
  %v1752 = vpop.f32.mrb[0].mxu0
  %v1753 = vadd.f32 %v1016, %v1752
  %v1754 = vpop.f32.mrb[0].mxu0
  %1755 = vmatprep.mubr.bf16.mxu0 0
  %1756 = vmatmul.mubr.bf16.gmra.mrb[0].mxu0 %v1310
  %v1757 = vpop.f32.mrb[0].mxu0
  %v1758 = vadd.f32 %v1021, %v1757
  %v1759 = vpop.f32.mrb[0].mxu0
  %v1760 = vpop.f32.mrb[0].mxu0
  %v1761 = vadd.f32 %v1024, %v1760
  %v1762 = vpop.f32.mrb[0].mxu0
  %1763 = vmatprep.mubr.bf16.mxu0 0
  %1764 = vmatmul.mubr.bf16.gmra.mrb[0].mxu0 %v1313
  %v1765 = vpop.f32.mrb[0].mxu0
  %v1766 = vadd.f32 %v1029, %v1765
  %v1767 = vpop.f32.mrb[0].mxu0
  %v1768 = vpop.f32.mrb[0].mxu0
  %v1769 = vadd.f32 %v1032, %v1768
  %v1770 = vpop.f32.mrb[0].mxu0
  %1771 = vmatprep.mubr.bf16.mxu0 0
  %1772 = vmatmul.mubr.bf16.gmra.mrb[0].mxu0 %v1316
  %v1773 = vpop.f32.mrb[0].mxu0
  %v1774 = vadd.f32 %v1037, %v1773
  %v1775 = vpop.f32.mrb[0].mxu0
  %v1776 = vpop.f32.mrb[0].mxu0
  %v1777 = vadd.f32 %v1040, %v1776
  %v1778 = vpop.f32.mrb[0].mxu0
  %1779 = vmatprep.mubr.bf16.mxu0 0
  %1780 = vmatmul.mubr.bf16.gmra.mrb[0].mxu0 %v1319
  %v1781 = vpop.f32.mrb[0].mxu0
  %v1782 = vadd.f32 %v1045, %v1781
  %v1783 = vpop.f32.mrb[0].mxu0
  %v1784 = vpop.f32.mrb[0].mxu0
  %v1785 = vadd.f32 %v1048, %v1784
  %v1786 = vpop.f32.mrb[0].mxu0
  %1787 = vmatprep.mubr.bf16.mxu0 0
  %1788 = vmatmul.mubr.bf16.gmra.mrb[0].mxu0 %v1322
  %v1789 = vpop.f32.mrb[0].mxu0
  %v1790 = vadd.f32 %v1053, %v1789
  %v1791 = vpop.f32.mrb[0].mxu0
  %v1792 = vpop.f32.mrb[0].mxu0
  %v1793 = vadd.f32 %v1056, %v1792
  %v1794 = vpop.f32.mrb[0].mxu0
  %1795 = vmatprep.mubr.bf16.mxu0 0
  %1796 = vmatmul.mubr.bf16.gmra.mrb[0].mxu0 %v1325
  %v1797 = vpop.f32.mrb[0].mxu0
  %v1798 = vadd.f32 %v1061, %v1797
  %v1799 = vpop.f32.mrb[0].mxu0
  %v1800 = vpop.f32.mrb[0].mxu0
  %v1801 = vadd.f32 %v1064, %v1800
  %v1802 = vpop.f32.mrb[0].mxu0
  %1803 = vmatprep.mubr.bf16.mxu0 0
  %1804 = vmatmul.mubr.bf16.gmra.mrb[0].mxu0 %v1328
  %v1805 = vpop.f32.mrb[0].mxu0
  %v1806 = vadd.f32 %v1069, %v1805
  %v1807 = vpop.f32.mrb[0].mxu0
  %v1808 = vpop.f32.mrb[0].mxu0
  %v1809 = vadd.f32 %v1072, %v1808
  %v1810 = vpop.f32.mrb[0].mxu0
  %1811 = vmatprep.mubr.bf16.mxu0 0
  %1812 = vmatmul.mubr.bf16.gmra.mrb[0].mxu0 %v1331
  %v1813 = vpop.f32.mrb[0].mxu0
  %v1814 = vadd.f32 %v1077, %v1813
  %v1815 = vpop.f32.mrb[0].mxu0
  %v1816 = vpop.f32.mrb[0].mxu0
  %v1817 = vadd.f32 %v1080, %v1816
  %v1818 = vpop.f32.mrb[0].mxu0
  %1819 = vmatprep.mubr.bf16.mxu0 0
  %1820 = vmatmul.mubr.bf16.gmra.mrb[0].mxu0 %v1334
  %v1821 = vpop.f32.mrb[0].mxu0
  %v1822 = vadd.f32 %v1085, %v1821
  %v1823 = vpop.f32.mrb[0].mxu0
  %v1824 = vpop.f32.mrb[0].mxu0
  %v1825 = vadd.f32 %v1088, %v1824
  %v1826 = vpop.f32.mrb[0].mxu0
  %1827 = vmatprep.mubr.bf16.mxu0 0
  %1828 = vmatmul.mubr.bf16.gmra.mrb[0].mxu0 %v1337
  %v1829 = vpop.f32.mrb[0].mxu0
  %v1830 = vadd.f32 %v1093, %v1829
  %v1831 = vpop.f32.mrb[0].mxu0
  %v1832 = vpop.f32.mrb[0].mxu0
  %v1833 = vadd.f32 %v1096, %v1832
  %v1834 = vpop.f32.mrb[0].mxu0
  %1835 = vmatprep.mubr.bf16.mxu0 0
  %1836 = vmatmul.mubr.bf16.gmra.mrb[0].mxu0 %v1340
  %v1837 = vpop.f32.mrb[0].mxu0
  %v1838 = vadd.f32 %v1101, %v1837
  %v1839 = vpop.f32.mrb[0].mxu0
  %v1840 = vpop.f32.mrb[0].mxu0
  %v1841 = vadd.f32 %v1104, %v1840
  %v1842 = vpop.f32.mrb[0].mxu0
  %1843 = vmatprep.mubr.bf16.mxu0 0
  %1844 = vmatmul.mubr.bf16.gmra.mrb[0].mxu0 %v1343
  %v1845 = vpop.f32.mrb[0].mxu0
  %v1846 = vadd.f32 %v1109, %v1845
  %v1847 = vpop.f32.mrb[0].mxu0
  %v1848 = vpop.f32.mrb[0].mxu0
  %v1849 = vadd.f32 %v1112, %v1848
  %v1850 = vpop.f32.mrb[0].mxu0
  %1851 = vmatprep.mubr.bf16.mxu0 0
  %1852 = vmatmul.mubr.bf16.gmra.mrb[0].mxu0 %v1346
  %v1853 = vpop.f32.mrb[0].mxu0
  %v1854 = vadd.f32 %v1117, %v1853
  %v1855 = vpop.f32.mrb[0].mxu0
  %v1856 = vpop.f32.mrb[0].mxu0
  %v1857 = vadd.f32 %v1120, %v1856
  %v1858 = vpop.f32.mrb[0].mxu0
  %1859 = vmatprep.mubr.bf16.mxu0 0
  %1860 = vmatmul.mubr.bf16.gmra.mrb[0].mxu0 %v1349
  %v1861 = vpop.f32.mrb[0].mxu0
  %v1862 = vadd.f32 %v1125, %v1861
  %v1863 = vpop.f32.mrb[0].mxu0
  %v1864 = vpop.f32.mrb[0].mxu0
  %v1865 = vadd.f32 %v1128, %v1864
  %v1866 = vpop.f32.mrb[0].mxu0
  %1867 = vmatprep.mubr.bf16.mxu0 0
  %1868 = vmatmul.mubr.bf16.gmra.mrb[0].mxu0 %v1352
  %v1869 = vpop.f32.mrb[0].mxu0
  %v1870 = vadd.f32 %v1133, %v1869
  %v1871 = vpop.f32.mrb[0].mxu0
  %v1872 = vpop.f32.mrb[0].mxu0
  %v1873 = vadd.f32 %v1136, %v1872
  %v1874 = vpop.f32.mrb[0].mxu0
  %1875 = vmatprep.mubr.bf16.mxu0 0
  %1876 = vmatmul.mubr.bf16.gmra.mrb[0].mxu0 %v1355
  %v1877 = vpop.f32.mrb[0].mxu0
  %v1878 = vadd.f32 %v1141, %v1877
  %v1879 = vpop.f32.mrb[0].mxu0
  %v1880 = vpop.f32.mrb[0].mxu0
  %v1881 = vadd.f32 %v1144, %v1880
  %v1882 = vpop.f32.mrb[0].mxu0
  %1883 = vmatprep.mubr.bf16.mxu0 0
  %1884 = vmatmul.mubr.bf16.gmra.mrb[0].mxu0 %v1358
  %v1885 = vpop.f32.mrb[0].mxu0
  %v1886 = vadd.f32 %v1149, %v1885
  %v1887 = vpop.f32.mrb[0].mxu0
  %v1888 = vpop.f32.mrb[0].mxu0
  %v1889 = vadd.f32 %v1152, %v1888
  %v1890 = vpop.f32.mrb[0].mxu0
  %1891 = vmatprep.mubr.bf16.mxu0 0
  %1892 = vmatmul.mubr.bf16.gmra.mrb[0].mxu0 %v1361
  %v1893 = vpop.f32.mrb[0].mxu0
  %v1894 = vadd.f32 %v1157, %v1893
  %v1895 = vpop.f32.mrb[0].mxu0
  %v1896 = vpop.f32.mrb[0].mxu0
  %v1897 = vpop.f32.mrb[0].mxu0
  %1898 = vdwg.mxu0
  %v1899 = vld [vmem:[%s3] sm:$0xff]
  %v1900 = vld [vmem:[%s3 + $0x8] sm:$0xff]
  %v1901 = vld [vmem:[%s3 + $0x10] sm:$0xff]
  %v1902 = vld [vmem:[%s3 + $0x18] sm:$0xff]
  %v1903 = vld [vmem:[%s3 + $0x20] sm:$0xff]
  %v1904 = vld [vmem:[%s3 + $0x28] sm:$0xff]
  %v1905 = vld [vmem:[%s3 + $0x30] sm:$0xff]
  %v1906 = vld [vmem:[%s3 + $0x38] sm:$0xff]
  %v1907 = vld [vmem:[%s3 + $0x40] sm:$0xff]
  %v1908 = vld [vmem:[%s3 + $0x48] sm:$0xff]
  %v1909 = vld [vmem:[%s3 + $0x50] sm:$0xff]
  %v1910 = vld [vmem:[%s3 + $0x58] sm:$0xff]
  %v1911 = vld [vmem:[%s3 + $0x60] sm:$0xff]
  %v1912 = vld [vmem:[%s3 + $0x68] sm:$0xff]
  %v1913 = vld [vmem:[%s3 + $0x70] sm:$0xff]
  %v1914 = vld [vmem:[%s3 + $0x78] sm:$0xff]
  %v1915 = vld [vmem:[%s3 + $0x80] sm:$0xff]
  %v1916 = vld [vmem:[%s3 + $0x88] sm:$0xff]
  %v1917 = vld [vmem:[%s3 + $0x90] sm:$0xff]
  %v1918 = vld [vmem:[%s3 + $0x98] sm:$0xff]
  %v1919 = vld [vmem:[%s3 + $0xa0] sm:$0xff]
  %v1920 = vld [vmem:[%s3 + $0xa8] sm:$0xff]
  %v1921 = vld [vmem:[%s3 + $0xb0] sm:$0xff]
  %v1922 = vld [vmem:[%s3 + $0xb8] sm:$0xff]
  %v1923 = vld [vmem:[%s3 + $0xc0] sm:$0xff]
  %v1924 = vld [vmem:[%s3 + $0xc8] sm:$0xff]
  %v1925 = vld [vmem:[%s3 + $0xd0] sm:$0xff]
  %v1926 = vld [vmem:[%s3 + $0xd8] sm:$0xff]
  %v1927 = vld [vmem:[%s3 + $0xe0] sm:$0xff]
  %v1928 = vld [vmem:[%s3 + $0xe8] sm:$0xff]
  %v1929 = vld [vmem:[%s3 + $0xf0] sm:$0xff]
  %v1930 = vld [vmem:[%s3 + $0xf8] sm:$0xff]
  %v1931 = vld [vmem:[%s3 + $0x100] sm:$0xff]
  %v1932 = vld [vmem:[%s3 + $0x108] sm:$0xff]
  %v1933 = vld [vmem:[%s3 + $0x110] sm:$0xff]
  %v1934 = vld [vmem:[%s3 + $0x118] sm:$0xff]
  %v1935 = vld [vmem:[%s3 + $0x120] sm:$0xff]
  %v1936 = vld [vmem:[%s3 + $0x128] sm:$0xff]
  %v1937 = vld [vmem:[%s3 + $0x130] sm:$0xff]
  %v1938 = vld [vmem:[%s3 + $0x138] sm:$0xff]
  %v1939 = vld [vmem:[%s3 + $0x140] sm:$0xff]
  %v1940 = vld [vmem:[%s3 + $0x148] sm:$0xff]
  %v1941 = vld [vmem:[%s3 + $0x150] sm:$0xff]
  %v1942 = vld [vmem:[%s3 + $0x158] sm:$0xff]
  %v1943 = vld [vmem:[%s3 + $0x160] sm:$0xff]
  %v1944 = vld [vmem:[%s3 + $0x168] sm:$0xff]
  %v1945 = vld [vmem:[%s3 + $0x170] sm:$0xff]
  %v1946 = vld [vmem:[%s3 + $0x178] sm:$0xff]
  %v1947 = vld [vmem:[%s3 + $0x180] sm:$0xff]
  %v1948 = vld [vmem:[%s3 + $0x188] sm:$0xff]
  %v1949 = vld [vmem:[%s3 + $0x190] sm:$0xff]
  %v1950 = vld [vmem:[%s3 + $0x198] sm:$0xff]
  %v1951 = vld [vmem:[%s3 + $0x1a0] sm:$0xff]
  %v1952 = vld [vmem:[%s3 + $0x1a8] sm:$0xff]
  %v1953 = vld [vmem:[%s3 + $0x1b0] sm:$0xff]
  %v1954 = vld [vmem:[%s3 + $0x1b8] sm:$0xff]
  %v1955 = vld [vmem:[%s3 + $0x1c0] sm:$0xff]
  %v1956 = vld [vmem:[%s3 + $0x1c8] sm:$0xff]
  %v1957 = vld [vmem:[%s3 + $0x1d0] sm:$0xff]
  %v1958 = vld [vmem:[%s3 + $0x1d8] sm:$0xff]
  %v1959 = vld [vmem:[%s3 + $0x1e0] sm:$0xff]
  %v1960 = vld [vmem:[%s3 + $0x1e8] sm:$0xff]
  %v1961 = vld [vmem:[%s3 + $0x1f0] sm:$0xff]
  %v1962 = vld [vmem:[%s3 + $0x1f8] sm:$0xff]
  %v1963 = vld [vmem:[%s3 + $0x200] sm:$0xff]
  %v1964 = vld [vmem:[%s3 + $0x208] sm:$0xff]
  %v1965 = vld [vmem:[%s3 + $0x210] sm:$0xff]
  %v1966 = vld [vmem:[%s3 + $0x218] sm:$0xff]
  %v1967 = vld [vmem:[%s3 + $0x220] sm:$0xff]
  %v1968 = vld [vmem:[%s3 + $0x228] sm:$0xff]
  %v1969 = vld [vmem:[%s3 + $0x230] sm:$0xff]
  %v1970 = vld [vmem:[%s3 + $0x238] sm:$0xff]
  %v1971 = vld [vmem:[%s3 + $0x240] sm:$0xff]
  %v1972 = vld [vmem:[%s3 + $0x248] sm:$0xff]
  %v1973 = vld [vmem:[%s3 + $0x250] sm:$0xff]
  %v1974 = vld [vmem:[%s3 + $0x258] sm:$0xff]
  %v1975 = vld [vmem:[%s3 + $0x260] sm:$0xff]
  %v1976 = vld [vmem:[%s3 + $0x268] sm:$0xff]
  %v1977 = vld [vmem:[%s3 + $0x270] sm:$0xff]
  %v1978 = vld [vmem:[%s3 + $0x278] sm:$0xff]
  %v1979 = vld [vmem:[%s3 + $0x280] sm:$0xff]
  %v1980 = vld [vmem:[%s3 + $0x288] sm:$0xff]
  %v1981 = vld [vmem:[%s3 + $0x290] sm:$0xff]
  %v1982 = vld [vmem:[%s3 + $0x298] sm:$0xff]
  %v1983 = vld [vmem:[%s3 + $0x2a0] sm:$0xff]
  %v1984 = vld [vmem:[%s3 + $0x2a8] sm:$0xff]
  %v1985 = vld [vmem:[%s3 + $0x2b0] sm:$0xff]
  %v1986 = vld [vmem:[%s3 + $0x2b8] sm:$0xff]
  %v1987 = vld [vmem:[%s3 + $0x2c0] sm:$0xff]
  %v1988 = vld [vmem:[%s3 + $0x2c8] sm:$0xff]
  %v1989 = vld [vmem:[%s3 + $0x2d0] sm:$0xff]
  %v1990 = vld [vmem:[%s3 + $0x2d8] sm:$0xff]
  %v1991 = vld [vmem:[%s3 + $0x2e0] sm:$0xff]
  %v1992 = vld [vmem:[%s3 + $0x2e8] sm:$0xff]
  %v1993 = vld [vmem:[%s3 + $0x2f0] sm:$0xff]
  %v1994 = vld [vmem:[%s3 + $0x2f8] sm:$0xff]
  %v1995 = vld [vmem:[%s3 + $0x300] sm:$0xff]
  %v1996 = vld [vmem:[%s3 + $0x308] sm:$0xff]
  %v1997 = vld [vmem:[%s3 + $0x310] sm:$0xff]
  %v1998 = vld [vmem:[%s3 + $0x318] sm:$0xff]
  %v1999 = vld [vmem:[%s3 + $0x320] sm:$0xff]
  %v2000 = vld [vmem:[%s3 + $0x328] sm:$0xff]
  %v2001 = vld [vmem:[%s3 + $0x330] sm:$0xff]
  %v2002 = vld [vmem:[%s3 + $0x338] sm:$0xff]
  %v2003 = vld [vmem:[%s3 + $0x340] sm:$0xff]
  %v2004 = vld [vmem:[%s3 + $0x348] sm:$0xff]
  %v2005 = vld [vmem:[%s3 + $0x350] sm:$0xff]
  %v2006 = vld [vmem:[%s3 + $0x358] sm:$0xff]
  %v2007 = vld [vmem:[%s3 + $0x360] sm:$0xff]
  %v2008 = vld [vmem:[%s3 + $0x368] sm:$0xff]
  %v2009 = vld [vmem:[%s3 + $0x370] sm:$0xff]
  %v2010 = vld [vmem:[%s3 + $0x378] sm:$0xff]
  %v2011 = vld [vmem:[%s3 + $0x380] sm:$0xff]
  %v2012 = vld [vmem:[%s3 + $0x388] sm:$0xff]
  %v2013 = vld [vmem:[%s3 + $0x390] sm:$0xff]
  %v2014 = vld [vmem:[%s3 + $0x398] sm:$0xff]
  %v2015 = vld [vmem:[%s3 + $0x3a0] sm:$0xff]
  %v2016 = vld [vmem:[%s3 + $0x3a8] sm:$0xff]
  %v2017 = vld [vmem:[%s3 + $0x3b0] sm:$0xff]
  %v2018 = vld [vmem:[%s3 + $0x3b8] sm:$0xff]
  %v2019 = vld [vmem:[%s3 + $0x3c0] sm:$0xff]
  %v2020 = vld [vmem:[%s3 + $0x3c8] sm:$0xff]
  %v2021 = vld [vmem:[%s3 + $0x3d0] sm:$0xff]
  %v2022 = vld [vmem:[%s3 + $0x3d8] sm:$0xff]
  %v2023 = vld [vmem:[%s3 + $0x3e0] sm:$0xff]
  %v2024 = vpack.c.bf16 %v1900, %v1899
  %v2025 = vpack.c.bf16 %v1902, %v1901
  %v2026 = vpack.c.bf16 %v1904, %v1903
  %v2027 = vpack.c.bf16 %v1906, %v1905
  %v2028 = vpack.c.bf16 %v1908, %v1907
  %v2029 = vpack.c.bf16 %v1910, %v1909
  %v2030 = vpack.c.bf16 %v1912, %v1911
  %v2031 = vpack.c.bf16 %v1914, %v1913
  %v2032 = vpack.c.bf16 %v1916, %v1915
  %v2033 = vpack.c.bf16 %v1918, %v1917
  %v2034 = vpack.c.bf16 %v1920, %v1919
  %v2035 = vpack.c.bf16 %v1922, %v1921
  %v2036 = vpack.c.bf16 %v1924, %v1923
  %v2037 = vpack.c.bf16 %v1926, %v1925
  %v2038 = vpack.c.bf16 %v1928, %v1927
  %v2039 = vpack.c.bf16 %v1930, %v1929
  %v2040 = vpack.c.bf16 %v1932, %v1931
  %v2041 = vpack.c.bf16 %v1934, %v1933
  %v2042 = vpack.c.bf16 %v1936, %v1935
  %v2043 = vpack.c.bf16 %v1938, %v1937
  %v2044 = vpack.c.bf16 %v1940, %v1939
  %v2045 = vpack.c.bf16 %v1942, %v1941
  %v2046 = vpack.c.bf16 %v1944, %v1943
  %v2047 = vpack.c.bf16 %v1946, %v1945
  %v2048 = vpack.c.bf16 %v1948, %v1947
  %v2049 = vpack.c.bf16 %v1950, %v1949
  %v2050 = vpack.c.bf16 %v1952, %v1951
  %v2051 = vpack.c.bf16 %v1954, %v1953
  %v2052 = vpack.c.bf16 %v1956, %v1955
  %v2053 = vpack.c.bf16 %v1958, %v1957
  %v2054 = vpack.c.bf16 %v1960, %v1959
  %v2055 = vpack.c.bf16 %v1962, %v1961
  %v2056 = vpack.c.bf16 %v1964, %v1963
  %v2057 = vpack.c.bf16 %v1966, %v1965
  %v2058 = vpack.c.bf16 %v1968, %v1967
  %v2059 = vpack.c.bf16 %v1970, %v1969
  %v2060 = vpack.c.bf16 %v1972, %v1971
  %v2061 = vpack.c.bf16 %v1974, %v1973
  %v2062 = vpack.c.bf16 %v1976, %v1975
  %v2063 = vpack.c.bf16 %v1978, %v1977
  %v2064 = vpack.c.bf16 %v1980, %v1979
  %v2065 = vpack.c.bf16 %v1982, %v1981
  %v2066 = vpack.c.bf16 %v1984, %v1983
  %v2067 = vpack.c.bf16 %v1986, %v1985
  %v2068 = vpack.c.bf16 %v1988, %v1987
  %v2069 = vpack.c.bf16 %v1990, %v1989
  %v2070 = vpack.c.bf16 %v1992, %v1991
  %v2071 = vpack.c.bf16 %v1994, %v1993
  %v2072 = vpack.c.bf16 %v1996, %v1995
  %v2073 = vpack.c.bf16 %v1998, %v1997
  %v2074 = vpack.c.bf16 %v2000, %v1999
  %v2075 = vpack.c.bf16 %v2002, %v2001
  %v2076 = vpack.c.bf16 %v2004, %v2003
  %v2077 = vpack.c.bf16 %v2006, %v2005
  %v2078 = vpack.c.bf16 %v2008, %v2007
  %v2079 = vpack.c.bf16 %v2010, %v2009
  %v2080 = vpack.c.bf16 %v2012, %v2011
  %v2081 = vpack.c.bf16 %v2014, %v2013
  %v2082 = vpack.c.bf16 %v2016, %v2015
  %v2083 = vpack.c.bf16 %v2018, %v2017
  %v2084 = vpack.c.bf16 %v2020, %v2019
  %v2085 = vpack.c.bf16 %v2022, %v2021
  %v2086 = vpack.c.bf16 %v2023, %v2023
  %v2087 = vld [vmem:[%s6] sm:$0xf]
  %v2088 = vld [vmem:[%s6 + $0x4] sm:$0xf]
  %v2091 = vunpack.c.l.b16 %v2087
  %v2092 = vunpack.c.l.b16 %v2088
  %v2093 = vpack.c.b16 %v2092, %v2091
  %vm2095 = vcmask 130048
  %v2097 = vsel %vm2095, %v2024, 0
  %v2100 = vsel %vm2095, %v2025, 0
  %v2103 = vsel %vm2095, %v2026, 0
  %v2106 = vsel %vm2095, %v2027, 0
  %v2109 = vsel %vm2095, %v2028, 0
  %v2112 = vsel %vm2095, %v2029, 0
  %v2115 = vsel %vm2095, %v2030, 0
  %v2118 = vsel %vm2095, %v2031, 0
  %v2121 = vsel %vm2095, %v2032, 0
  %v2124 = vsel %vm2095, %v2033, 0
  %v2127 = vsel %vm2095, %v2034, 0
  %v2130 = vsel %vm2095, %v2035, 0
  %v2133 = vsel %vm2095, %v2036, 0
  %v2136 = vsel %vm2095, %v2037, 0
  %v2139 = vsel %vm2095, %v2038, 0
  %v2142 = vsel %vm2095, %v2039, 0
  %v2145 = vsel %vm2095, %v2040, 0
  %v2148 = vsel %vm2095, %v2041, 0
  %v2151 = vsel %vm2095, %v2042, 0
  %v2154 = vsel %vm2095, %v2043, 0
  %v2157 = vsel %vm2095, %v2044, 0
  %v2160 = vsel %vm2095, %v2045, 0
  %v2163 = vsel %vm2095, %v2046, 0
  %v2166 = vsel %vm2095, %v2047, 0
  %v2169 = vsel %vm2095, %v2048, 0
  %v2172 = vsel %vm2095, %v2049, 0
  %v2175 = vsel %vm2095, %v2050, 0
  %v2178 = vsel %vm2095, %v2051, 0
  %v2181 = vsel %vm2095, %v2052, 0
  %v2184 = vsel %vm2095, %v2053, 0
  %v2187 = vsel %vm2095, %v2054, 0
  %v2190 = vsel %vm2095, %v2055, 0
  %v2193 = vsel %vm2095, %v2056, 0
  %v2196 = vsel %vm2095, %v2057, 0
  %v2199 = vsel %vm2095, %v2058, 0
  %v2202 = vsel %vm2095, %v2059, 0
  %v2205 = vsel %vm2095, %v2060, 0
  %v2208 = vsel %vm2095, %v2061, 0
  %v2211 = vsel %vm2095, %v2062, 0
  %v2214 = vsel %vm2095, %v2063, 0
  %v2217 = vsel %vm2095, %v2064, 0
  %v2220 = vsel %vm2095, %v2065, 0
  %v2223 = vsel %vm2095, %v2066, 0
  %v2226 = vsel %vm2095, %v2067, 0
  %v2229 = vsel %vm2095, %v2068, 0
  %v2232 = vsel %vm2095, %v2069, 0
  %v2235 = vsel %vm2095, %v2070, 0
  %v2238 = vsel %vm2095, %v2071, 0
  %v2241 = vsel %vm2095, %v2072, 0
  %v2244 = vsel %vm2095, %v2073, 0
  %v2247 = vsel %vm2095, %v2074, 0
  %v2250 = vsel %vm2095, %v2075, 0
  %v2253 = vsel %vm2095, %v2076, 0
  %v2256 = vsel %vm2095, %v2077, 0
  %v2259 = vsel %vm2095, %v2078, 0
  %v2262 = vsel %vm2095, %v2079, 0
  %v2265 = vsel %vm2095, %v2080, 0
  %v2268 = vsel %vm2095, %v2081, 0
  %v2271 = vsel %vm2095, %v2082, 0
  %v2274 = vsel %vm2095, %v2083, 0
  %v2277 = vsel %vm2095, %v2084, 0
  %v2280 = vsel %vm2095, %v2085, 0
  %v2283 = vsel %vm2095, %v2086, 0
  %2285 = vmatprep.subr.bf16.mxu0 0
  %2286 = vmatpush1.bf16.msra.mxu0 %v2093
  %2287 = vmatprep.subr.bf16.mxu0 0
  %2288 = vmatpush1.bf16.msra.mxu0 0
  %2289 = vmatprep.subr.bf16.mxu0 0
  %2290 = vmatpush1.bf16.msra.mxu0 0
  %2291 = vmatprep.subr.bf16.mxu0 0
  %2292 = vmatpush1.bf16.msra.mxu0 0
  %2293 = vmatprep.subr.bf16.mxu0 0
  %2294 = vmatpush1.bf16.msra.mxu0 0
  %2295 = vmatprep.subr.bf16.mxu0 0
  %2296 = vmatpush1.bf16.msra.mxu0 0
  %2297 = vmatprep.subr.bf16.mxu0 0
  %2298 = vmatpush1.bf16.msra.mxu0 0
  %2299 = vmatprep.subr.bf16.mxu0 0
  %2300 = vmatpush1.bf16.msra.mxu0 0
  %2301 = vmatprep.subr.bf16.mxu0 0
  %2302 = vmatpush1.bf16.msra.mxu0 0
  %2303 = vmatprep.subr.bf16.mxu0 0
  %2304 = vmatpush1.bf16.msra.mxu0 0
  %2305 = vmatprep.subr.bf16.mxu0 0
  %2306 = vmatpush1.bf16.msra.mxu0 0
  %2307 = vmatprep.subr.bf16.mxu0 0
  %2308 = vmatpush1.bf16.msra.mxu0 0
  %2309 = vmatprep.subr.bf16.mxu0 0
  %2310 = vmatpush1.bf16.msra.mxu0 0
  %2311 = vmatprep.subr.bf16.mxu0 0
  %2312 = vmatpush1.bf16.msra.mxu0 0
  %2313 = vmatprep.subr.bf16.mxu0 0
  %2314 = vmatpush1.bf16.msra.mxu0 0
  %2315 = vmatprep.subr.bf16.mxu0 0
  %2316 = vmatpush1.bf16.msra.mxu0 0
  %2317 = vmatprep.mubr.bf16.mxu0 0
  %2318 = vmatmul.mubr.bf16.gmra.mrb[0].mxu0 %v2097
  %v2319 = vpop.f32.mrb[0].mxu0
  %v2320 = vadd.f32 0.0, %v2319
  %v2321 = vpop.f32.mrb[0].mxu0
  %v2322 = vpop.f32.mrb[0].mxu0
  %v2323 = vadd.f32 0.0, %v2322
  %v2324 = vpop.f32.mrb[0].mxu0
  %2325 = vmatprep.mubr.bf16.mxu0 0
  %2326 = vmatmul.mubr.bf16.gmra.mrb[0].mxu0 %v2100
  %v2327 = vpop.f32.mrb[0].mxu0
  %v2328 = vadd.f32 0.0, %v2327
  %v2329 = vpop.f32.mrb[0].mxu0
  %v2330 = vpop.f32.mrb[0].mxu0
  %v2331 = vadd.f32 0.0, %v2330
  %v2332 = vpop.f32.mrb[0].mxu0
  %2333 = vmatprep.mubr.bf16.mxu0 0
  %2334 = vmatmul.mubr.bf16.gmra.mrb[0].mxu0 %v2103
  %v2335 = vpop.f32.mrb[0].mxu0
  %v2336 = vadd.f32 0.0, %v2335
  %v2337 = vpop.f32.mrb[0].mxu0
  %v2338 = vpop.f32.mrb[0].mxu0
  %v2339 = vadd.f32 0.0, %v2338
  %v2340 = vpop.f32.mrb[0].mxu0
  %2341 = vmatprep.mubr.bf16.mxu0 0
  %2342 = vmatmul.mubr.bf16.gmra.mrb[0].mxu0 %v2106
  %v2343 = vpop.f32.mrb[0].mxu0
  %v2344 = vadd.f32 0.0, %v2343
  %v2345 = vpop.f32.mrb[0].mxu0
  %v2346 = vpop.f32.mrb[0].mxu0
  %v2347 = vadd.f32 0.0, %v2346
  %v2348 = vpop.f32.mrb[0].mxu0
  %2349 = vmatprep.mubr.bf16.mxu0 0
  %2350 = vmatmul.mubr.bf16.gmra.mrb[0].mxu0 %v2109
  %v2351 = vpop.f32.mrb[0].mxu0
  %v2352 = vadd.f32 0.0, %v2351
  %v2353 = vpop.f32.mrb[0].mxu0
  %v2354 = vpop.f32.mrb[0].mxu0
  %v2355 = vadd.f32 0.0, %v2354
  %v2356 = vpop.f32.mrb[0].mxu0
  %2357 = vmatprep.mubr.bf16.mxu0 0
  %2358 = vmatmul.mubr.bf16.gmra.mrb[0].mxu0 %v2112
  %v2359 = vpop.f32.mrb[0].mxu0
  %v2360 = vadd.f32 0.0, %v2359
  %v2361 = vpop.f32.mrb[0].mxu0
  %v2362 = vpop.f32.mrb[0].mxu0
  %v2363 = vadd.f32 0.0, %v2362
  %v2364 = vpop.f32.mrb[0].mxu0
  %2365 = vmatprep.mubr.bf16.mxu0 0
  %2366 = vmatmul.mubr.bf16.gmra.mrb[0].mxu0 %v2115
  %v2367 = vpop.f32.mrb[0].mxu0
  %v2368 = vadd.f32 0.0, %v2367
  %v2369 = vpop.f32.mrb[0].mxu0
  %v2370 = vpop.f32.mrb[0].mxu0
  %v2371 = vadd.f32 0.0, %v2370
  %v2372 = vpop.f32.mrb[0].mxu0
  %2373 = vmatprep.mubr.bf16.mxu0 0
  %2374 = vmatmul.mubr.bf16.gmra.mrb[0].mxu0 %v2118
  %v2375 = vpop.f32.mrb[0].mxu0
  %v2376 = vadd.f32 0.0, %v2375
  %v2377 = vpop.f32.mrb[0].mxu0
  %v2378 = vpop.f32.mrb[0].mxu0
  %v2379 = vadd.f32 0.0, %v2378
  %v2380 = vpop.f32.mrb[0].mxu0
  %2381 = vmatprep.mubr.bf16.mxu0 0
  %2382 = vmatmul.mubr.bf16.gmra.mrb[0].mxu0 %v2121
  %v2383 = vpop.f32.mrb[0].mxu0
  %v2384 = vadd.f32 0.0, %v2383
  %v2385 = vpop.f32.mrb[0].mxu0
  %v2386 = vpop.f32.mrb[0].mxu0
  %v2387 = vadd.f32 0.0, %v2386
  %v2388 = vpop.f32.mrb[0].mxu0
  %2389 = vmatprep.mubr.bf16.mxu0 0
  %2390 = vmatmul.mubr.bf16.gmra.mrb[0].mxu0 %v2124
  %v2391 = vpop.f32.mrb[0].mxu0
  %v2392 = vadd.f32 0.0, %v2391
  %v2393 = vpop.f32.mrb[0].mxu0
  %v2394 = vpop.f32.mrb[0].mxu0
  %v2395 = vadd.f32 0.0, %v2394
  %v2396 = vpop.f32.mrb[0].mxu0
  %2397 = vmatprep.mubr.bf16.mxu0 0
  %2398 = vmatmul.mubr.bf16.gmra.mrb[0].mxu0 %v2127
  %v2399 = vpop.f32.mrb[0].mxu0
  %v2400 = vadd.f32 0.0, %v2399
  %v2401 = vpop.f32.mrb[0].mxu0
  %v2402 = vpop.f32.mrb[0].mxu0
  %v2403 = vadd.f32 0.0, %v2402
  %v2404 = vpop.f32.mrb[0].mxu0
  %2405 = vmatprep.mubr.bf16.mxu0 0
  %2406 = vmatmul.mubr.bf16.gmra.mrb[0].mxu0 %v2130
  %v2407 = vpop.f32.mrb[0].mxu0
  %v2408 = vadd.f32 0.0, %v2407
  %v2409 = vpop.f32.mrb[0].mxu0
  %v2410 = vpop.f32.mrb[0].mxu0
  %v2411 = vadd.f32 0.0, %v2410
  %v2412 = vpop.f32.mrb[0].mxu0
  %2413 = vmatprep.mubr.bf16.mxu0 0
  %2414 = vmatmul.mubr.bf16.gmra.mrb[0].mxu0 %v2133
  %v2415 = vpop.f32.mrb[0].mxu0
  %v2416 = vadd.f32 0.0, %v2415
  %v2417 = vpop.f32.mrb[0].mxu0
  %v2418 = vpop.f32.mrb[0].mxu0
  %v2419 = vadd.f32 0.0, %v2418
  %v2420 = vpop.f32.mrb[0].mxu0
  %2421 = vmatprep.mubr.bf16.mxu0 0
  %2422 = vmatmul.mubr.bf16.gmra.mrb[0].mxu0 %v2136
  %v2423 = vpop.f32.mrb[0].mxu0
  %v2424 = vadd.f32 0.0, %v2423
  %v2425 = vpop.f32.mrb[0].mxu0
  %v2426 = vpop.f32.mrb[0].mxu0
  %v2427 = vadd.f32 0.0, %v2426
  %v2428 = vpop.f32.mrb[0].mxu0
  %2429 = vmatprep.mubr.bf16.mxu0 0
  %2430 = vmatmul.mubr.bf16.gmra.mrb[0].mxu0 %v2139
  %v2431 = vpop.f32.mrb[0].mxu0
  %v2432 = vadd.f32 0.0, %v2431
  %v2433 = vpop.f32.mrb[0].mxu0
  %v2434 = vpop.f32.mrb[0].mxu0
  %v2435 = vadd.f32 0.0, %v2434
  %v2436 = vpop.f32.mrb[0].mxu0
  %2437 = vmatprep.mubr.bf16.mxu0 0
  %2438 = vmatmul.mubr.bf16.gmra.mrb[0].mxu0 %v2142
  %v2439 = vpop.f32.mrb[0].mxu0
  %v2440 = vadd.f32 0.0, %v2439
  %v2441 = vpop.f32.mrb[0].mxu0
  %v2442 = vpop.f32.mrb[0].mxu0
  %v2443 = vadd.f32 0.0, %v2442
  %v2444 = vpop.f32.mrb[0].mxu0
  %2445 = vmatprep.mubr.bf16.mxu0 0
  %2446 = vmatmul.mubr.bf16.gmra.mrb[0].mxu0 %v2145
  %v2447 = vpop.f32.mrb[0].mxu0
  %v2448 = vadd.f32 0.0, %v2447
  %v2449 = vpop.f32.mrb[0].mxu0
  %v2450 = vpop.f32.mrb[0].mxu0
  %v2451 = vadd.f32 0.0, %v2450
  %v2452 = vpop.f32.mrb[0].mxu0
  %2453 = vmatprep.mubr.bf16.mxu0 0
  %2454 = vmatmul.mubr.bf16.gmra.mrb[0].mxu0 %v2148
  %v2455 = vpop.f32.mrb[0].mxu0
  %v2456 = vadd.f32 0.0, %v2455
  %v2457 = vpop.f32.mrb[0].mxu0
  %v2458 = vpop.f32.mrb[0].mxu0
  %v2459 = vadd.f32 0.0, %v2458
  %v2460 = vpop.f32.mrb[0].mxu0
  %2461 = vmatprep.mubr.bf16.mxu0 0
  %2462 = vmatmul.mubr.bf16.gmra.mrb[0].mxu0 %v2151
  %v2463 = vpop.f32.mrb[0].mxu0
  %v2464 = vadd.f32 0.0, %v2463
  %v2465 = vpop.f32.mrb[0].mxu0
  %v2466 = vpop.f32.mrb[0].mxu0
  %v2467 = vadd.f32 0.0, %v2466
  %v2468 = vpop.f32.mrb[0].mxu0
  %2469 = vmatprep.mubr.bf16.mxu0 0
  %2470 = vmatmul.mubr.bf16.gmra.mrb[0].mxu0 %v2154
  %v2471 = vpop.f32.mrb[0].mxu0
  %v2472 = vadd.f32 0.0, %v2471
  %v2473 = vpop.f32.mrb[0].mxu0
  %v2474 = vpop.f32.mrb[0].mxu0
  %v2475 = vadd.f32 0.0, %v2474
  %v2476 = vpop.f32.mrb[0].mxu0
  %2477 = vmatprep.mubr.bf16.mxu0 0
  %2478 = vmatmul.mubr.bf16.gmra.mrb[0].mxu0 %v2157
  %v2479 = vpop.f32.mrb[0].mxu0
  %v2480 = vadd.f32 0.0, %v2479
  %v2481 = vpop.f32.mrb[0].mxu0
  %v2482 = vpop.f32.mrb[0].mxu0
  %v2483 = vadd.f32 0.0, %v2482
  %v2484 = vpop.f32.mrb[0].mxu0
  %2485 = vmatprep.mubr.bf16.mxu0 0
  %2486 = vmatmul.mubr.bf16.gmra.mrb[0].mxu0 %v2160
  %v2487 = vpop.f32.mrb[0].mxu0
  %v2488 = vadd.f32 0.0, %v2487
  %v2489 = vpop.f32.mrb[0].mxu0
  %v2490 = vpop.f32.mrb[0].mxu0
  %v2491 = vadd.f32 0.0, %v2490
  %v2492 = vpop.f32.mrb[0].mxu0
  %2493 = vmatprep.mubr.bf16.mxu0 0
  %2494 = vmatmul.mubr.bf16.gmra.mrb[0].mxu0 %v2163
  %v2495 = vpop.f32.mrb[0].mxu0
  %v2496 = vadd.f32 0.0, %v2495
  %v2497 = vpop.f32.mrb[0].mxu0
  %v2498 = vpop.f32.mrb[0].mxu0
  %v2499 = vadd.f32 0.0, %v2498
  %v2500 = vpop.f32.mrb[0].mxu0
  %2501 = vmatprep.mubr.bf16.mxu0 0
  %2502 = vmatmul.mubr.bf16.gmra.mrb[0].mxu0 %v2166
  %v2503 = vpop.f32.mrb[0].mxu0
  %v2504 = vadd.f32 0.0, %v2503
  %v2505 = vpop.f32.mrb[0].mxu0
  %v2506 = vpop.f32.mrb[0].mxu0
  %v2507 = vadd.f32 0.0, %v2506
  %v2508 = vpop.f32.mrb[0].mxu0
  %2509 = vmatprep.mubr.bf16.mxu0 0
  %2510 = vmatmul.mubr.bf16.gmra.mrb[0].mxu0 %v2169
  %v2511 = vpop.f32.mrb[0].mxu0
  %v2512 = vadd.f32 0.0, %v2511
  %v2513 = vpop.f32.mrb[0].mxu0
  %v2514 = vpop.f32.mrb[0].mxu0
  %v2515 = vadd.f32 0.0, %v2514
  %v2516 = vpop.f32.mrb[0].mxu0
  %2517 = vmatprep.mubr.bf16.mxu0 0
  %2518 = vmatmul.mubr.bf16.gmra.mrb[0].mxu0 %v2172
  %v2519 = vpop.f32.mrb[0].mxu0
  %v2520 = vadd.f32 0.0, %v2519
  %v2521 = vpop.f32.mrb[0].mxu0
  %v2522 = vpop.f32.mrb[0].mxu0
  %v2523 = vadd.f32 0.0, %v2522
  %v2524 = vpop.f32.mrb[0].mxu0
  %2525 = vmatprep.mubr.bf16.mxu0 0
  %2526 = vmatmul.mubr.bf16.gmra.mrb[0].mxu0 %v2175
  %v2527 = vpop.f32.mrb[0].mxu0
  %v2528 = vadd.f32 0.0, %v2527
  %v2529 = vpop.f32.mrb[0].mxu0
  %v2530 = vpop.f32.mrb[0].mxu0
  %v2531 = vadd.f32 0.0, %v2530
  %v2532 = vpop.f32.mrb[0].mxu0
  %2533 = vmatprep.mubr.bf16.mxu0 0
  %2534 = vmatmul.mubr.bf16.gmra.mrb[0].mxu0 %v2178
  %v2535 = vpop.f32.mrb[0].mxu0
  %v2536 = vadd.f32 0.0, %v2535
  %v2537 = vpop.f32.mrb[0].mxu0
  %v2538 = vpop.f32.mrb[0].mxu0
  %v2539 = vadd.f32 0.0, %v2538
  %v2540 = vpop.f32.mrb[0].mxu0
  %2541 = vmatprep.mubr.bf16.mxu0 0
  %2542 = vmatmul.mubr.bf16.gmra.mrb[0].mxu0 %v2181
  %v2543 = vpop.f32.mrb[0].mxu0
  %v2544 = vadd.f32 0.0, %v2543
  %v2545 = vpop.f32.mrb[0].mxu0
  %v2546 = vpop.f32.mrb[0].mxu0
  %v2547 = vadd.f32 0.0, %v2546
  %v2548 = vpop.f32.mrb[0].mxu0
  %2549 = vmatprep.mubr.bf16.mxu0 0
  %2550 = vmatmul.mubr.bf16.gmra.mrb[0].mxu0 %v2184
  %v2551 = vpop.f32.mrb[0].mxu0
  %v2552 = vadd.f32 0.0, %v2551
  %v2553 = vpop.f32.mrb[0].mxu0
  %v2554 = vpop.f32.mrb[0].mxu0
  %v2555 = vadd.f32 0.0, %v2554
  %v2556 = vpop.f32.mrb[0].mxu0
  %2557 = vmatprep.mubr.bf16.mxu0 0
  %2558 = vmatmul.mubr.bf16.gmra.mrb[0].mxu0 %v2187
  %v2559 = vpop.f32.mrb[0].mxu0
  %v2560 = vadd.f32 0.0, %v2559
  %v2561 = vpop.f32.mrb[0].mxu0
  %v2562 = vpop.f32.mrb[0].mxu0
  %v2563 = vadd.f32 0.0, %v2562
  %v2564 = vpop.f32.mrb[0].mxu0
  %2565 = vmatprep.mubr.bf16.mxu0 0
  %2566 = vmatmul.mubr.bf16.gmra.mrb[0].mxu0 %v2190
  %v2567 = vpop.f32.mrb[0].mxu0
  %v2568 = vadd.f32 0.0, %v2567
  %v2569 = vpop.f32.mrb[0].mxu0
  %v2570 = vpop.f32.mrb[0].mxu0
  %v2571 = vadd.f32 0.0, %v2570
  %v2572 = vpop.f32.mrb[0].mxu0
  %2573 = vmatprep.mubr.bf16.mxu0 0
  %2574 = vmatmul.mubr.bf16.gmra.mrb[0].mxu0 %v2193
  %v2575 = vpop.f32.mrb[0].mxu0
  %v2576 = vadd.f32 0.0, %v2575
  %v2577 = vpop.f32.mrb[0].mxu0
  %v2578 = vpop.f32.mrb[0].mxu0
  %v2579 = vadd.f32 0.0, %v2578
  %v2580 = vpop.f32.mrb[0].mxu0
  %2581 = vmatprep.mubr.bf16.mxu0 0
  %2582 = vmatmul.mubr.bf16.gmra.mrb[0].mxu0 %v2196
  %v2583 = vpop.f32.mrb[0].mxu0
  %v2584 = vadd.f32 0.0, %v2583
  %v2585 = vpop.f32.mrb[0].mxu0
  %v2586 = vpop.f32.mrb[0].mxu0
  %v2587 = vadd.f32 0.0, %v2586
  %v2588 = vpop.f32.mrb[0].mxu0
  %2589 = vmatprep.mubr.bf16.mxu0 0
  %2590 = vmatmul.mubr.bf16.gmra.mrb[0].mxu0 %v2199
  %v2591 = vpop.f32.mrb[0].mxu0
  %v2592 = vadd.f32 0.0, %v2591
  %v2593 = vpop.f32.mrb[0].mxu0
  %v2594 = vpop.f32.mrb[0].mxu0
  %v2595 = vadd.f32 0.0, %v2594
  %v2596 = vpop.f32.mrb[0].mxu0
  %2597 = vmatprep.mubr.bf16.mxu0 0
  %2598 = vmatmul.mubr.bf16.gmra.mrb[0].mxu0 %v2202
  %v2599 = vpop.f32.mrb[0].mxu0
  %v2600 = vadd.f32 0.0, %v2599
  %v2601 = vpop.f32.mrb[0].mxu0
  %v2602 = vpop.f32.mrb[0].mxu0
  %v2603 = vadd.f32 0.0, %v2602
  %v2604 = vpop.f32.mrb[0].mxu0
  %2605 = vmatprep.mubr.bf16.mxu0 0
  %2606 = vmatmul.mubr.bf16.gmra.mrb[0].mxu0 %v2205
  %v2607 = vpop.f32.mrb[0].mxu0
  %v2608 = vadd.f32 0.0, %v2607
  %v2609 = vpop.f32.mrb[0].mxu0
  %v2610 = vpop.f32.mrb[0].mxu0
  %v2611 = vadd.f32 0.0, %v2610
  %v2612 = vpop.f32.mrb[0].mxu0
  %2613 = vmatprep.mubr.bf16.mxu0 0
  %2614 = vmatmul.mubr.bf16.gmra.mrb[0].mxu0 %v2208
  %v2615 = vpop.f32.mrb[0].mxu0
  %v2616 = vadd.f32 0.0, %v2615
  %v2617 = vpop.f32.mrb[0].mxu0
  %v2618 = vpop.f32.mrb[0].mxu0
  %v2619 = vadd.f32 0.0, %v2618
  %v2620 = vpop.f32.mrb[0].mxu0
  %2621 = vmatprep.mubr.bf16.mxu0 0
  %2622 = vmatmul.mubr.bf16.gmra.mrb[0].mxu0 %v2211
  %v2623 = vpop.f32.mrb[0].mxu0
  %v2624 = vadd.f32 0.0, %v2623
  %v2625 = vpop.f32.mrb[0].mxu0
  %v2626 = vpop.f32.mrb[0].mxu0
  %v2627 = vadd.f32 0.0, %v2626
  %v2628 = vpop.f32.mrb[0].mxu0
  %2629 = vmatprep.mubr.bf16.mxu0 0
  %2630 = vmatmul.mubr.bf16.gmra.mrb[0].mxu0 %v2214
  %v2631 = vpop.f32.mrb[0].mxu0
  %v2632 = vadd.f32 0.0, %v2631
  %v2633 = vpop.f32.mrb[0].mxu0
  %v2634 = vpop.f32.mrb[0].mxu0
  %v2635 = vadd.f32 0.0, %v2634
  %v2636 = vpop.f32.mrb[0].mxu0
  %2637 = vmatprep.mubr.bf16.mxu0 0
  %2638 = vmatmul.mubr.bf16.gmra.mrb[0].mxu0 %v2217
  %v2639 = vpop.f32.mrb[0].mxu0
  %v2640 = vadd.f32 0.0, %v2639
  %v2641 = vpop.f32.mrb[0].mxu0
  %v2642 = vpop.f32.mrb[0].mxu0
  %v2643 = vadd.f32 0.0, %v2642
  %v2644 = vpop.f32.mrb[0].mxu0
  %2645 = vmatprep.mubr.bf16.mxu0 0
  %2646 = vmatmul.mubr.bf16.gmra.mrb[0].mxu0 %v2220
  %v2647 = vpop.f32.mrb[0].mxu0
  %v2648 = vadd.f32 0.0, %v2647
  %v2649 = vpop.f32.mrb[0].mxu0
  %v2650 = vpop.f32.mrb[0].mxu0
  %v2651 = vadd.f32 0.0, %v2650
  %v2652 = vpop.f32.mrb[0].mxu0
  %2653 = vmatprep.mubr.bf16.mxu0 0
  %2654 = vmatmul.mubr.bf16.gmra.mrb[0].mxu0 %v2223
  %v2655 = vpop.f32.mrb[0].mxu0
  %v2656 = vadd.f32 0.0, %v2655
  %v2657 = vpop.f32.mrb[0].mxu0
  %v2658 = vpop.f32.mrb[0].mxu0
  %v2659 = vadd.f32 0.0, %v2658
  %v2660 = vpop.f32.mrb[0].mxu0
  %2661 = vmatprep.mubr.bf16.mxu0 0
  %2662 = vmatmul.mubr.bf16.gmra.mrb[0].mxu0 %v2226
  %v2663 = vpop.f32.mrb[0].mxu0
  %v2664 = vadd.f32 0.0, %v2663
  %v2665 = vpop.f32.mrb[0].mxu0
  %v2666 = vpop.f32.mrb[0].mxu0
  %v2667 = vadd.f32 0.0, %v2666
  %v2668 = vpop.f32.mrb[0].mxu0
  %2669 = vmatprep.mubr.bf16.mxu0 0
  %2670 = vmatmul.mubr.bf16.gmra.mrb[0].mxu0 %v2229
  %v2671 = vpop.f32.mrb[0].mxu0
  %v2672 = vadd.f32 0.0, %v2671
  %v2673 = vpop.f32.mrb[0].mxu0
  %v2674 = vpop.f32.mrb[0].mxu0
  %v2675 = vadd.f32 0.0, %v2674
  %v2676 = vpop.f32.mrb[0].mxu0
  %2677 = vmatprep.mubr.bf16.mxu0 0
  %2678 = vmatmul.mubr.bf16.gmra.mrb[0].mxu0 %v2232
  %v2679 = vpop.f32.mrb[0].mxu0
  %v2680 = vadd.f32 0.0, %v2679
  %v2681 = vpop.f32.mrb[0].mxu0
  %v2682 = vpop.f32.mrb[0].mxu0
  %v2683 = vadd.f32 0.0, %v2682
  %v2684 = vpop.f32.mrb[0].mxu0
  %2685 = vmatprep.mubr.bf16.mxu0 0
  %2686 = vmatmul.mubr.bf16.gmra.mrb[0].mxu0 %v2235
  %v2687 = vpop.f32.mrb[0].mxu0
  %v2688 = vadd.f32 0.0, %v2687
  %v2689 = vpop.f32.mrb[0].mxu0
  %v2690 = vpop.f32.mrb[0].mxu0
  %v2691 = vadd.f32 0.0, %v2690
  %v2692 = vpop.f32.mrb[0].mxu0
  %2693 = vmatprep.mubr.bf16.mxu0 0
  %2694 = vmatmul.mubr.bf16.gmra.mrb[0].mxu0 %v2238
  %v2695 = vpop.f32.mrb[0].mxu0
  %v2696 = vadd.f32 0.0, %v2695
  %v2697 = vpop.f32.mrb[0].mxu0
  %v2698 = vpop.f32.mrb[0].mxu0
  %v2699 = vadd.f32 0.0, %v2698
  %v2700 = vpop.f32.mrb[0].mxu0
  %2701 = vmatprep.mubr.bf16.mxu0 0
  %2702 = vmatmul.mubr.bf16.gmra.mrb[0].mxu0 %v2241
  %v2703 = vpop.f32.mrb[0].mxu0
  %v2704 = vadd.f32 0.0, %v2703
  %v2705 = vpop.f32.mrb[0].mxu0
  %v2706 = vpop.f32.mrb[0].mxu0
  %v2707 = vadd.f32 0.0, %v2706
  %v2708 = vpop.f32.mrb[0].mxu0
  %2709 = vmatprep.mubr.bf16.mxu0 0
  %2710 = vmatmul.mubr.bf16.gmra.mrb[0].mxu0 %v2244
  %v2711 = vpop.f32.mrb[0].mxu0
  %v2712 = vadd.f32 0.0, %v2711
  %v2713 = vpop.f32.mrb[0].mxu0
  %v2714 = vpop.f32.mrb[0].mxu0
  %v2715 = vadd.f32 0.0, %v2714
  %v2716 = vpop.f32.mrb[0].mxu0
  %2717 = vmatprep.mubr.bf16.mxu0 0
  %2718 = vmatmul.mubr.bf16.gmra.mrb[0].mxu0 %v2247
  %v2719 = vpop.f32.mrb[0].mxu0
  %v2720 = vadd.f32 0.0, %v2719
  %v2721 = vpop.f32.mrb[0].mxu0
  %v2722 = vpop.f32.mrb[0].mxu0
  %v2723 = vadd.f32 0.0, %v2722
  %v2724 = vpop.f32.mrb[0].mxu0
  %2725 = vmatprep.mubr.bf16.mxu0 0
  %2726 = vmatmul.mubr.bf16.gmra.mrb[0].mxu0 %v2250
  %v2727 = vpop.f32.mrb[0].mxu0
  %v2728 = vadd.f32 0.0, %v2727
  %v2729 = vpop.f32.mrb[0].mxu0
  %v2730 = vpop.f32.mrb[0].mxu0
  %v2731 = vadd.f32 0.0, %v2730
  %v2732 = vpop.f32.mrb[0].mxu0
  %2733 = vmatprep.mubr.bf16.mxu0 0
  %2734 = vmatmul.mubr.bf16.gmra.mrb[0].mxu0 %v2253
  %v2735 = vpop.f32.mrb[0].mxu0
  %v2736 = vadd.f32 0.0, %v2735
  %v2737 = vpop.f32.mrb[0].mxu0
  %v2738 = vpop.f32.mrb[0].mxu0
  %v2739 = vadd.f32 0.0, %v2738
  %v2740 = vpop.f32.mrb[0].mxu0
  %2741 = vmatprep.mubr.bf16.mxu0 0
  %2742 = vmatmul.mubr.bf16.gmra.mrb[0].mxu0 %v2256
  %v2743 = vpop.f32.mrb[0].mxu0
  %v2744 = vadd.f32 0.0, %v2743
  %v2745 = vpop.f32.mrb[0].mxu0
  %v2746 = vpop.f32.mrb[0].mxu0
  %v2747 = vadd.f32 0.0, %v2746
  %v2748 = vpop.f32.mrb[0].mxu0
  %2749 = vmatprep.mubr.bf16.mxu0 0
  %2750 = vmatmul.mubr.bf16.gmra.mrb[0].mxu0 %v2259
  %v2751 = vpop.f32.mrb[0].mxu0
  %v2752 = vadd.f32 0.0, %v2751
  %v2753 = vpop.f32.mrb[0].mxu0
  %v2754 = vpop.f32.mrb[0].mxu0
  %v2755 = vadd.f32 0.0, %v2754
  %v2756 = vpop.f32.mrb[0].mxu0
  %2757 = vmatprep.mubr.bf16.mxu0 0
  %2758 = vmatmul.mubr.bf16.gmra.mrb[0].mxu0 %v2262
  %v2759 = vpop.f32.mrb[0].mxu0
  %v2760 = vadd.f32 0.0, %v2759
  %v2761 = vpop.f32.mrb[0].mxu0
  %v2762 = vpop.f32.mrb[0].mxu0
  %v2763 = vadd.f32 0.0, %v2762
  %v2764 = vpop.f32.mrb[0].mxu0
  %2765 = vmatprep.mubr.bf16.mxu0 0
  %2766 = vmatmul.mubr.bf16.gmra.mrb[0].mxu0 %v2265
  %v2767 = vpop.f32.mrb[0].mxu0
  %v2768 = vadd.f32 0.0, %v2767
  %v2769 = vpop.f32.mrb[0].mxu0
  %v2770 = vpop.f32.mrb[0].mxu0
  %v2771 = vadd.f32 0.0, %v2770
  %v2772 = vpop.f32.mrb[0].mxu0
  %2773 = vmatprep.mubr.bf16.mxu0 0
  %2774 = vmatmul.mubr.bf16.gmra.mrb[0].mxu0 %v2268
  %v2775 = vpop.f32.mrb[0].mxu0
  %v2776 = vadd.f32 0.0, %v2775
  %v2777 = vpop.f32.mrb[0].mxu0
  %v2778 = vpop.f32.mrb[0].mxu0
  %v2779 = vadd.f32 0.0, %v2778
  %v2780 = vpop.f32.mrb[0].mxu0
  %2781 = vmatprep.mubr.bf16.mxu0 0
  %2782 = vmatmul.mubr.bf16.gmra.mrb[0].mxu0 %v2271
  %v2783 = vpop.f32.mrb[0].mxu0
  %v2784 = vadd.f32 0.0, %v2783
  %v2785 = vpop.f32.mrb[0].mxu0
  %v2786 = vpop.f32.mrb[0].mxu0
  %v2787 = vadd.f32 0.0, %v2786
  %v2788 = vpop.f32.mrb[0].mxu0
  %2789 = vmatprep.mubr.bf16.mxu0 0
  %2790 = vmatmul.mubr.bf16.gmra.mrb[0].mxu0 %v2274
  %v2791 = vpop.f32.mrb[0].mxu0
  %v2792 = vadd.f32 0.0, %v2791
  %v2793 = vpop.f32.mrb[0].mxu0
  %v2794 = vpop.f32.mrb[0].mxu0
  %v2795 = vadd.f32 0.0, %v2794
  %v2796 = vpop.f32.mrb[0].mxu0
  %2797 = vmatprep.mubr.bf16.mxu0 0
  %2798 = vmatmul.mubr.bf16.gmra.mrb[0].mxu0 %v2277
  %v2799 = vpop.f32.mrb[0].mxu0
  %v2800 = vadd.f32 0.0, %v2799
  %v2801 = vpop.f32.mrb[0].mxu0
  %v2802 = vpop.f32.mrb[0].mxu0
  %v2803 = vadd.f32 0.0, %v2802
  %v2804 = vpop.f32.mrb[0].mxu0
  %2805 = vmatprep.mubr.bf16.mxu0 0
  %2806 = vmatmul.mubr.bf16.gmra.mrb[0].mxu0 %v2280
  %v2807 = vpop.f32.mrb[0].mxu0
  %v2808 = vadd.f32 0.0, %v2807
  %v2809 = vpop.f32.mrb[0].mxu0
  %v2810 = vpop.f32.mrb[0].mxu0
  %v2811 = vadd.f32 0.0, %v2810
  %v2812 = vpop.f32.mrb[0].mxu0
  %2813 = vmatprep.mubr.bf16.mxu0 0
  %2814 = vmatmul.mubr.bf16.gmra.mrb[0].mxu0 %v2283
  %v2815 = vpop.f32.mrb[0].mxu0
  %v2816 = vadd.f32 0.0, %v2815
  %v2817 = vpop.f32.mrb[0].mxu0
  %v2818 = vpop.f32.mrb[0].mxu0
  %v2819 = vpop.f32.mrb[0].mxu0
  %2820 = vdwg.mxu0
  %v2821 = vadd.f32 %v1398, %v2320
  %v2822 = vadd.f32 %v1401, %v2323
  %v2823 = vadd.f32 %v1406, %v2328
  %v2824 = vadd.f32 %v1409, %v2331
  %v2825 = vadd.f32 %v1414, %v2336
  %v2826 = vadd.f32 %v1417, %v2339
  %v2827 = vadd.f32 %v1422, %v2344
  %v2828 = vadd.f32 %v1425, %v2347
  %v2829 = vadd.f32 %v1430, %v2352
  %v2830 = vadd.f32 %v1433, %v2355
  %v2831 = vadd.f32 %v1438, %v2360
  %v2832 = vadd.f32 %v1441, %v2363
  %v2833 = vadd.f32 %v1446, %v2368
  %v2834 = vadd.f32 %v1449, %v2371
  %v2835 = vadd.f32 %v1454, %v2376
  %v2836 = vadd.f32 %v1457, %v2379
  %v2837 = vadd.f32 %v1462, %v2384
  %v2838 = vadd.f32 %v1465, %v2387
  %v2839 = vadd.f32 %v1470, %v2392
  %v2840 = vadd.f32 %v1473, %v2395
  %v2841 = vadd.f32 %v1478, %v2400
  %v2842 = vadd.f32 %v1481, %v2403
  %v2843 = vadd.f32 %v1486, %v2408
  %v2844 = vadd.f32 %v1489, %v2411
  %v2845 = vadd.f32 %v1494, %v2416
  %v2846 = vadd.f32 %v1497, %v2419
  %v2847 = vadd.f32 %v1502, %v2424
  %v2848 = vadd.f32 %v1505, %v2427
  %v2849 = vadd.f32 %v1510, %v2432
  %v2850 = vadd.f32 %v1513, %v2435
  %v2851 = vadd.f32 %v1518, %v2440
  %v2852 = vadd.f32 %v1521, %v2443
  %v2853 = vadd.f32 %v1526, %v2448
  %v2854 = vadd.f32 %v1529, %v2451
  %v2855 = vadd.f32 %v1534, %v2456
  %v2856 = vadd.f32 %v1537, %v2459
  %v2857 = vadd.f32 %v1542, %v2464
  %v2858 = vadd.f32 %v1545, %v2467
  %v2859 = vadd.f32 %v1550, %v2472
  %v2860 = vadd.f32 %v1553, %v2475
  %v2861 = vadd.f32 %v1558, %v2480
  %v2862 = vadd.f32 %v1561, %v2483
  %v2863 = vadd.f32 %v1566, %v2488
  %v2864 = vadd.f32 %v1569, %v2491
  %v2865 = vadd.f32 %v1574, %v2496
  %v2866 = vadd.f32 %v1577, %v2499
  %v2867 = vadd.f32 %v1582, %v2504
  %v2868 = vadd.f32 %v1585, %v2507
  %v2869 = vadd.f32 %v1590, %v2512
  %v2870 = vadd.f32 %v1593, %v2515
  %v2871 = vadd.f32 %v1598, %v2520
  %v2872 = vadd.f32 %v1601, %v2523
  %v2873 = vadd.f32 %v1606, %v2528
  %v2874 = vadd.f32 %v1609, %v2531
  %v2875 = vadd.f32 %v1614, %v2536
  %v2876 = vadd.f32 %v1617, %v2539
  %v2877 = vadd.f32 %v1622, %v2544
  %v2878 = vadd.f32 %v1625, %v2547
  %v2879 = vadd.f32 %v1630, %v2552
  %v2880 = vadd.f32 %v1633, %v2555
  %v2881 = vadd.f32 %v1638, %v2560
  %v2882 = vadd.f32 %v1641, %v2563
  %v2883 = vadd.f32 %v1646, %v2568
  %v2884 = vadd.f32 %v1649, %v2571
  %v2885 = vadd.f32 %v1654, %v2576
  %v2886 = vadd.f32 %v1657, %v2579
  %v2887 = vadd.f32 %v1662, %v2584
  %v2888 = vadd.f32 %v1665, %v2587
  %v2889 = vadd.f32 %v1670, %v2592
  %v2890 = vadd.f32 %v1673, %v2595
  %v2891 = vadd.f32 %v1678, %v2600
  %v2892 = vadd.f32 %v1681, %v2603
  %v2893 = vadd.f32 %v1686, %v2608
  %v2894 = vadd.f32 %v1689, %v2611
  %v2895 = vadd.f32 %v1694, %v2616
  %v2896 = vadd.f32 %v1697, %v2619
  %v2897 = vadd.f32 %v1702, %v2624
  %v2898 = vadd.f32 %v1705, %v2627
  %v2899 = vadd.f32 %v1710, %v2632
  %v2900 = vadd.f32 %v1713, %v2635
  %v2901 = vadd.f32 %v1718, %v2640
  %v2902 = vadd.f32 %v1721, %v2643
  %v2903 = vadd.f32 %v1726, %v2648
  %v2904 = vadd.f32 %v1729, %v2651
  %v2905 = vadd.f32 %v1734, %v2656
  %v2906 = vadd.f32 %v1737, %v2659
  %v2907 = vadd.f32 %v1742, %v2664
  %v2908 = vadd.f32 %v1745, %v2667
  %v2909 = vadd.f32 %v1750, %v2672
  %v2910 = vadd.f32 %v1753, %v2675
  %v2911 = vadd.f32 %v1758, %v2680
  %v2912 = vadd.f32 %v1761, %v2683
  %v2913 = vadd.f32 %v1766, %v2688
  %v2914 = vadd.f32 %v1769, %v2691
  %v2915 = vadd.f32 %v1774, %v2696
  %v2916 = vadd.f32 %v1777, %v2699
  %v2917 = vadd.f32 %v1782, %v2704
  %v2918 = vadd.f32 %v1785, %v2707
  %v2919 = vadd.f32 %v1790, %v2712
  %v2920 = vadd.f32 %v1793, %v2715
  %v2921 = vadd.f32 %v1798, %v2720
  %v2922 = vadd.f32 %v1801, %v2723
  %v2923 = vadd.f32 %v1806, %v2728
  %v2924 = vadd.f32 %v1809, %v2731
  %v2925 = vadd.f32 %v1814, %v2736
  %v2926 = vadd.f32 %v1817, %v2739
  %v2927 = vadd.f32 %v1822, %v2744
  %v2928 = vadd.f32 %v1825, %v2747
  %v2929 = vadd.f32 %v1830, %v2752
  %v2930 = vadd.f32 %v1833, %v2755
  %v2931 = vadd.f32 %v1838, %v2760
  %v2932 = vadd.f32 %v1841, %v2763
  %v2933 = vadd.f32 %v1846, %v2768
  %v2934 = vadd.f32 %v1849, %v2771
  %v2935 = vadd.f32 %v1854, %v2776
  %v2936 = vadd.f32 %v1857, %v2779
  %v2937 = vadd.f32 %v1862, %v2784
  %v2938 = vadd.f32 %v1865, %v2787
  %v2939 = vadd.f32 %v1870, %v2792
  %v2940 = vadd.f32 %v1873, %v2795
  %v2941 = vadd.f32 %v1878, %v2800
  %v2942 = vadd.f32 %v1881, %v2803
  %v2943 = vadd.f32 %v1886, %v2808
  %v2944 = vadd.f32 %v1889, %v2811
  %v2945 = vadd.f32 %v1894, %v2816
  %s2946 = sld [smem:[#allocation2]]
  %vm2947 = vcmp.gt.f32.partialorder %v2821, 0.0
  %vm2948 = vcmp.gt.f32.partialorder %v2822, 0.0
  %vm2949 = vcmp.gt.f32.partialorder %v2823, 0.0
  %vm2950 = vcmp.gt.f32.partialorder %v2824, 0.0
  %vm2951 = vcmp.gt.f32.partialorder %v2825, 0.0
  %vm2952 = vcmp.gt.f32.partialorder %v2826, 0.0
  %vm2953 = vcmp.gt.f32.partialorder %v2827, 0.0
  %vm2954 = vcmp.gt.f32.partialorder %v2828, 0.0
  %vm2955 = vcmp.gt.f32.partialorder %v2829, 0.0
  %vm2956 = vcmp.gt.f32.partialorder %v2830, 0.0
  %vm2957 = vcmp.gt.f32.partialorder %v2831, 0.0
  %vm2958 = vcmp.gt.f32.partialorder %v2832, 0.0
  %vm2959 = vcmp.gt.f32.partialorder %v2833, 0.0
  %vm2960 = vcmp.gt.f32.partialorder %v2834, 0.0
  %vm2961 = vcmp.gt.f32.partialorder %v2835, 0.0
  %vm2962 = vcmp.gt.f32.partialorder %v2836, 0.0
  %vm2963 = vcmp.gt.f32.partialorder %v2837, 0.0
  %vm2964 = vcmp.gt.f32.partialorder %v2838, 0.0
  %vm2965 = vcmp.gt.f32.partialorder %v2839, 0.0
  %vm2966 = vcmp.gt.f32.partialorder %v2840, 0.0
  %vm2967 = vcmp.gt.f32.partialorder %v2841, 0.0
  %vm2968 = vcmp.gt.f32.partialorder %v2842, 0.0
  %vm2969 = vcmp.gt.f32.partialorder %v2843, 0.0
  %vm2970 = vcmp.gt.f32.partialorder %v2844, 0.0
  %vm2971 = vcmp.gt.f32.partialorder %v2845, 0.0
  %vm2972 = vcmp.gt.f32.partialorder %v2846, 0.0
  %vm2973 = vcmp.gt.f32.partialorder %v2847, 0.0
  %vm2974 = vcmp.gt.f32.partialorder %v2848, 0.0
  %vm2975 = vcmp.gt.f32.partialorder %v2849, 0.0
  %vm2976 = vcmp.gt.f32.partialorder %v2850, 0.0
  %vm2977 = vcmp.gt.f32.partialorder %v2851, 0.0
  %vm2978 = vcmp.gt.f32.partialorder %v2852, 0.0
  %vm2979 = vcmp.gt.f32.partialorder %v2853, 0.0
  %vm2980 = vcmp.gt.f32.partialorder %v2854, 0.0
  %vm2981 = vcmp.gt.f32.partialorder %v2855, 0.0
  %vm2982 = vcmp.gt.f32.partialorder %v2856, 0.0
  %vm2983 = vcmp.gt.f32.partialorder %v2857, 0.0
  %vm2984 = vcmp.gt.f32.partialorder %v2858, 0.0
  %vm2985 = vcmp.gt.f32.partialorder %v2859, 0.0
  %vm2986 = vcmp.gt.f32.partialorder %v2860, 0.0
  %vm2987 = vcmp.gt.f32.partialorder %v2861, 0.0
  %vm2988 = vcmp.gt.f32.partialorder %v2862, 0.0
  %vm2989 = vcmp.gt.f32.partialorder %v2863, 0.0
  %vm2990 = vcmp.gt.f32.partialorder %v2864, 0.0
  %vm2991 = vcmp.gt.f32.partialorder %v2865, 0.0
  %vm2992 = vcmp.gt.f32.partialorder %v2866, 0.0
  %vm2993 = vcmp.gt.f32.partialorder %v2867, 0.0
  %vm2994 = vcmp.gt.f32.partialorder %v2868, 0.0
  %vm2995 = vcmp.gt.f32.partialorder %v2869, 0.0
  %vm2996 = vcmp.gt.f32.partialorder %v2870, 0.0
  %vm2997 = vcmp.gt.f32.partialorder %v2871, 0.0
  %vm2998 = vcmp.gt.f32.partialorder %v2872, 0.0
  %vm2999 = vcmp.gt.f32.partialorder %v2873, 0.0
  %vm3000 = vcmp.gt.f32.partialorder %v2874, 0.0
  %vm3001 = vcmp.gt.f32.partialorder %v2875, 0.0
  %vm3002 = vcmp.gt.f32.partialorder %v2876, 0.0
  %vm3003 = vcmp.gt.f32.partialorder %v2877, 0.0
  %vm3004 = vcmp.gt.f32.partialorder %v2878, 0.0
  %vm3005 = vcmp.gt.f32.partialorder %v2879, 0.0
  %vm3006 = vcmp.gt.f32.partialorder %v2880, 0.0
  %vm3007 = vcmp.gt.f32.partialorder %v2881, 0.0
  %vm3008 = vcmp.gt.f32.partialorder %v2882, 0.0
  %vm3009 = vcmp.gt.f32.partialorder %v2883, 0.0
  %vm3010 = vcmp.gt.f32.partialorder %v2884, 0.0
  %vm3011 = vcmp.gt.f32.partialorder %v2885, 0.0
  %vm3012 = vcmp.gt.f32.partialorder %v2886, 0.0
  %vm3013 = vcmp.gt.f32.partialorder %v2887, 0.0
  %vm3014 = vcmp.gt.f32.partialorder %v2888, 0.0
  %vm3015 = vcmp.gt.f32.partialorder %v2889, 0.0
  %vm3016 = vcmp.gt.f32.partialorder %v2890, 0.0
  %vm3017 = vcmp.gt.f32.partialorder %v2891, 0.0
  %vm3018 = vcmp.gt.f32.partialorder %v2892, 0.0
  %vm3019 = vcmp.gt.f32.partialorder %v2893, 0.0
  %vm3020 = vcmp.gt.f32.partialorder %v2894, 0.0
  %vm3021 = vcmp.gt.f32.partialorder %v2895, 0.0
  %vm3022 = vcmp.gt.f32.partialorder %v2896, 0.0
  %vm3023 = vcmp.gt.f32.partialorder %v2897, 0.0
  %vm3024 = vcmp.gt.f32.partialorder %v2898, 0.0
  %vm3025 = vcmp.gt.f32.partialorder %v2899, 0.0
  %vm3026 = vcmp.gt.f32.partialorder %v2900, 0.0
  %vm3027 = vcmp.gt.f32.partialorder %v2901, 0.0
  %vm3028 = vcmp.gt.f32.partialorder %v2902, 0.0
  %vm3029 = vcmp.gt.f32.partialorder %v2903, 0.0
  %vm3030 = vcmp.gt.f32.partialorder %v2904, 0.0
  %vm3031 = vcmp.gt.f32.partialorder %v2905, 0.0
  %vm3032 = vcmp.gt.f32.partialorder %v2906, 0.0
  %vm3033 = vcmp.gt.f32.partialorder %v2907, 0.0
  %vm3034 = vcmp.gt.f32.partialorder %v2908, 0.0
  %vm3035 = vcmp.gt.f32.partialorder %v2909, 0.0
  %vm3036 = vcmp.gt.f32.partialorder %v2910, 0.0
  %vm3037 = vcmp.gt.f32.partialorder %v2911, 0.0
  %vm3038 = vcmp.gt.f32.partialorder %v2912, 0.0
  %vm3039 = vcmp.gt.f32.partialorder %v2913, 0.0
  %vm3040 = vcmp.gt.f32.partialorder %v2914, 0.0
  %vm3041 = vcmp.gt.f32.partialorder %v2915, 0.0
  %vm3042 = vcmp.gt.f32.partialorder %v2916, 0.0
  %vm3043 = vcmp.gt.f32.partialorder %v2917, 0.0
  %vm3044 = vcmp.gt.f32.partialorder %v2918, 0.0
  %vm3045 = vcmp.gt.f32.partialorder %v2919, 0.0
  %vm3046 = vcmp.gt.f32.partialorder %v2920, 0.0
  %vm3047 = vcmp.gt.f32.partialorder %v2921, 0.0
  %vm3048 = vcmp.gt.f32.partialorder %v2922, 0.0
  %vm3049 = vcmp.gt.f32.partialorder %v2923, 0.0
  %vm3050 = vcmp.gt.f32.partialorder %v2924, 0.0
  %vm3051 = vcmp.gt.f32.partialorder %v2925, 0.0
  %vm3052 = vcmp.gt.f32.partialorder %v2926, 0.0
  %vm3053 = vcmp.gt.f32.partialorder %v2927, 0.0
  %vm3054 = vcmp.gt.f32.partialorder %v2928, 0.0
  %vm3055 = vcmp.gt.f32.partialorder %v2929, 0.0
  %vm3056 = vcmp.gt.f32.partialorder %v2930, 0.0
  %vm3057 = vcmp.gt.f32.partialorder %v2931, 0.0
  %vm3058 = vcmp.gt.f32.partialorder %v2932, 0.0
  %vm3059 = vcmp.gt.f32.partialorder %v2933, 0.0
  %vm3060 = vcmp.gt.f32.partialorder %v2934, 0.0
  %vm3061 = vcmp.gt.f32.partialorder %v2935, 0.0
  %vm3062 = vcmp.gt.f32.partialorder %v2936, 0.0
  %vm3063 = vcmp.gt.f32.partialorder %v2937, 0.0
  %vm3064 = vcmp.gt.f32.partialorder %v2938, 0.0
  %vm3065 = vcmp.gt.f32.partialorder %v2939, 0.0
  %vm3066 = vcmp.gt.f32.partialorder %v2940, 0.0
  %vm3067 = vcmp.gt.f32.partialorder %v2941, 0.0
  %vm3068 = vcmp.gt.f32.partialorder %v2942, 0.0
  %vm3069 = vcmp.gt.f32.partialorder %v2943, 0.0
  %vm3070 = vcmp.gt.f32.partialorder %v2944, 0.0
  %vm3071 = vcmp.gt.f32.partialorder %v2945, 0.0
  %v3072 = vstv %s2946
  %v3073 = vmul.f32 %v3072, %v2821
  %v3074 = vmul.f32 %v3072, %v2822
  %v3075 = vmul.f32 %v3072, %v2823
  %v3076 = vmul.f32 %v3072, %v2824
  %v3077 = vmul.f32 %v3072, %v2825
  %v3078 = vmul.f32 %v3072, %v2826
  %v3079 = vmul.f32 %v3072, %v2827
  %v3080 = vmul.f32 %v3072, %v2828
  %v3081 = vmul.f32 %v3072, %v2829
  %v3082 = vmul.f32 %v3072, %v2830
  %v3083 = vmul.f32 %v3072, %v2831
  %v3084 = vmul.f32 %v3072, %v2832
  %v3085 = vmul.f32 %v3072, %v2833
  %v3086 = vmul.f32 %v3072, %v2834
  %v3087 = vmul.f32 %v3072, %v2835
  %v3088 = vmul.f32 %v3072, %v2836
  %v3089 = vmul.f32 %v3072, %v2837
  %v3090 = vmul.f32 %v3072, %v2838
  %v3091 = vmul.f32 %v3072, %v2839
  %v3092 = vmul.f32 %v3072, %v2840
  %v3093 = vmul.f32 %v3072, %v2841
  %v3094 = vmul.f32 %v3072, %v2842
  %v3095 = vmul.f32 %v3072, %v2843
  %v3096 = vmul.f32 %v3072, %v2844
  %v3097 = vmul.f32 %v3072, %v2845
  %v3098 = vmul.f32 %v3072, %v2846
  %v3099 = vmul.f32 %v3072, %v2847
  %v3100 = vmul.f32 %v3072, %v2848
  %v3101 = vmul.f32 %v3072, %v2849
  %v3102 = vmul.f32 %v3072, %v2850
  %v3103 = vmul.f32 %v3072, %v2851
  %v3104 = vmul.f32 %v3072, %v2852
  %v3105 = vmul.f32 %v3072, %v2853
  %v3106 = vmul.f32 %v3072, %v2854
  %v3107 = vmul.f32 %v3072, %v2855
  %v3108 = vmul.f32 %v3072, %v2856
  %v3109 = vmul.f32 %v3072, %v2857
  %v3110 = vmul.f32 %v3072, %v2858
  %v3111 = vmul.f32 %v3072, %v2859
  %v3112 = vmul.f32 %v3072, %v2860
  %v3113 = vmul.f32 %v3072, %v2861
  %v3114 = vmul.f32 %v3072, %v2862
  %v3115 = vmul.f32 %v3072, %v2863
  %v3116 = vmul.f32 %v3072, %v2864
  %v3117 = vmul.f32 %v3072, %v2865
  %v3118 = vmul.f32 %v3072, %v2866
  %v3119 = vmul.f32 %v3072, %v2867
  %v3120 = vmul.f32 %v3072, %v2868
  %v3121 = vmul.f32 %v3072, %v2869
  %v3122 = vmul.f32 %v3072, %v2870
  %v3123 = vmul.f32 %v3072, %v2871
  %v3124 = vmul.f32 %v3072, %v2872
  %v3125 = vmul.f32 %v3072, %v2873
  %v3126 = vmul.f32 %v3072, %v2874
  %v3127 = vmul.f32 %v3072, %v2875
  %v3128 = vmul.f32 %v3072, %v2876
  %v3129 = vmul.f32 %v3072, %v2877
  %v3130 = vmul.f32 %v3072, %v2878
  %v3131 = vmul.f32 %v3072, %v2879
  %v3132 = vmul.f32 %v3072, %v2880
  %v3133 = vmul.f32 %v3072, %v2881
  %v3134 = vmul.f32 %v3072, %v2882
  %v3135 = vmul.f32 %v3072, %v2883
  %v3136 = vmul.f32 %v3072, %v2884
  %v3137 = vmul.f32 %v3072, %v2885
  %v3138 = vmul.f32 %v3072, %v2886
  %v3139 = vmul.f32 %v3072, %v2887
  %v3140 = vmul.f32 %v3072, %v2888
  %v3141 = vmul.f32 %v3072, %v2889
  %v3142 = vmul.f32 %v3072, %v2890
  %v3143 = vmul.f32 %v3072, %v2891
  %v3144 = vmul.f32 %v3072, %v2892
  %v3145 = vmul.f32 %v3072, %v2893
  %v3146 = vmul.f32 %v3072, %v2894
  %v3147 = vmul.f32 %v3072, %v2895
  %v3148 = vmul.f32 %v3072, %v2896
  %v3149 = vmul.f32 %v3072, %v2897
  %v3150 = vmul.f32 %v3072, %v2898
  %v3151 = vmul.f32 %v3072, %v2899
  %v3152 = vmul.f32 %v3072, %v2900
  %v3153 = vmul.f32 %v3072, %v2901
  %v3154 = vmul.f32 %v3072, %v2902
  %v3155 = vmul.f32 %v3072, %v2903
  %v3156 = vmul.f32 %v3072, %v2904
  %v3157 = vmul.f32 %v3072, %v2905
  %v3158 = vmul.f32 %v3072, %v2906
  %v3159 = vmul.f32 %v3072, %v2907
  %v3160 = vmul.f32 %v3072, %v2908
  %v3161 = vmul.f32 %v3072, %v2909
  %v3162 = vmul.f32 %v3072, %v2910
  %v3163 = vmul.f32 %v3072, %v2911
  %v3164 = vmul.f32 %v3072, %v2912
  %v3165 = vmul.f32 %v3072, %v2913
  %v3166 = vmul.f32 %v3072, %v2914
  %v3167 = vmul.f32 %v3072, %v2915
  %v3168 = vmul.f32 %v3072, %v2916
  %v3169 = vmul.f32 %v3072, %v2917
  %v3170 = vmul.f32 %v3072, %v2918
  %v3171 = vmul.f32 %v3072, %v2919
  %v3172 = vmul.f32 %v3072, %v2920
  %v3173 = vmul.f32 %v3072, %v2921
  %v3174 = vmul.f32 %v3072, %v2922
  %v3175 = vmul.f32 %v3072, %v2923
  %v3176 = vmul.f32 %v3072, %v2924
  %v3177 = vmul.f32 %v3072, %v2925
  %v3178 = vmul.f32 %v3072, %v2926
  %v3179 = vmul.f32 %v3072, %v2927
  %v3180 = vmul.f32 %v3072, %v2928
  %v3181 = vmul.f32 %v3072, %v2929
  %v3182 = vmul.f32 %v3072, %v2930
  %v3183 = vmul.f32 %v3072, %v2931
  %v3184 = vmul.f32 %v3072, %v2932
  %v3185 = vmul.f32 %v3072, %v2933
  %v3186 = vmul.f32 %v3072, %v2934
  %v3187 = vmul.f32 %v3072, %v2935
  %v3188 = vmul.f32 %v3072, %v2936
  %v3189 = vmul.f32 %v3072, %v2937
  %v3190 = vmul.f32 %v3072, %v2938
  %v3191 = vmul.f32 %v3072, %v2939
  %v3192 = vmul.f32 %v3072, %v2940
  %v3193 = vmul.f32 %v3072, %v2941
  %v3194 = vmul.f32 %v3072, %v2942
  %v3195 = vmul.f32 %v3072, %v2943
  %v3196 = vmul.f32 %v3072, %v2944
  %v3197 = vmul.f32 %v3072, %v2945
  %v3198 = vsel %vm2947, %v2821, %v3073
  %v3199 = vsel %vm2948, %v2822, %v3074
  %v3200 = vsel %vm2949, %v2823, %v3075
  %v3201 = vsel %vm2950, %v2824, %v3076
  %v3202 = vsel %vm2951, %v2825, %v3077
  %v3203 = vsel %vm2952, %v2826, %v3078
  %v3204 = vsel %vm2953, %v2827, %v3079
  %v3205 = vsel %vm2954, %v2828, %v3080
  %v3206 = vsel %vm2955, %v2829, %v3081
  %v3207 = vsel %vm2956, %v2830, %v3082
  %v3208 = vsel %vm2957, %v2831, %v3083
  %v3209 = vsel %vm2958, %v2832, %v3084
  %v3210 = vsel %vm2959, %v2833, %v3085
  %v3211 = vsel %vm2960, %v2834, %v3086
  %v3212 = vsel %vm2961, %v2835, %v3087
  %v3213 = vsel %vm2962, %v2836, %v3088
  %v3214 = vsel %vm2963, %v2837, %v3089
  %v3215 = vsel %vm2964, %v2838, %v3090
  %v3216 = vsel %vm2965, %v2839, %v3091
  %v3217 = vsel %vm2966, %v2840, %v3092
  %v3218 = vsel %vm2967, %v2841, %v3093
  %v3219 = vsel %vm2968, %v2842, %v3094
  %v3220 = vsel %vm2969, %v2843, %v3095
  %v3221 = vsel %vm2970, %v2844, %v3096
  %v3222 = vsel %vm2971, %v2845, %v3097
  %v3223 = vsel %vm2972, %v2846, %v3098
  %v3224 = vsel %vm2973, %v2847, %v3099
  %v3225 = vsel %vm2974, %v2848, %v3100
  %v3226 = vsel %vm2975, %v2849, %v3101
  %v3227 = vsel %vm2976, %v2850, %v3102
  %v3228 = vsel %vm2977, %v2851, %v3103
  %v3229 = vsel %vm2978, %v2852, %v3104
  %v3230 = vsel %vm2979, %v2853, %v3105
  %v3231 = vsel %vm2980, %v2854, %v3106
  %v3232 = vsel %vm2981, %v2855, %v3107
  %v3233 = vsel %vm2982, %v2856, %v3108
  %v3234 = vsel %vm2983, %v2857, %v3109
  %v3235 = vsel %vm2984, %v2858, %v3110
  %v3236 = vsel %vm2985, %v2859, %v3111
  %v3237 = vsel %vm2986, %v2860, %v3112
  %v3238 = vsel %vm2987, %v2861, %v3113
  %v3239 = vsel %vm2988, %v2862, %v3114
  %v3240 = vsel %vm2989, %v2863, %v3115
  %v3241 = vsel %vm2990, %v2864, %v3116
  %v3242 = vsel %vm2991, %v2865, %v3117
  %v3243 = vsel %vm2992, %v2866, %v3118
  %v3244 = vsel %vm2993, %v2867, %v3119
  %v3245 = vsel %vm2994, %v2868, %v3120
  %v3246 = vsel %vm2995, %v2869, %v3121
  %v3247 = vsel %vm2996, %v2870, %v3122
  %v3248 = vsel %vm2997, %v2871, %v3123
  %v3249 = vsel %vm2998, %v2872, %v3124
  %v3250 = vsel %vm2999, %v2873, %v3125
  %v3251 = vsel %vm3000, %v2874, %v3126
  %v3252 = vsel %vm3001, %v2875, %v3127
  %v3253 = vsel %vm3002, %v2876, %v3128
  %v3254 = vsel %vm3003, %v2877, %v3129
  %v3255 = vsel %vm3004, %v2878, %v3130
  %v3256 = vsel %vm3005, %v2879, %v3131
  %v3257 = vsel %vm3006, %v2880, %v3132
  %v3258 = vsel %vm3007, %v2881, %v3133
  %v3259 = vsel %vm3008, %v2882, %v3134
  %v3260 = vsel %vm3009, %v2883, %v3135
  %v3261 = vsel %vm3010, %v2884, %v3136
  %v3262 = vsel %vm3011, %v2885, %v3137
  %v3263 = vsel %vm3012, %v2886, %v3138
  %v3264 = vsel %vm3013, %v2887, %v3139
  %v3265 = vsel %vm3014, %v2888, %v3140
  %v3266 = vsel %vm3015, %v2889, %v3141
  %v3267 = vsel %vm3016, %v2890, %v3142
  %v3268 = vsel %vm3017, %v2891, %v3143
  %v3269 = vsel %vm3018, %v2892, %v3144
  %v3270 = vsel %vm3019, %v2893, %v3145
  %v3271 = vsel %vm3020, %v2894, %v3146
  %v3272 = vsel %vm3021, %v2895, %v3147
  %v3273 = vsel %vm3022, %v2896, %v3148
  %v3274 = vsel %vm3023, %v2897, %v3149
  %v3275 = vsel %vm3024, %v2898, %v3150
  %v3276 = vsel %vm3025, %v2899, %v3151
  %v3277 = vsel %vm3026, %v2900, %v3152
  %v3278 = vsel %vm3027, %v2901, %v3153
  %v3279 = vsel %vm3028, %v2902, %v3154
  %v3280 = vsel %vm3029, %v2903, %v3155
  %v3281 = vsel %vm3030, %v2904, %v3156
  %v3282 = vsel %vm3031, %v2905, %v3157
  %v3283 = vsel %vm3032, %v2906, %v3158
  %v3284 = vsel %vm3033, %v2907, %v3159
  %v3285 = vsel %vm3034, %v2908, %v3160
  %v3286 = vsel %vm3035, %v2909, %v3161
  %v3287 = vsel %vm3036, %v2910, %v3162
  %v3288 = vsel %vm3037, %v2911, %v3163
  %v3289 = vsel %vm3038, %v2912, %v3164
  %v3290 = vsel %vm3039, %v2913, %v3165
  %v3291 = vsel %vm3040, %v2914, %v3166
  %v3292 = vsel %vm3041, %v2915, %v3167
  %v3293 = vsel %vm3042, %v2916, %v3168
  %v3294 = vsel %vm3043, %v2917, %v3169
  %v3295 = vsel %vm3044, %v2918, %v3170
  %v3296 = vsel %vm3045, %v2919, %v3171
  %v3297 = vsel %vm3046, %v2920, %v3172
  %v3298 = vsel %vm3047, %v2921, %v3173
  %v3299 = vsel %vm3048, %v2922, %v3174
  %v3300 = vsel %vm3049, %v2923, %v3175
  %v3301 = vsel %vm3050, %v2924, %v3176
  %v3302 = vsel %vm3051, %v2925, %v3177
  %v3303 = vsel %vm3052, %v2926, %v3178
  %v3304 = vsel %vm3053, %v2927, %v3179
  %v3305 = vsel %vm3054, %v2928, %v3180
  %v3306 = vsel %vm3055, %v2929, %v3181
  %v3307 = vsel %vm3056, %v2930, %v3182
  %v3308 = vsel %vm3057, %v2931, %v3183
  %v3309 = vsel %vm3058, %v2932, %v3184
  %v3310 = vsel %vm3059, %v2933, %v3185
  %v3311 = vsel %vm3060, %v2934, %v3186
  %v3312 = vsel %vm3061, %v2935, %v3187
  %v3313 = vsel %vm3062, %v2936, %v3188
  %v3314 = vsel %vm3063, %v2937, %v3189
  %v3315 = vsel %vm3064, %v2938, %v3190
  %v3316 = vsel %vm3065, %v2939, %v3191
  %v3317 = vsel %vm3066, %v2940, %v3192
  %v3318 = vsel %vm3067, %v2941, %v3193
  %v3319 = vsel %vm3068, %v2942, %v3194
  %v3320 = vsel %vm3069, %v2943, %v3195
  %v3321 = vsel %vm3070, %v2944, %v3196
  %v3322 = vsel %vm3071, %v2945, %v3197
  %v3323 = vpack.c.bf16 %v3199, %v3198
  %v3324 = vpack.c.bf16 %v3201, %v3200
  %v3325 = vpack.c.bf16 %v3203, %v3202
  %v3326 = vpack.c.bf16 %v3205, %v3204
  %v3327 = vpack.c.bf16 %v3207, %v3206
  %v3328 = vpack.c.bf16 %v3209, %v3208
  %v3329 = vpack.c.bf16 %v3211, %v3210
  %v3330 = vpack.c.bf16 %v3213, %v3212
  %v3331 = vpack.c.bf16 %v3215, %v3214
  %v3332 = vpack.c.bf16 %v3217, %v3216
  %v3333 = vpack.c.bf16 %v3219, %v3218
  %v3334 = vpack.c.bf16 %v3221, %v3220
  %v3335 = vpack.c.bf16 %v3223, %v3222
  %v3336 = vpack.c.bf16 %v3225, %v3224
  %v3337 = vpack.c.bf16 %v3227, %v3226
  %v3338 = vpack.c.bf16 %v3229, %v3228
  %v3339 = vpack.c.bf16 %v3231, %v3230
  %v3340 = vpack.c.bf16 %v3233, %v3232
  %v3341 = vpack.c.bf16 %v3235, %v3234
  %v3342 = vpack.c.bf16 %v3237, %v3236
  %v3343 = vpack.c.bf16 %v3239, %v3238
  %v3344 = vpack.c.bf16 %v3241, %v3240
  %v3345 = vpack.c.bf16 %v3243, %v3242
  %v3346 = vpack.c.bf16 %v3245, %v3244
  %v3347 = vpack.c.bf16 %v3247, %v3246
  %v3348 = vpack.c.bf16 %v3249, %v3248
  %v3349 = vpack.c.bf16 %v3251, %v3250
  %v3350 = vpack.c.bf16 %v3253, %v3252
  %v3351 = vpack.c.bf16 %v3255, %v3254
  %v3352 = vpack.c.bf16 %v3257, %v3256
  %v3353 = vpack.c.bf16 %v3259, %v3258
  %v3354 = vpack.c.bf16 %v3261, %v3260
  %v3355 = vpack.c.bf16 %v3263, %v3262
  %v3356 = vpack.c.bf16 %v3265, %v3264
  %v3357 = vpack.c.bf16 %v3267, %v3266
  %v3358 = vpack.c.bf16 %v3269, %v3268
  %v3359 = vpack.c.bf16 %v3271, %v3270
  %v3360 = vpack.c.bf16 %v3273, %v3272
  %v3361 = vpack.c.bf16 %v3275, %v3274
  %v3362 = vpack.c.bf16 %v3277, %v3276
  %v3363 = vpack.c.bf16 %v3279, %v3278
  %v3364 = vpack.c.bf16 %v3281, %v3280
  %v3365 = vpack.c.bf16 %v3283, %v3282
  %v3366 = vpack.c.bf16 %v3285, %v3284
  %v3367 = vpack.c.bf16 %v3287, %v3286
  %v3368 = vpack.c.bf16 %v3289, %v3288
  %v3369 = vpack.c.bf16 %v3291, %v3290
  %v3370 = vpack.c.bf16 %v3293, %v3292
  %v3371 = vpack.c.bf16 %v3295, %v3294
  %v3372 = vpack.c.bf16 %v3297, %v3296
  %v3373 = vpack.c.bf16 %v3299, %v3298
  %v3374 = vpack.c.bf16 %v3301, %v3300
  %v3375 = vpack.c.bf16 %v3303, %v3302
  %v3376 = vpack.c.bf16 %v3305, %v3304
  %v3377 = vpack.c.bf16 %v3307, %v3306
  %v3378 = vpack.c.bf16 %v3309, %v3308
  %v3379 = vpack.c.bf16 %v3311, %v3310
  %v3380 = vpack.c.bf16 %v3313, %v3312
  %v3381 = vpack.c.bf16 %v3315, %v3314
  %v3382 = vpack.c.bf16 %v3317, %v3316
  %v3383 = vpack.c.bf16 %v3319, %v3318
  %v3384 = vpack.c.bf16 %v3321, %v3320
  %v3385 = vpack.c.bf16 %v3322, %v3322
  %v3386 = vld [vmem:[%s7] sm:$0xf]
  %v3387 = vld [vmem:[%s7 + $0x4] sm:$0xf]
  %v3388 = vld [vmem:[%s7 + $0x8] sm:$0xf]
  %v3389 = vld [vmem:[%s7 + $0xc] sm:$0xf]
  %v3390 = vld [vmem:[%s10] sm:$0xff]
  %v3391 = vld [vmem:[%s10 + $0x8] sm:$0xff]
  %v3392 = vld [vmem:[%s10 + $0x10] sm:$0xff]
  %v3393 = vld [vmem:[%s10 + $0x18] sm:$0xff]
  %v3394 = vld [vmem:[%s10 + $0x20] sm:$0xff]
  %v3395 = vld [vmem:[%s10 + $0x28] sm:$0xff]
  %v3396 = vld [vmem:[%s10 + $0x30] sm:$0xff]
  %v3397 = vld [vmem:[%s10 + $0x38] sm:$0xff]
  %v3398 = vld [vmem:[%s10 + $0x40] sm:$0xff]
  %v3399 = vld [vmem:[%s10 + $0x48] sm:$0xff]
  %v3400 = vld [vmem:[%s10 + $0x50] sm:$0xff]
  %v3401 = vld [vmem:[%s10 + $0x58] sm:$0xff]
  %v3402 = vld [vmem:[%s10 + $0x60] sm:$0xff]
  %v3403 = vld [vmem:[%s10 + $0x68] sm:$0xff]
  %v3404 = vld [vmem:[%s10 + $0x70] sm:$0xff]
  %v3405 = vld [vmem:[%s10 + $0x78] sm:$0xff]
  %v3406 = vld [vmem:[%s10 + $0x80] sm:$0xff]
  %v3407 = vld [vmem:[%s10 + $0x88] sm:$0xff]
  %v3408 = vld [vmem:[%s10 + $0x90] sm:$0xff]
  %v3409 = vld [vmem:[%s10 + $0x98] sm:$0xff]
  %v3410 = vld [vmem:[%s10 + $0xa0] sm:$0xff]
  %v3411 = vld [vmem:[%s10 + $0xa8] sm:$0xff]
  %v3412 = vld [vmem:[%s10 + $0xb0] sm:$0xff]
  %v3413 = vld [vmem:[%s10 + $0xb8] sm:$0xff]
  %v3414 = vld [vmem:[%s10 + $0xc0] sm:$0xff]
  %v3415 = vld [vmem:[%s10 + $0xc8] sm:$0xff]
  %v3416 = vld [vmem:[%s10 + $0xd0] sm:$0xff]
  %v3417 = vld [vmem:[%s10 + $0xd8] sm:$0xff]
  %v3418 = vld [vmem:[%s10 + $0xe0] sm:$0xff]
  %v3419 = vld [vmem:[%s10 + $0xe8] sm:$0xff]
  %v3420 = vld [vmem:[%s10 + $0xf0] sm:$0xff]
  %v3421 = vld [vmem:[%s10 + $0xf8] sm:$0xff]
  %v3422 = vld [vmem:[%s10 + $0x100] sm:$0xff]
  %v3423 = vld [vmem:[%s10 + $0x108] sm:$0xff]
  %v3424 = vld [vmem:[%s10 + $0x110] sm:$0xff]
  %v3425 = vld [vmem:[%s10 + $0x118] sm:$0xff]
  %v3426 = vld [vmem:[%s10 + $0x120] sm:$0xff]
  %v3427 = vld [vmem:[%s10 + $0x128] sm:$0xff]
  %v3428 = vld [vmem:[%s10 + $0x130] sm:$0xff]
  %v3429 = vld [vmem:[%s10 + $0x138] sm:$0xff]
  %v3430 = vld [vmem:[%s10 + $0x140] sm:$0xff]
  %v3431 = vld [vmem:[%s10 + $0x148] sm:$0xff]
  %v3432 = vld [vmem:[%s10 + $0x150] sm:$0xff]
  %v3433 = vld [vmem:[%s10 + $0x158] sm:$0xff]
  %v3434 = vld [vmem:[%s10 + $0x160] sm:$0xff]
  %v3435 = vld [vmem:[%s10 + $0x168] sm:$0xff]
  %v3436 = vld [vmem:[%s10 + $0x170] sm:$0xff]
  %v3437 = vld [vmem:[%s10 + $0x178] sm:$0xff]
  %v3438 = vld [vmem:[%s10 + $0x180] sm:$0xff]
  %v3439 = vld [vmem:[%s10 + $0x188] sm:$0xff]
  %v3440 = vld [vmem:[%s10 + $0x190] sm:$0xff]
  %v3441 = vld [vmem:[%s10 + $0x198] sm:$0xff]
  %v3442 = vld [vmem:[%s10 + $0x1a0] sm:$0xff]
  %v3443 = vld [vmem:[%s10 + $0x1a8] sm:$0xff]
  %v3444 = vld [vmem:[%s10 + $0x1b0] sm:$0xff]
  %v3445 = vld [vmem:[%s10 + $0x1b8] sm:$0xff]
  %v3446 = vld [vmem:[%s10 + $0x1c0] sm:$0xff]
  %v3447 = vld [vmem:[%s10 + $0x1c8] sm:$0xff]
  %v3448 = vld [vmem:[%s10 + $0x1d0] sm:$0xff]
  %v3449 = vld [vmem:[%s10 + $0x1d8] sm:$0xff]
  %v3450 = vld [vmem:[%s10 + $0x1e0] sm:$0xff]
  %v3451 = vld [vmem:[%s10 + $0x1e8] sm:$0xff]
  %v3452 = vld [vmem:[%s10 + $0x1f0] sm:$0xff]
  %v3453 = vld [vmem:[%s10 + $0x1f8] sm:$0xff]
  %v3454 = vld [vmem:[%s10 + $0x200] sm:$0xff]
  %v3455 = vld [vmem:[%s10 + $0x208] sm:$0xff]
  %v3456 = vld [vmem:[%s10 + $0x210] sm:$0xff]
  %v3457 = vld [vmem:[%s10 + $0x218] sm:$0xff]
  %v3458 = vld [vmem:[%s10 + $0x220] sm:$0xff]
  %v3459 = vld [vmem:[%s10 + $0x228] sm:$0xff]
  %v3460 = vld [vmem:[%s10 + $0x230] sm:$0xff]
  %v3461 = vld [vmem:[%s10 + $0x238] sm:$0xff]
  %v3462 = vld [vmem:[%s10 + $0x240] sm:$0xff]
  %v3463 = vld [vmem:[%s10 + $0x248] sm:$0xff]
  %v3464 = vld [vmem:[%s10 + $0x250] sm:$0xff]
  %v3465 = vld [vmem:[%s10 + $0x258] sm:$0xff]
  %v3466 = vld [vmem:[%s10 + $0x260] sm:$0xff]
  %v3467 = vld [vmem:[%s10 + $0x268] sm:$0xff]
  %v3468 = vld [vmem:[%s10 + $0x270] sm:$0xff]
  %v3469 = vld [vmem:[%s10 + $0x278] sm:$0xff]
  %v3470 = vld [vmem:[%s10 + $0x280] sm:$0xff]
  %v3471 = vld [vmem:[%s10 + $0x288] sm:$0xff]
  %v3472 = vld [vmem:[%s10 + $0x290] sm:$0xff]
  %v3473 = vld [vmem:[%s10 + $0x298] sm:$0xff]
  %v3474 = vld [vmem:[%s10 + $0x2a0] sm:$0xff]
  %v3475 = vld [vmem:[%s10 + $0x2a8] sm:$0xff]
  %v3476 = vld [vmem:[%s10 + $0x2b0] sm:$0xff]
  %v3477 = vld [vmem:[%s10 + $0x2b8] sm:$0xff]
  %v3478 = vld [vmem:[%s10 + $0x2c0] sm:$0xff]
  %v3479 = vld [vmem:[%s10 + $0x2c8] sm:$0xff]
  %v3480 = vld [vmem:[%s10 + $0x2d0] sm:$0xff]
  %v3481 = vld [vmem:[%s10 + $0x2d8] sm:$0xff]
  %v3482 = vld [vmem:[%s10 + $0x2e0] sm:$0xff]
  %v3483 = vld [vmem:[%s10 + $0x2e8] sm:$0xff]
  %v3484 = vld [vmem:[%s10 + $0x2f0] sm:$0xff]
  %v3485 = vld [vmem:[%s10 + $0x2f8] sm:$0xff]
  %v3486 = vld [vmem:[%s10 + $0x300] sm:$0xff]
  %v3487 = vld [vmem:[%s10 + $0x308] sm:$0xff]
  %v3488 = vld [vmem:[%s10 + $0x310] sm:$0xff]
  %v3489 = vld [vmem:[%s10 + $0x318] sm:$0xff]
  %v3490 = vld [vmem:[%s10 + $0x320] sm:$0xff]
  %v3491 = vld [vmem:[%s10 + $0x328] sm:$0xff]
  %v3492 = vld [vmem:[%s10 + $0x330] sm:$0xff]
  %v3493 = vld [vmem:[%s10 + $0x338] sm:$0xff]
  %v3494 = vld [vmem:[%s10 + $0x340] sm:$0xff]
  %v3495 = vld [vmem:[%s10 + $0x348] sm:$0xff]
  %v3496 = vld [vmem:[%s10 + $0x350] sm:$0xff]
  %v3497 = vld [vmem:[%s10 + $0x358] sm:$0xff]
  %v3498 = vld [vmem:[%s10 + $0x360] sm:$0xff]
  %v3499 = vld [vmem:[%s10 + $0x368] sm:$0xff]
  %v3500 = vld [vmem:[%s10 + $0x370] sm:$0xff]
  %v3501 = vld [vmem:[%s10 + $0x378] sm:$0xff]
  %v3502 = vld [vmem:[%s10 + $0x380] sm:$0xff]
  %v3503 = vld [vmem:[%s10 + $0x388] sm:$0xff]
  %v3504 = vld [vmem:[%s10 + $0x390] sm:$0xff]
  %v3505 = vld [vmem:[%s10 + $0x398] sm:$0xff]
  %v3506 = vld [vmem:[%s10 + $0x3a0] sm:$0xff]
  %v3507 = vld [vmem:[%s10 + $0x3a8] sm:$0xff]
  %v3508 = vld [vmem:[%s10 + $0x3b0] sm:$0xff]
  %v3509 = vld [vmem:[%s10 + $0x3b8] sm:$0xff]
  %v3510 = vld [vmem:[%s10 + $0x3c0] sm:$0xff]
  %v3511 = vld [vmem:[%s10 + $0x3c8] sm:$0xff]
  %v3512 = vld [vmem:[%s10 + $0x3d0] sm:$0xff]
  %v3513 = vld [vmem:[%s10 + $0x3d8] sm:$0xff]
  %v3514 = vld [vmem:[%s10 + $0x3e0] sm:$0xff]
  %v3515 = vpack.c.bf16 %v3391, %v3390
  %v3516 = vpack.c.bf16 %v3393, %v3392
  %v3517 = vpack.c.bf16 %v3395, %v3394
  %v3518 = vpack.c.bf16 %v3397, %v3396
  %v3519 = vpack.c.bf16 %v3399, %v3398
  %v3520 = vpack.c.bf16 %v3401, %v3400
  %v3521 = vpack.c.bf16 %v3403, %v3402
  %v3522 = vpack.c.bf16 %v3405, %v3404
  %v3523 = vpack.c.bf16 %v3407, %v3406
  %v3524 = vpack.c.bf16 %v3409, %v3408
  %v3525 = vpack.c.bf16 %v3411, %v3410
  %v3526 = vpack.c.bf16 %v3413, %v3412
  %v3527 = vpack.c.bf16 %v3415, %v3414
  %v3528 = vpack.c.bf16 %v3417, %v3416
  %v3529 = vpack.c.bf16 %v3419, %v3418
  %v3530 = vpack.c.bf16 %v3421, %v3420
  %v3531 = vpack.c.bf16 %v3423, %v3422
  %v3532 = vpack.c.bf16 %v3425, %v3424
  %v3533 = vpack.c.bf16 %v3427, %v3426
  %v3534 = vpack.c.bf16 %v3429, %v3428
  %v3535 = vpack.c.bf16 %v3431, %v3430
  %v3536 = vpack.c.bf16 %v3433, %v3432
  %v3537 = vpack.c.bf16 %v3435, %v3434
  %v3538 = vpack.c.bf16 %v3437, %v3436
  %v3539 = vpack.c.bf16 %v3439, %v3438
  %v3540 = vpack.c.bf16 %v3441, %v3440
  %v3541 = vpack.c.bf16 %v3443, %v3442
  %v3542 = vpack.c.bf16 %v3445, %v3444
  %v3543 = vpack.c.bf16 %v3447, %v3446
  %v3544 = vpack.c.bf16 %v3449, %v3448
  %v3545 = vpack.c.bf16 %v3451, %v3450
  %v3546 = vpack.c.bf16 %v3453, %v3452
  %v3547 = vpack.c.bf16 %v3455, %v3454
  %v3548 = vpack.c.bf16 %v3457, %v3456
  %v3549 = vpack.c.bf16 %v3459, %v3458
  %v3550 = vpack.c.bf16 %v3461, %v3460
  %v3551 = vpack.c.bf16 %v3463, %v3462
  %v3552 = vpack.c.bf16 %v3465, %v3464
  %v3553 = vpack.c.bf16 %v3467, %v3466
  %v3554 = vpack.c.bf16 %v3469, %v3468
  %v3555 = vpack.c.bf16 %v3471, %v3470
  %v3556 = vpack.c.bf16 %v3473, %v3472
  %v3557 = vpack.c.bf16 %v3475, %v3474
  %v3558 = vpack.c.bf16 %v3477, %v3476
  %v3559 = vpack.c.bf16 %v3479, %v3478
  %v3560 = vpack.c.bf16 %v3481, %v3480
  %v3561 = vpack.c.bf16 %v3483, %v3482
  %v3562 = vpack.c.bf16 %v3485, %v3484
  %v3563 = vpack.c.bf16 %v3487, %v3486
  %v3564 = vpack.c.bf16 %v3489, %v3488
  %v3565 = vpack.c.bf16 %v3491, %v3490
  %v3566 = vpack.c.bf16 %v3493, %v3492
  %v3567 = vpack.c.bf16 %v3495, %v3494
  %v3568 = vpack.c.bf16 %v3497, %v3496
  %v3569 = vpack.c.bf16 %v3499, %v3498
  %v3570 = vpack.c.bf16 %v3501, %v3500
  %v3571 = vpack.c.bf16 %v3503, %v3502
  %v3572 = vpack.c.bf16 %v3505, %v3504
  %v3573 = vpack.c.bf16 %v3507, %v3506
  %v3574 = vpack.c.bf16 %v3509, %v3508
  %v3575 = vpack.c.bf16 %v3511, %v3510
  %v3576 = vpack.c.bf16 %v3513, %v3512
  %v3577 = vpack.c.bf16 %v3514, %v3514
  %v3578 = vld [vmem:[%s8] sm:$0xf]
  %v3579 = vld [vmem:[%s8 + $0x4] sm:$0xf]
  %v3582 = vunpack.c.l.b16 %v3578
  %v3583 = vunpack.c.l.b16 %v3579
  %v3584 = vpack.c.b16 %v3583, %v3582
  %v3587 = vsel %vm2095, %v3515, 0
  %v3590 = vsel %vm2095, %v3516, 0
  %v3593 = vsel %vm2095, %v3517, 0
  %v3596 = vsel %vm2095, %v3518, 0
  %v3599 = vsel %vm2095, %v3519, 0
  %v3602 = vsel %vm2095, %v3520, 0
  %v3605 = vsel %vm2095, %v3521, 0
  %v3608 = vsel %vm2095, %v3522, 0
  %v3611 = vsel %vm2095, %v3523, 0
  %v3614 = vsel %vm2095, %v3524, 0
  %v3617 = vsel %vm2095, %v3525, 0
  %v3620 = vsel %vm2095, %v3526, 0
  %v3623 = vsel %vm2095, %v3527, 0
  %v3626 = vsel %vm2095, %v3528, 0
  %v3629 = vsel %vm2095, %v3529, 0
  %v3632 = vsel %vm2095, %v3530, 0
  %v3635 = vsel %vm2095, %v3531, 0
  %v3638 = vsel %vm2095, %v3532, 0
  %v3641 = vsel %vm2095, %v3533, 0
  %v3644 = vsel %vm2095, %v3534, 0
  %v3647 = vsel %vm2095, %v3535, 0
  %v3650 = vsel %vm2095, %v3536, 0
  %v3653 = vsel %vm2095, %v3537, 0
  %v3656 = vsel %vm2095, %v3538, 0
  %v3659 = vsel %vm2095, %v3539, 0
  %v3662 = vsel %vm2095, %v3540, 0
  %v3665 = vsel %vm2095, %v3541, 0
  %v3668 = vsel %vm2095, %v3542, 0
  %v3671 = vsel %vm2095, %v3543, 0
  %v3674 = vsel %vm2095, %v3544, 0
  %v3677 = vsel %vm2095, %v3545, 0
  %v3680 = vsel %vm2095, %v3546, 0
  %v3683 = vsel %vm2095, %v3547, 0
  %v3686 = vsel %vm2095, %v3548, 0
  %v3689 = vsel %vm2095, %v3549, 0
  %v3692 = vsel %vm2095, %v3550, 0
  %v3695 = vsel %vm2095, %v3551, 0
  %v3698 = vsel %vm2095, %v3552, 0
  %v3701 = vsel %vm2095, %v3553, 0
  %v3704 = vsel %vm2095, %v3554, 0
  %v3707 = vsel %vm2095, %v3555, 0
  %v3710 = vsel %vm2095, %v3556, 0
  %v3713 = vsel %vm2095, %v3557, 0
  %v3716 = vsel %vm2095, %v3558, 0
  %v3719 = vsel %vm2095, %v3559, 0
  %v3722 = vsel %vm2095, %v3560, 0
  %v3725 = vsel %vm2095, %v3561, 0
  %v3728 = vsel %vm2095, %v3562, 0
  %v3731 = vsel %vm2095, %v3563, 0
  %v3734 = vsel %vm2095, %v3564, 0
  %v3737 = vsel %vm2095, %v3565, 0
  %v3740 = vsel %vm2095, %v3566, 0
  %v3743 = vsel %vm2095, %v3567, 0
  %v3746 = vsel %vm2095, %v3568, 0
  %v3749 = vsel %vm2095, %v3569, 0
  %v3752 = vsel %vm2095, %v3570, 0
  %v3755 = vsel %vm2095, %v3571, 0
  %v3758 = vsel %vm2095, %v3572, 0
  %v3761 = vsel %vm2095, %v3573, 0
  %v3764 = vsel %vm2095, %v3574, 0
  %v3767 = vsel %vm2095, %v3575, 0
  %v3770 = vsel %vm2095, %v3576, 0
  %v3773 = vsel %vm2095, %v3577, 0
  %3775 = vmatprep.subr.bf16.mxu0 0
  %3776 = vmatpush1.bf16.msra.mxu0 %v3584
  %3777 = vmatprep.subr.bf16.mxu0 0
  %3778 = vmatpush1.bf16.msra.mxu0 0
  %3779 = vmatprep.subr.bf16.mxu0 0
  %3780 = vmatpush1.bf16.msra.mxu0 0
  %3781 = vmatprep.subr.bf16.mxu0 0
  %3782 = vmatpush1.bf16.msra.mxu0 0
  %3783 = vmatprep.subr.bf16.mxu0 0
  %3784 = vmatpush1.bf16.msra.mxu0 0
  %3785 = vmatprep.subr.bf16.mxu0 0
  %3786 = vmatpush1.bf16.msra.mxu0 0
  %3787 = vmatprep.subr.bf16.mxu0 0
  %3788 = vmatpush1.bf16.msra.mxu0 0
  %3789 = vmatprep.subr.bf16.mxu0 0
  %3790 = vmatpush1.bf16.msra.mxu0 0
  %3791 = vmatprep.subr.bf16.mxu0 0
  %3792 = vmatpush1.bf16.msra.mxu0 0
  %3793 = vmatprep.subr.bf16.mxu0 0
  %3794 = vmatpush1.bf16.msra.mxu0 0
  %3795 = vmatprep.subr.bf16.mxu0 0
  %3796 = vmatpush1.bf16.msra.mxu0 0
  %3797 = vmatprep.subr.bf16.mxu0 0
  %3798 = vmatpush1.bf16.msra.mxu0 0
  %3799 = vmatprep.subr.bf16.mxu0 0
  %3800 = vmatpush1.bf16.msra.mxu0 0
  %3801 = vmatprep.subr.bf16.mxu0 0
  %3802 = vmatpush1.bf16.msra.mxu0 0
  %3803 = vmatprep.subr.bf16.mxu0 0
  %3804 = vmatpush1.bf16.msra.mxu0 0
  %3805 = vmatprep.subr.bf16.mxu0 0
  %3806 = vmatpush1.bf16.msra.mxu0 0
  %3807 = vmatprep.mubr.bf16.mxu0 0
  %3808 = vmatmul.mubr.bf16.gmra.mrb[0].mxu0 %v3587
  %v3809 = vpop.f32.mrb[0].mxu0
  %v3810 = vadd.f32 0.0, %v3809
  %v3811 = vpop.f32.mrb[0].mxu0
  %v3812 = vpop.f32.mrb[0].mxu0
  %v3813 = vadd.f32 0.0, %v3812
  %v3814 = vpop.f32.mrb[0].mxu0
  %3815 = vmatprep.mubr.bf16.mxu0 0
  %3816 = vmatmul.mubr.bf16.gmra.mrb[0].mxu0 %v3590
  %v3817 = vpop.f32.mrb[0].mxu0
  %v3818 = vadd.f32 0.0, %v3817
  %v3819 = vpop.f32.mrb[0].mxu0
  %v3820 = vpop.f32.mrb[0].mxu0
  %v3821 = vadd.f32 0.0, %v3820
  %v3822 = vpop.f32.mrb[0].mxu0
  %3823 = vmatprep.mubr.bf16.mxu0 0
  %3824 = vmatmul.mubr.bf16.gmra.mrb[0].mxu0 %v3593
  %v3825 = vpop.f32.mrb[0].mxu0
  %v3826 = vadd.f32 0.0, %v3825
  %v3827 = vpop.f32.mrb[0].mxu0
  %v3828 = vpop.f32.mrb[0].mxu0
  %v3829 = vadd.f32 0.0, %v3828
  %v3830 = vpop.f32.mrb[0].mxu0
  %3831 = vmatprep.mubr.bf16.mxu0 0
  %3832 = vmatmul.mubr.bf16.gmra.mrb[0].mxu0 %v3596
  %v3833 = vpop.f32.mrb[0].mxu0
  %v3834 = vadd.f32 0.0, %v3833
  %v3835 = vpop.f32.mrb[0].mxu0
  %v3836 = vpop.f32.mrb[0].mxu0
  %v3837 = vadd.f32 0.0, %v3836
  %v3838 = vpop.f32.mrb[0].mxu0
  %3839 = vmatprep.mubr.bf16.mxu0 0
  %3840 = vmatmul.mubr.bf16.gmra.mrb[0].mxu0 %v3599
  %v3841 = vpop.f32.mrb[0].mxu0
  %v3842 = vadd.f32 0.0, %v3841
  %v3843 = vpop.f32.mrb[0].mxu0
  %v3844 = vpop.f32.mrb[0].mxu0
  %v3845 = vadd.f32 0.0, %v3844
  %v3846 = vpop.f32.mrb[0].mxu0
  %3847 = vmatprep.mubr.bf16.mxu0 0
  %3848 = vmatmul.mubr.bf16.gmra.mrb[0].mxu0 %v3602
  %v3849 = vpop.f32.mrb[0].mxu0
  %v3850 = vadd.f32 0.0, %v3849
  %v3851 = vpop.f32.mrb[0].mxu0
  %v3852 = vpop.f32.mrb[0].mxu0
  %v3853 = vadd.f32 0.0, %v3852
  %v3854 = vpop.f32.mrb[0].mxu0
  %3855 = vmatprep.mubr.bf16.mxu0 0
  %3856 = vmatmul.mubr.bf16.gmra.mrb[0].mxu0 %v3605
  %v3857 = vpop.f32.mrb[0].mxu0
  %v3858 = vadd.f32 0.0, %v3857
  %v3859 = vpop.f32.mrb[0].mxu0
  %v3860 = vpop.f32.mrb[0].mxu0
  %v3861 = vadd.f32 0.0, %v3860
  %v3862 = vpop.f32.mrb[0].mxu0
  %3863 = vmatprep.mubr.bf16.mxu0 0
  %3864 = vmatmul.mubr.bf16.gmra.mrb[0].mxu0 %v3608
  %v3865 = vpop.f32.mrb[0].mxu0
  %v3866 = vadd.f32 0.0, %v3865
  %v3867 = vpop.f32.mrb[0].mxu0
  %v3868 = vpop.f32.mrb[0].mxu0
  %v3869 = vadd.f32 0.0, %v3868
  %v3870 = vpop.f32.mrb[0].mxu0
  %3871 = vmatprep.mubr.bf16.mxu0 0
  %3872 = vmatmul.mubr.bf16.gmra.mrb[0].mxu0 %v3611
  %v3873 = vpop.f32.mrb[0].mxu0
  %v3874 = vadd.f32 0.0, %v3873
  %v3875 = vpop.f32.mrb[0].mxu0
  %v3876 = vpop.f32.mrb[0].mxu0
  %v3877 = vadd.f32 0.0, %v3876
  %v3878 = vpop.f32.mrb[0].mxu0
  %3879 = vmatprep.mubr.bf16.mxu0 0
  %3880 = vmatmul.mubr.bf16.gmra.mrb[0].mxu0 %v3614
  %v3881 = vpop.f32.mrb[0].mxu0
  %v3882 = vadd.f32 0.0, %v3881
  %v3883 = vpop.f32.mrb[0].mxu0
  %v3884 = vpop.f32.mrb[0].mxu0
  %v3885 = vadd.f32 0.0, %v3884
  %v3886 = vpop.f32.mrb[0].mxu0
  %3887 = vmatprep.mubr.bf16.mxu0 0
  %3888 = vmatmul.mubr.bf16.gmra.mrb[0].mxu0 %v3617
  %v3889 = vpop.f32.mrb[0].mxu0
  %v3890 = vadd.f32 0.0, %v3889
  %v3891 = vpop.f32.mrb[0].mxu0
  %v3892 = vpop.f32.mrb[0].mxu0
  %v3893 = vadd.f32 0.0, %v3892
  %v3894 = vpop.f32.mrb[0].mxu0
  %3895 = vmatprep.mubr.bf16.mxu0 0
  %3896 = vmatmul.mubr.bf16.gmra.mrb[0].mxu0 %v3620
  %v3897 = vpop.f32.mrb[0].mxu0
  %v3898 = vadd.f32 0.0, %v3897
  %v3899 = vpop.f32.mrb[0].mxu0
  %v3900 = vpop.f32.mrb[0].mxu0
  %v3901 = vadd.f32 0.0, %v3900
  %v3902 = vpop.f32.mrb[0].mxu0
  %3903 = vmatprep.mubr.bf16.mxu0 0
  %3904 = vmatmul.mubr.bf16.gmra.mrb[0].mxu0 %v3623
  %v3905 = vpop.f32.mrb[0].mxu0
  %v3906 = vadd.f32 0.0, %v3905
  %v3907 = vpop.f32.mrb[0].mxu0
  %v3908 = vpop.f32.mrb[0].mxu0
  %v3909 = vadd.f32 0.0, %v3908
  %v3910 = vpop.f32.mrb[0].mxu0
  %3911 = vmatprep.mubr.bf16.mxu0 0
  %3912 = vmatmul.mubr.bf16.gmra.mrb[0].mxu0 %v3626
  %v3913 = vpop.f32.mrb[0].mxu0
  %v3914 = vadd.f32 0.0, %v3913
  %v3915 = vpop.f32.mrb[0].mxu0
  %v3916 = vpop.f32.mrb[0].mxu0
  %v3917 = vadd.f32 0.0, %v3916
  %v3918 = vpop.f32.mrb[0].mxu0
  %3919 = vmatprep.mubr.bf16.mxu0 0
  %3920 = vmatmul.mubr.bf16.gmra.mrb[0].mxu0 %v3629
  %v3921 = vpop.f32.mrb[0].mxu0
  %v3922 = vadd.f32 0.0, %v3921
  %v3923 = vpop.f32.mrb[0].mxu0
  %v3924 = vpop.f32.mrb[0].mxu0
  %v3925 = vadd.f32 0.0, %v3924
  %v3926 = vpop.f32.mrb[0].mxu0
  %3927 = vmatprep.mubr.bf16.mxu0 0
  %3928 = vmatmul.mubr.bf16.gmra.mrb[0].mxu0 %v3632
  %v3929 = vpop.f32.mrb[0].mxu0
  %v3930 = vadd.f32 0.0, %v3929
  %v3931 = vpop.f32.mrb[0].mxu0
  %v3932 = vpop.f32.mrb[0].mxu0
  %v3933 = vadd.f32 0.0, %v3932
  %v3934 = vpop.f32.mrb[0].mxu0
  %3935 = vmatprep.mubr.bf16.mxu0 0
  %3936 = vmatmul.mubr.bf16.gmra.mrb[0].mxu0 %v3635
  %v3937 = vpop.f32.mrb[0].mxu0
  %v3938 = vadd.f32 0.0, %v3937
  %v3939 = vpop.f32.mrb[0].mxu0
  %v3940 = vpop.f32.mrb[0].mxu0
  %v3941 = vadd.f32 0.0, %v3940
  %v3942 = vpop.f32.mrb[0].mxu0
  %3943 = vmatprep.mubr.bf16.mxu0 0
  %3944 = vmatmul.mubr.bf16.gmra.mrb[0].mxu0 %v3638
  %v3945 = vpop.f32.mrb[0].mxu0
  %v3946 = vadd.f32 0.0, %v3945
  %v3947 = vpop.f32.mrb[0].mxu0
  %v3948 = vpop.f32.mrb[0].mxu0
  %v3949 = vadd.f32 0.0, %v3948
  %v3950 = vpop.f32.mrb[0].mxu0
  %3951 = vmatprep.mubr.bf16.mxu0 0
  %3952 = vmatmul.mubr.bf16.gmra.mrb[0].mxu0 %v3641
  %v3953 = vpop.f32.mrb[0].mxu0
  %v3954 = vadd.f32 0.0, %v3953
  %v3955 = vpop.f32.mrb[0].mxu0
  %v3956 = vpop.f32.mrb[0].mxu0
  %v3957 = vadd.f32 0.0, %v3956
  %v3958 = vpop.f32.mrb[0].mxu0
  %3959 = vmatprep.mubr.bf16.mxu0 0
  %3960 = vmatmul.mubr.bf16.gmra.mrb[0].mxu0 %v3644
  %v3961 = vpop.f32.mrb[0].mxu0
  %v3962 = vadd.f32 0.0, %v3961
  %v3963 = vpop.f32.mrb[0].mxu0
  %v3964 = vpop.f32.mrb[0].mxu0
  %v3965 = vadd.f32 0.0, %v3964
  %v3966 = vpop.f32.mrb[0].mxu0
  %3967 = vmatprep.mubr.bf16.mxu0 0
  %3968 = vmatmul.mubr.bf16.gmra.mrb[0].mxu0 %v3647
  %v3969 = vpop.f32.mrb[0].mxu0
  %v3970 = vadd.f32 0.0, %v3969
  %v3971 = vpop.f32.mrb[0].mxu0
  %v3972 = vpop.f32.mrb[0].mxu0
  %v3973 = vadd.f32 0.0, %v3972
  %v3974 = vpop.f32.mrb[0].mxu0
  %3975 = vmatprep.mubr.bf16.mxu0 0
  %3976 = vmatmul.mubr.bf16.gmra.mrb[0].mxu0 %v3650
  %v3977 = vpop.f32.mrb[0].mxu0
  %v3978 = vadd.f32 0.0, %v3977
  %v3979 = vpop.f32.mrb[0].mxu0
  %v3980 = vpop.f32.mrb[0].mxu0
  %v3981 = vadd.f32 0.0, %v3980
  %v3982 = vpop.f32.mrb[0].mxu0
  %3983 = vmatprep.mubr.bf16.mxu0 0
  %3984 = vmatmul.mubr.bf16.gmra.mrb[0].mxu0 %v3653
  %v3985 = vpop.f32.mrb[0].mxu0
  %v3986 = vadd.f32 0.0, %v3985
  %v3987 = vpop.f32.mrb[0].mxu0
  %v3988 = vpop.f32.mrb[0].mxu0
  %v3989 = vadd.f32 0.0, %v3988
  %v3990 = vpop.f32.mrb[0].mxu0
  %3991 = vmatprep.mubr.bf16.mxu0 0
  %3992 = vmatmul.mubr.bf16.gmra.mrb[0].mxu0 %v3656
  %v3993 = vpop.f32.mrb[0].mxu0
  %v3994 = vadd.f32 0.0, %v3993
  %v3995 = vpop.f32.mrb[0].mxu0
  %v3996 = vpop.f32.mrb[0].mxu0
  %v3997 = vadd.f32 0.0, %v3996
  %v3998 = vpop.f32.mrb[0].mxu0
  %3999 = vmatprep.mubr.bf16.mxu0 0
  %4000 = vmatmul.mubr.bf16.gmra.mrb[0].mxu0 %v3659
  %v4001 = vpop.f32.mrb[0].mxu0
  %v4002 = vadd.f32 0.0, %v4001
  %v4003 = vpop.f32.mrb[0].mxu0
  %v4004 = vpop.f32.mrb[0].mxu0
  %v4005 = vadd.f32 0.0, %v4004
  %v4006 = vpop.f32.mrb[0].mxu0
  %4007 = vmatprep.mubr.bf16.mxu0 0
  %4008 = vmatmul.mubr.bf16.gmra.mrb[0].mxu0 %v3662
  %v4009 = vpop.f32.mrb[0].mxu0
  %v4010 = vadd.f32 0.0, %v4009
  %v4011 = vpop.f32.mrb[0].mxu0
  %v4012 = vpop.f32.mrb[0].mxu0
  %v4013 = vadd.f32 0.0, %v4012
  %v4014 = vpop.f32.mrb[0].mxu0
  %4015 = vmatprep.mubr.bf16.mxu0 0
  %4016 = vmatmul.mubr.bf16.gmra.mrb[0].mxu0 %v3665
  %v4017 = vpop.f32.mrb[0].mxu0
  %v4018 = vadd.f32 0.0, %v4017
  %v4019 = vpop.f32.mrb[0].mxu0
  %v4020 = vpop.f32.mrb[0].mxu0
  %v4021 = vadd.f32 0.0, %v4020
  %v4022 = vpop.f32.mrb[0].mxu0
  %4023 = vmatprep.mubr.bf16.mxu0 0
  %4024 = vmatmul.mubr.bf16.gmra.mrb[0].mxu0 %v3668
  %v4025 = vpop.f32.mrb[0].mxu0
  %v4026 = vadd.f32 0.0, %v4025
  %v4027 = vpop.f32.mrb[0].mxu0
  %v4028 = vpop.f32.mrb[0].mxu0
  %v4029 = vadd.f32 0.0, %v4028
  %v4030 = vpop.f32.mrb[0].mxu0
  %4031 = vmatprep.mubr.bf16.mxu0 0
  %4032 = vmatmul.mubr.bf16.gmra.mrb[0].mxu0 %v3671
  %v4033 = vpop.f32.mrb[0].mxu0
  %v4034 = vadd.f32 0.0, %v4033
  %v4035 = vpop.f32.mrb[0].mxu0
  %v4036 = vpop.f32.mrb[0].mxu0
  %v4037 = vadd.f32 0.0, %v4036
  %v4038 = vpop.f32.mrb[0].mxu0
  %4039 = vmatprep.mubr.bf16.mxu0 0
  %4040 = vmatmul.mubr.bf16.gmra.mrb[0].mxu0 %v3674
  %v4041 = vpop.f32.mrb[0].mxu0
  %v4042 = vadd.f32 0.0, %v4041
  %v4043 = vpop.f32.mrb[0].mxu0
  %v4044 = vpop.f32.mrb[0].mxu0
  %v4045 = vadd.f32 0.0, %v4044
  %v4046 = vpop.f32.mrb[0].mxu0
  %4047 = vmatprep.mubr.bf16.mxu0 0
  %4048 = vmatmul.mubr.bf16.gmra.mrb[0].mxu0 %v3677
  %v4049 = vpop.f32.mrb[0].mxu0
  %v4050 = vadd.f32 0.0, %v4049
  %v4051 = vpop.f32.mrb[0].mxu0
  %v4052 = vpop.f32.mrb[0].mxu0
  %v4053 = vadd.f32 0.0, %v4052
  %v4054 = vpop.f32.mrb[0].mxu0
  %4055 = vmatprep.mubr.bf16.mxu0 0
  %4056 = vmatmul.mubr.bf16.gmra.mrb[0].mxu0 %v3680
  %v4057 = vpop.f32.mrb[0].mxu0
  %v4058 = vadd.f32 0.0, %v4057
  %v4059 = vpop.f32.mrb[0].mxu0
  %v4060 = vpop.f32.mrb[0].mxu0
  %v4061 = vadd.f32 0.0, %v4060
  %v4062 = vpop.f32.mrb[0].mxu0
  %4063 = vmatprep.mubr.bf16.mxu0 0
  %4064 = vmatmul.mubr.bf16.gmra.mrb[0].mxu0 %v3683
  %v4065 = vpop.f32.mrb[0].mxu0
  %v4066 = vadd.f32 0.0, %v4065
  %v4067 = vpop.f32.mrb[0].mxu0
  %v4068 = vpop.f32.mrb[0].mxu0
  %v4069 = vadd.f32 0.0, %v4068
  %v4070 = vpop.f32.mrb[0].mxu0
  %4071 = vmatprep.mubr.bf16.mxu0 0
  %4072 = vmatmul.mubr.bf16.gmra.mrb[0].mxu0 %v3686
  %v4073 = vpop.f32.mrb[0].mxu0
  %v4074 = vadd.f32 0.0, %v4073
  %v4075 = vpop.f32.mrb[0].mxu0
  %v4076 = vpop.f32.mrb[0].mxu0
  %v4077 = vadd.f32 0.0, %v4076
  %v4078 = vpop.f32.mrb[0].mxu0
  %4079 = vmatprep.mubr.bf16.mxu0 0
  %4080 = vmatmul.mubr.bf16.gmra.mrb[0].mxu0 %v3689
  %v4081 = vpop.f32.mrb[0].mxu0
  %v4082 = vadd.f32 0.0, %v4081
  %v4083 = vpop.f32.mrb[0].mxu0
  %v4084 = vpop.f32.mrb[0].mxu0
  %v4085 = vadd.f32 0.0, %v4084
  %v4086 = vpop.f32.mrb[0].mxu0
  %4087 = vmatprep.mubr.bf16.mxu0 0
  %4088 = vmatmul.mubr.bf16.gmra.mrb[0].mxu0 %v3692
  %v4089 = vpop.f32.mrb[0].mxu0
  %v4090 = vadd.f32 0.0, %v4089
  %v4091 = vpop.f32.mrb[0].mxu0
  %v4092 = vpop.f32.mrb[0].mxu0
  %v4093 = vadd.f32 0.0, %v4092
  %v4094 = vpop.f32.mrb[0].mxu0
  %4095 = vmatprep.mubr.bf16.mxu0 0
  %4096 = vmatmul.mubr.bf16.gmra.mrb[0].mxu0 %v3695
  %v4097 = vpop.f32.mrb[0].mxu0
  %v4098 = vadd.f32 0.0, %v4097
  %v4099 = vpop.f32.mrb[0].mxu0
  %v4100 = vpop.f32.mrb[0].mxu0
  %v4101 = vadd.f32 0.0, %v4100
  %v4102 = vpop.f32.mrb[0].mxu0
  %4103 = vmatprep.mubr.bf16.mxu0 0
  %4104 = vmatmul.mubr.bf16.gmra.mrb[0].mxu0 %v3698
  %v4105 = vpop.f32.mrb[0].mxu0
  %v4106 = vadd.f32 0.0, %v4105
  %v4107 = vpop.f32.mrb[0].mxu0
  %v4108 = vpop.f32.mrb[0].mxu0
  %v4109 = vadd.f32 0.0, %v4108
  %v4110 = vpop.f32.mrb[0].mxu0
  %4111 = vmatprep.mubr.bf16.mxu0 0
  %4112 = vmatmul.mubr.bf16.gmra.mrb[0].mxu0 %v3701
  %v4113 = vpop.f32.mrb[0].mxu0
  %v4114 = vadd.f32 0.0, %v4113
  %v4115 = vpop.f32.mrb[0].mxu0
  %v4116 = vpop.f32.mrb[0].mxu0
  %v4117 = vadd.f32 0.0, %v4116
  %v4118 = vpop.f32.mrb[0].mxu0
  %4119 = vmatprep.mubr.bf16.mxu0 0
  %4120 = vmatmul.mubr.bf16.gmra.mrb[0].mxu0 %v3704
  %v4121 = vpop.f32.mrb[0].mxu0
  %v4122 = vadd.f32 0.0, %v4121
  %v4123 = vpop.f32.mrb[0].mxu0
  %v4124 = vpop.f32.mrb[0].mxu0
  %v4125 = vadd.f32 0.0, %v4124
  %v4126 = vpop.f32.mrb[0].mxu0
  %4127 = vmatprep.mubr.bf16.mxu0 0
  %4128 = vmatmul.mubr.bf16.gmra.mrb[0].mxu0 %v3707
  %v4129 = vpop.f32.mrb[0].mxu0
  %v4130 = vadd.f32 0.0, %v4129
  %v4131 = vpop.f32.mrb[0].mxu0
  %v4132 = vpop.f32.mrb[0].mxu0
  %v4133 = vadd.f32 0.0, %v4132
  %v4134 = vpop.f32.mrb[0].mxu0
  %4135 = vmatprep.mubr.bf16.mxu0 0
  %4136 = vmatmul.mubr.bf16.gmra.mrb[0].mxu0 %v3710
  %v4137 = vpop.f32.mrb[0].mxu0
  %v4138 = vadd.f32 0.0, %v4137
  %v4139 = vpop.f32.mrb[0].mxu0
  %v4140 = vpop.f32.mrb[0].mxu0
  %v4141 = vadd.f32 0.0, %v4140
  %v4142 = vpop.f32.mrb[0].mxu0
  %4143 = vmatprep.mubr.bf16.mxu0 0
  %4144 = vmatmul.mubr.bf16.gmra.mrb[0].mxu0 %v3713
  %v4145 = vpop.f32.mrb[0].mxu0
  %v4146 = vadd.f32 0.0, %v4145
  %v4147 = vpop.f32.mrb[0].mxu0
  %v4148 = vpop.f32.mrb[0].mxu0
  %v4149 = vadd.f32 0.0, %v4148
  %v4150 = vpop.f32.mrb[0].mxu0
  %4151 = vmatprep.mubr.bf16.mxu0 0
  %4152 = vmatmul.mubr.bf16.gmra.mrb[0].mxu0 %v3716
  %v4153 = vpop.f32.mrb[0].mxu0
  %v4154 = vadd.f32 0.0, %v4153
  %v4155 = vpop.f32.mrb[0].mxu0
  %v4156 = vpop.f32.mrb[0].mxu0
  %v4157 = vadd.f32 0.0, %v4156
  %v4158 = vpop.f32.mrb[0].mxu0
  %4159 = vmatprep.mubr.bf16.mxu0 0
  %4160 = vmatmul.mubr.bf16.gmra.mrb[0].mxu0 %v3719
  %v4161 = vpop.f32.mrb[0].mxu0
  %v4162 = vadd.f32 0.0, %v4161
  %v4163 = vpop.f32.mrb[0].mxu0
  %v4164 = vpop.f32.mrb[0].mxu0
  %v4165 = vadd.f32 0.0, %v4164
  %v4166 = vpop.f32.mrb[0].mxu0
  %4167 = vmatprep.mubr.bf16.mxu0 0
  %4168 = vmatmul.mubr.bf16.gmra.mrb[0].mxu0 %v3722
  %v4169 = vpop.f32.mrb[0].mxu0
  %v4170 = vadd.f32 0.0, %v4169
  %v4171 = vpop.f32.mrb[0].mxu0
  %v4172 = vpop.f32.mrb[0].mxu0
  %v4173 = vadd.f32 0.0, %v4172
  %v4174 = vpop.f32.mrb[0].mxu0
  %4175 = vmatprep.mubr.bf16.mxu0 0
  %4176 = vmatmul.mubr.bf16.gmra.mrb[0].mxu0 %v3725
  %v4177 = vpop.f32.mrb[0].mxu0
  %v4178 = vadd.f32 0.0, %v4177
  %v4179 = vpop.f32.mrb[0].mxu0
  %v4180 = vpop.f32.mrb[0].mxu0
  %v4181 = vadd.f32 0.0, %v4180
  %v4182 = vpop.f32.mrb[0].mxu0
  %4183 = vmatprep.mubr.bf16.mxu0 0
  %4184 = vmatmul.mubr.bf16.gmra.mrb[0].mxu0 %v3728
  %v4185 = vpop.f32.mrb[0].mxu0
  %v4186 = vadd.f32 0.0, %v4185
  %v4187 = vpop.f32.mrb[0].mxu0
  %v4188 = vpop.f32.mrb[0].mxu0
  %v4189 = vadd.f32 0.0, %v4188
  %v4190 = vpop.f32.mrb[0].mxu0
  %4191 = vmatprep.mubr.bf16.mxu0 0
  %4192 = vmatmul.mubr.bf16.gmra.mrb[0].mxu0 %v3731
  %v4193 = vpop.f32.mrb[0].mxu0
  %v4194 = vadd.f32 0.0, %v4193
  %v4195 = vpop.f32.mrb[0].mxu0
  %v4196 = vpop.f32.mrb[0].mxu0
  %v4197 = vadd.f32 0.0, %v4196
  %v4198 = vpop.f32.mrb[0].mxu0
  %4199 = vmatprep.mubr.bf16.mxu0 0
  %4200 = vmatmul.mubr.bf16.gmra.mrb[0].mxu0 %v3734
  %v4201 = vpop.f32.mrb[0].mxu0
  %v4202 = vadd.f32 0.0, %v4201
  %v4203 = vpop.f32.mrb[0].mxu0
  %v4204 = vpop.f32.mrb[0].mxu0
  %v4205 = vadd.f32 0.0, %v4204
  %v4206 = vpop.f32.mrb[0].mxu0
  %4207 = vmatprep.mubr.bf16.mxu0 0
  %4208 = vmatmul.mubr.bf16.gmra.mrb[0].mxu0 %v3737
  %v4209 = vpop.f32.mrb[0].mxu0
  %v4210 = vadd.f32 0.0, %v4209
  %v4211 = vpop.f32.mrb[0].mxu0
  %v4212 = vpop.f32.mrb[0].mxu0
  %v4213 = vadd.f32 0.0, %v4212
  %v4214 = vpop.f32.mrb[0].mxu0
  %4215 = vmatprep.mubr.bf16.mxu0 0
  %4216 = vmatmul.mubr.bf16.gmra.mrb[0].mxu0 %v3740
  %v4217 = vpop.f32.mrb[0].mxu0
  %v4218 = vadd.f32 0.0, %v4217
  %v4219 = vpop.f32.mrb[0].mxu0
  %v4220 = vpop.f32.mrb[0].mxu0
  %v4221 = vadd.f32 0.0, %v4220
  %v4222 = vpop.f32.mrb[0].mxu0
  %4223 = vmatprep.mubr.bf16.mxu0 0
  %4224 = vmatmul.mubr.bf16.gmra.mrb[0].mxu0 %v3743
  %v4225 = vpop.f32.mrb[0].mxu0
  %v4226 = vadd.f32 0.0, %v4225
  %v4227 = vpop.f32.mrb[0].mxu0
  %v4228 = vpop.f32.mrb[0].mxu0
  %v4229 = vadd.f32 0.0, %v4228
  %v4230 = vpop.f32.mrb[0].mxu0
  %4231 = vmatprep.mubr.bf16.mxu0 0
  %4232 = vmatmul.mubr.bf16.gmra.mrb[0].mxu0 %v3746
  %v4233 = vpop.f32.mrb[0].mxu0
  %v4234 = vadd.f32 0.0, %v4233
  %v4235 = vpop.f32.mrb[0].mxu0
  %v4236 = vpop.f32.mrb[0].mxu0
  %v4237 = vadd.f32 0.0, %v4236
  %v4238 = vpop.f32.mrb[0].mxu0
  %4239 = vmatprep.mubr.bf16.mxu0 0
  %4240 = vmatmul.mubr.bf16.gmra.mrb[0].mxu0 %v3749
  %v4241 = vpop.f32.mrb[0].mxu0
  %v4242 = vadd.f32 0.0, %v4241
  %v4243 = vpop.f32.mrb[0].mxu0
  %v4244 = vpop.f32.mrb[0].mxu0
  %v4245 = vadd.f32 0.0, %v4244
  %v4246 = vpop.f32.mrb[0].mxu0
  %4247 = vmatprep.mubr.bf16.mxu0 0
  %4248 = vmatmul.mubr.bf16.gmra.mrb[0].mxu0 %v3752
  %v4249 = vpop.f32.mrb[0].mxu0
  %v4250 = vadd.f32 0.0, %v4249
  %v4251 = vpop.f32.mrb[0].mxu0
  %v4252 = vpop.f32.mrb[0].mxu0
  %v4253 = vadd.f32 0.0, %v4252
  %v4254 = vpop.f32.mrb[0].mxu0
  %4255 = vmatprep.mubr.bf16.mxu0 0
  %4256 = vmatmul.mubr.bf16.gmra.mrb[0].mxu0 %v3755
  %v4257 = vpop.f32.mrb[0].mxu0
  %v4258 = vadd.f32 0.0, %v4257
  %v4259 = vpop.f32.mrb[0].mxu0
  %v4260 = vpop.f32.mrb[0].mxu0
  %v4261 = vadd.f32 0.0, %v4260
  %v4262 = vpop.f32.mrb[0].mxu0
  %4263 = vmatprep.mubr.bf16.mxu0 0
  %4264 = vmatmul.mubr.bf16.gmra.mrb[0].mxu0 %v3758
  %v4265 = vpop.f32.mrb[0].mxu0
  %v4266 = vadd.f32 0.0, %v4265
  %v4267 = vpop.f32.mrb[0].mxu0
  %v4268 = vpop.f32.mrb[0].mxu0
  %v4269 = vadd.f32 0.0, %v4268
  %v4270 = vpop.f32.mrb[0].mxu0
  %4271 = vmatprep.mubr.bf16.mxu0 0
  %4272 = vmatmul.mubr.bf16.gmra.mrb[0].mxu0 %v3761
  %v4273 = vpop.f32.mrb[0].mxu0
  %v4274 = vadd.f32 0.0, %v4273
  %v4275 = vpop.f32.mrb[0].mxu0
  %v4276 = vpop.f32.mrb[0].mxu0
  %v4277 = vadd.f32 0.0, %v4276
  %v4278 = vpop.f32.mrb[0].mxu0
  %4279 = vmatprep.mubr.bf16.mxu0 0
  %4280 = vmatmul.mubr.bf16.gmra.mrb[0].mxu0 %v3764
  %v4281 = vpop.f32.mrb[0].mxu0
  %v4282 = vadd.f32 0.0, %v4281
  %v4283 = vpop.f32.mrb[0].mxu0
  %v4284 = vpop.f32.mrb[0].mxu0
  %v4285 = vadd.f32 0.0, %v4284
  %v4286 = vpop.f32.mrb[0].mxu0
  %4287 = vmatprep.mubr.bf16.mxu0 0
  %4288 = vmatmul.mubr.bf16.gmra.mrb[0].mxu0 %v3767
  %v4289 = vpop.f32.mrb[0].mxu0
  %v4290 = vadd.f32 0.0, %v4289
  %v4291 = vpop.f32.mrb[0].mxu0
  %v4292 = vpop.f32.mrb[0].mxu0
  %v4293 = vadd.f32 0.0, %v4292
  %v4294 = vpop.f32.mrb[0].mxu0
  %4295 = vmatprep.mubr.bf16.mxu0 0
  %4296 = vmatmul.mubr.bf16.gmra.mrb[0].mxu0 %v3770
  %v4297 = vpop.f32.mrb[0].mxu0
  %v4298 = vadd.f32 0.0, %v4297
  %v4299 = vpop.f32.mrb[0].mxu0
  %v4300 = vpop.f32.mrb[0].mxu0
  %v4301 = vadd.f32 0.0, %v4300
  %v4302 = vpop.f32.mrb[0].mxu0
  %4303 = vmatprep.mubr.bf16.mxu0 0
  %4304 = vmatmul.mubr.bf16.gmra.mrb[0].mxu0 %v3773
  %v4305 = vpop.f32.mrb[0].mxu0
  %v4306 = vadd.f32 0.0, %v4305
  %v4307 = vpop.f32.mrb[0].mxu0
  %v4308 = vpop.f32.mrb[0].mxu0
  %v4309 = vpop.f32.mrb[0].mxu0
  %4310 = vdwg.mxu0
  %v4315 = vunpack.c.l.b16 %v3386
  %v4316 = vunpack.c.l.b16 %v3387
  %v4317 = vunpack.c.l.b16 %v3388
  %v4318 = vunpack.c.l.b16 %v3389
  %v4319 = vpack.c.b16 %v4316, %v4315
  %v4320 = vpack.c.b16 %v4318, %v4317
  %v4324 = vsel %vm436, %v3323, 0
  %v4327 = vsel %vm436, %v3324, 0
  %v4330 = vsel %vm436, %v3325, 0
  %v4333 = vsel %vm436, %v3326, 0
  %v4336 = vsel %vm436, %v3327, 0
  %v4339 = vsel %vm436, %v3328, 0
  %v4342 = vsel %vm436, %v3329, 0
  %v4345 = vsel %vm436, %v3330, 0
  %v4348 = vsel %vm436, %v3331, 0
  %v4351 = vsel %vm436, %v3332, 0
  %v4354 = vsel %vm436, %v3333, 0
  %v4357 = vsel %vm436, %v3334, 0
  %v4360 = vsel %vm436, %v3335, 0
  %v4363 = vsel %vm436, %v3336, 0
  %v4366 = vsel %vm436, %v3337, 0
  %v4369 = vsel %vm436, %v3338, 0
  %v4372 = vsel %vm436, %v3339, 0
  %v4375 = vsel %vm436, %v3340, 0
  %v4378 = vsel %vm436, %v3341, 0
  %v4381 = vsel %vm436, %v3342, 0
  %v4384 = vsel %vm436, %v3343, 0
  %v4387 = vsel %vm436, %v3344, 0
  %v4390 = vsel %vm436, %v3345, 0
  %v4393 = vsel %vm436, %v3346, 0
  %v4396 = vsel %vm436, %v3347, 0
  %v4399 = vsel %vm436, %v3348, 0
  %v4402 = vsel %vm436, %v3349, 0
  %v4405 = vsel %vm436, %v3350, 0
  %v4408 = vsel %vm436, %v3351, 0
  %v4411 = vsel %vm436, %v3352, 0
  %v4414 = vsel %vm436, %v3353, 0
  %v4417 = vsel %vm436, %v3354, 0
  %v4420 = vsel %vm436, %v3355, 0
  %v4423 = vsel %vm436, %v3356, 0
  %v4426 = vsel %vm436, %v3357, 0
  %v4429 = vsel %vm436, %v3358, 0
  %v4432 = vsel %vm436, %v3359, 0
  %v4435 = vsel %vm436, %v3360, 0
  %v4438 = vsel %vm436, %v3361, 0
  %v4441 = vsel %vm436, %v3362, 0
  %v4444 = vsel %vm436, %v3363, 0
  %v4447 = vsel %vm436, %v3364, 0
  %v4450 = vsel %vm436, %v3365, 0
  %v4453 = vsel %vm436, %v3366, 0
  %v4456 = vsel %vm436, %v3367, 0
  %v4459 = vsel %vm436, %v3368, 0
  %v4462 = vsel %vm436, %v3369, 0
  %v4465 = vsel %vm436, %v3370, 0
  %v4468 = vsel %vm436, %v3371, 0
  %v4471 = vsel %vm436, %v3372, 0
  %v4474 = vsel %vm436, %v3373, 0
  %v4477 = vsel %vm436, %v3374, 0
  %v4480 = vsel %vm436, %v3375, 0
  %v4483 = vsel %vm436, %v3376, 0
  %v4486 = vsel %vm436, %v3377, 0
  %v4489 = vsel %vm436, %v3378, 0
  %v4492 = vsel %vm436, %v3379, 0
  %v4495 = vsel %vm436, %v3380, 0
  %v4498 = vsel %vm436, %v3381, 0
  %v4501 = vsel %vm436, %v3382, 0
  %v4504 = vsel %vm436, %v3383, 0
  %v4507 = vsel %vm436, %v3384, 0
  %v4510 = vsel %vm436, %v3385, 0
  %4512 = vmatprep.subr.bf16.mxu0 0
  %4513 = vmatpush1.bf16.msra.mxu0 %v4319
  %4514 = vmatprep.subr.bf16.mxu0 0
  %4515 = vmatpush1.bf16.msra.mxu0 %v4320
  %4516 = vmatprep.subr.bf16.mxu0 0
  %4517 = vmatpush1.bf16.msra.mxu0 0
  %4518 = vmatprep.subr.bf16.mxu0 0
  %4519 = vmatpush1.bf16.msra.mxu0 0
  %4520 = vmatprep.subr.bf16.mxu0 0
  %4521 = vmatpush1.bf16.msra.mxu0 0
  %4522 = vmatprep.subr.bf16.mxu0 0
  %4523 = vmatpush1.bf16.msra.mxu0 0
  %4524 = vmatprep.subr.bf16.mxu0 0
  %4525 = vmatpush1.bf16.msra.mxu0 0
  %4526 = vmatprep.subr.bf16.mxu0 0
  %4527 = vmatpush1.bf16.msra.mxu0 0
  %4528 = vmatprep.subr.bf16.mxu0 0
  %4529 = vmatpush1.bf16.msra.mxu0 0
  %4530 = vmatprep.subr.bf16.mxu0 0
  %4531 = vmatpush1.bf16.msra.mxu0 0
  %4532 = vmatprep.subr.bf16.mxu0 0
  %4533 = vmatpush1.bf16.msra.mxu0 0
  %4534 = vmatprep.subr.bf16.mxu0 0
  %4535 = vmatpush1.bf16.msra.mxu0 0
  %4536 = vmatprep.subr.bf16.mxu0 0
  %4537 = vmatpush1.bf16.msra.mxu0 0
  %4538 = vmatprep.subr.bf16.mxu0 0
  %4539 = vmatpush1.bf16.msra.mxu0 0
  %4540 = vmatprep.subr.bf16.mxu0 0
  %4541 = vmatpush1.bf16.msra.mxu0 0
  %4542 = vmatprep.subr.bf16.mxu0 0
  %4543 = vmatpush1.bf16.msra.mxu0 0
  %4544 = vmatprep.mubr.bf16.mxu0 0
  %4545 = vmatmul.mubr.bf16.gmra.mrb[0].mxu0 %v4324
  %v4546 = vpop.f32.mrb[0].mxu0
  %v4547 = vadd.f32 %v3810, %v4546
  %v4548 = vpop.f32.mrb[0].mxu0
  %v4549 = vpop.f32.mrb[0].mxu0
  %v4550 = vadd.f32 %v3813, %v4549
  %v4551 = vpop.f32.mrb[0].mxu0
  %4552 = vmatprep.mubr.bf16.mxu0 0
  %4553 = vmatmul.mubr.bf16.gmra.mrb[0].mxu0 %v4327
  %v4554 = vpop.f32.mrb[0].mxu0
  %v4555 = vadd.f32 %v3818, %v4554
  %v4556 = vpop.f32.mrb[0].mxu0
  %v4557 = vpop.f32.mrb[0].mxu0
  %v4558 = vadd.f32 %v3821, %v4557
  %v4559 = vpop.f32.mrb[0].mxu0
  %4560 = vmatprep.mubr.bf16.mxu0 0
  %4561 = vmatmul.mubr.bf16.gmra.mrb[0].mxu0 %v4330
  %v4562 = vpop.f32.mrb[0].mxu0
  %v4563 = vadd.f32 %v3826, %v4562
  %v4564 = vpop.f32.mrb[0].mxu0
  %v4565 = vpop.f32.mrb[0].mxu0
  %v4566 = vadd.f32 %v3829, %v4565
  %v4567 = vpop.f32.mrb[0].mxu0
  %4568 = vmatprep.mubr.bf16.mxu0 0
  %4569 = vmatmul.mubr.bf16.gmra.mrb[0].mxu0 %v4333
  %v4570 = vpop.f32.mrb[0].mxu0
  %v4571 = vadd.f32 %v3834, %v4570
  %v4572 = vpop.f32.mrb[0].mxu0
  %v4573 = vpop.f32.mrb[0].mxu0
  %v4574 = vadd.f32 %v3837, %v4573
  %v4575 = vpop.f32.mrb[0].mxu0
  %4576 = vmatprep.mubr.bf16.mxu0 0
  %4577 = vmatmul.mubr.bf16.gmra.mrb[0].mxu0 %v4336
  %v4578 = vpop.f32.mrb[0].mxu0
  %v4579 = vadd.f32 %v3842, %v4578
  %v4580 = vpop.f32.mrb[0].mxu0
  %v4581 = vpop.f32.mrb[0].mxu0
  %v4582 = vadd.f32 %v3845, %v4581
  %v4583 = vpop.f32.mrb[0].mxu0
  %4584 = vmatprep.mubr.bf16.mxu0 0
  %4585 = vmatmul.mubr.bf16.gmra.mrb[0].mxu0 %v4339
  %v4586 = vpop.f32.mrb[0].mxu0
  %v4587 = vadd.f32 %v3850, %v4586
  %v4588 = vpop.f32.mrb[0].mxu0
  %v4589 = vpop.f32.mrb[0].mxu0
  %v4590 = vadd.f32 %v3853, %v4589
  %v4591 = vpop.f32.mrb[0].mxu0
  %4592 = vmatprep.mubr.bf16.mxu0 0
  %4593 = vmatmul.mubr.bf16.gmra.mrb[0].mxu0 %v4342
  %v4594 = vpop.f32.mrb[0].mxu0
  %v4595 = vadd.f32 %v3858, %v4594
  %v4596 = vpop.f32.mrb[0].mxu0
  %v4597 = vpop.f32.mrb[0].mxu0
  %v4598 = vadd.f32 %v3861, %v4597
  %v4599 = vpop.f32.mrb[0].mxu0
  %4600 = vmatprep.mubr.bf16.mxu0 0
  %4601 = vmatmul.mubr.bf16.gmra.mrb[0].mxu0 %v4345
  %v4602 = vpop.f32.mrb[0].mxu0
  %v4603 = vadd.f32 %v3866, %v4602
  %v4604 = vpop.f32.mrb[0].mxu0
  %v4605 = vpop.f32.mrb[0].mxu0
  %v4606 = vadd.f32 %v3869, %v4605
  %v4607 = vpop.f32.mrb[0].mxu0
  %4608 = vmatprep.mubr.bf16.mxu0 0
  %4609 = vmatmul.mubr.bf16.gmra.mrb[0].mxu0 %v4348
  %v4610 = vpop.f32.mrb[0].mxu0
  %v4611 = vadd.f32 %v3874, %v4610
  %v4612 = vpop.f32.mrb[0].mxu0
  %v4613 = vpop.f32.mrb[0].mxu0
  %v4614 = vadd.f32 %v3877, %v4613
  %v4615 = vpop.f32.mrb[0].mxu0
  %4616 = vmatprep.mubr.bf16.mxu0 0
  %4617 = vmatmul.mubr.bf16.gmra.mrb[0].mxu0 %v4351
  %v4618 = vpop.f32.mrb[0].mxu0
  %v4619 = vadd.f32 %v3882, %v4618
  %v4620 = vpop.f32.mrb[0].mxu0
  %v4621 = vpop.f32.mrb[0].mxu0
  %v4622 = vadd.f32 %v3885, %v4621
  %v4623 = vpop.f32.mrb[0].mxu0
  %4624 = vmatprep.mubr.bf16.mxu0 0
  %4625 = vmatmul.mubr.bf16.gmra.mrb[0].mxu0 %v4354
  %v4626 = vpop.f32.mrb[0].mxu0
  %v4627 = vadd.f32 %v3890, %v4626
  %v4628 = vpop.f32.mrb[0].mxu0
  %v4629 = vpop.f32.mrb[0].mxu0
  %v4630 = vadd.f32 %v3893, %v4629
  %v4631 = vpop.f32.mrb[0].mxu0
  %4632 = vmatprep.mubr.bf16.mxu0 0
  %4633 = vmatmul.mubr.bf16.gmra.mrb[0].mxu0 %v4357
  %v4634 = vpop.f32.mrb[0].mxu0
  %v4635 = vadd.f32 %v3898, %v4634
  %v4636 = vpop.f32.mrb[0].mxu0
  %v4637 = vpop.f32.mrb[0].mxu0
  %v4638 = vadd.f32 %v3901, %v4637
  %v4639 = vpop.f32.mrb[0].mxu0
  %4640 = vmatprep.mubr.bf16.mxu0 0
  %4641 = vmatmul.mubr.bf16.gmra.mrb[0].mxu0 %v4360
  %v4642 = vpop.f32.mrb[0].mxu0
  %v4643 = vadd.f32 %v3906, %v4642
  %v4644 = vpop.f32.mrb[0].mxu0
  %v4645 = vpop.f32.mrb[0].mxu0
  %v4646 = vadd.f32 %v3909, %v4645
  %v4647 = vpop.f32.mrb[0].mxu0
  %4648 = vmatprep.mubr.bf16.mxu0 0
  %4649 = vmatmul.mubr.bf16.gmra.mrb[0].mxu0 %v4363
  %v4650 = vpop.f32.mrb[0].mxu0
  %v4651 = vadd.f32 %v3914, %v4650
  %v4652 = vpop.f32.mrb[0].mxu0
  %v4653 = vpop.f32.mrb[0].mxu0
  %v4654 = vadd.f32 %v3917, %v4653
  %v4655 = vpop.f32.mrb[0].mxu0
  %4656 = vmatprep.mubr.bf16.mxu0 0
  %4657 = vmatmul.mubr.bf16.gmra.mrb[0].mxu0 %v4366
  %v4658 = vpop.f32.mrb[0].mxu0
  %v4659 = vadd.f32 %v3922, %v4658
  %v4660 = vpop.f32.mrb[0].mxu0
  %v4661 = vpop.f32.mrb[0].mxu0
  %v4662 = vadd.f32 %v3925, %v4661
  %v4663 = vpop.f32.mrb[0].mxu0
  %4664 = vmatprep.mubr.bf16.mxu0 0
  %4665 = vmatmul.mubr.bf16.gmra.mrb[0].mxu0 %v4369
  %v4666 = vpop.f32.mrb[0].mxu0
  %v4667 = vadd.f32 %v3930, %v4666
  %v4668 = vpop.f32.mrb[0].mxu0
  %v4669 = vpop.f32.mrb[0].mxu0
  %v4670 = vadd.f32 %v3933, %v4669
  %v4671 = vpop.f32.mrb[0].mxu0
  %4672 = vmatprep.mubr.bf16.mxu0 0
  %4673 = vmatmul.mubr.bf16.gmra.mrb[0].mxu0 %v4372
  %v4674 = vpop.f32.mrb[0].mxu0
  %v4675 = vadd.f32 %v3938, %v4674
  %v4676 = vpop.f32.mrb[0].mxu0
  %v4677 = vpop.f32.mrb[0].mxu0
  %v4678 = vadd.f32 %v3941, %v4677
  %v4679 = vpop.f32.mrb[0].mxu0
  %4680 = vmatprep.mubr.bf16.mxu0 0
  %4681 = vmatmul.mubr.bf16.gmra.mrb[0].mxu0 %v4375
  %v4682 = vpop.f32.mrb[0].mxu0
  %v4683 = vadd.f32 %v3946, %v4682
  %v4684 = vpop.f32.mrb[0].mxu0
  %v4685 = vpop.f32.mrb[0].mxu0
  %v4686 = vadd.f32 %v3949, %v4685
  %v4687 = vpop.f32.mrb[0].mxu0
  %4688 = vmatprep.mubr.bf16.mxu0 0
  %4689 = vmatmul.mubr.bf16.gmra.mrb[0].mxu0 %v4378
  %v4690 = vpop.f32.mrb[0].mxu0
  %v4691 = vadd.f32 %v3954, %v4690
  %v4692 = vpop.f32.mrb[0].mxu0
  %v4693 = vpop.f32.mrb[0].mxu0
  %v4694 = vadd.f32 %v3957, %v4693
  %v4695 = vpop.f32.mrb[0].mxu0
  %4696 = vmatprep.mubr.bf16.mxu0 0
  %4697 = vmatmul.mubr.bf16.gmra.mrb[0].mxu0 %v4381
  %v4698 = vpop.f32.mrb[0].mxu0
  %v4699 = vadd.f32 %v3962, %v4698
  %v4700 = vpop.f32.mrb[0].mxu0
  %v4701 = vpop.f32.mrb[0].mxu0
  %v4702 = vadd.f32 %v3965, %v4701
  %v4703 = vpop.f32.mrb[0].mxu0
  %4704 = vmatprep.mubr.bf16.mxu0 0
  %4705 = vmatmul.mubr.bf16.gmra.mrb[0].mxu0 %v4384
  %v4706 = vpop.f32.mrb[0].mxu0
  %v4707 = vadd.f32 %v3970, %v4706
  %v4708 = vpop.f32.mrb[0].mxu0
  %v4709 = vpop.f32.mrb[0].mxu0
  %v4710 = vadd.f32 %v3973, %v4709
  %v4711 = vpop.f32.mrb[0].mxu0
  %4712 = vmatprep.mubr.bf16.mxu0 0
  %4713 = vmatmul.mubr.bf16.gmra.mrb[0].mxu0 %v4387
  %v4714 = vpop.f32.mrb[0].mxu0
  %v4715 = vadd.f32 %v3978, %v4714
  %v4716 = vpop.f32.mrb[0].mxu0
  %v4717 = vpop.f32.mrb[0].mxu0
  %v4718 = vadd.f32 %v3981, %v4717
  %v4719 = vpop.f32.mrb[0].mxu0
  %4720 = vmatprep.mubr.bf16.mxu0 0
  %4721 = vmatmul.mubr.bf16.gmra.mrb[0].mxu0 %v4390
  %v4722 = vpop.f32.mrb[0].mxu0
  %v4723 = vadd.f32 %v3986, %v4722
  %v4724 = vpop.f32.mrb[0].mxu0
  %v4725 = vpop.f32.mrb[0].mxu0
  %v4726 = vadd.f32 %v3989, %v4725
  %v4727 = vpop.f32.mrb[0].mxu0
  %4728 = vmatprep.mubr.bf16.mxu0 0
  %4729 = vmatmul.mubr.bf16.gmra.mrb[0].mxu0 %v4393
  %v4730 = vpop.f32.mrb[0].mxu0
  %v4731 = vadd.f32 %v3994, %v4730
  %v4732 = vpop.f32.mrb[0].mxu0
  %v4733 = vpop.f32.mrb[0].mxu0
  %v4734 = vadd.f32 %v3997, %v4733
  %v4735 = vpop.f32.mrb[0].mxu0
  %4736 = vmatprep.mubr.bf16.mxu0 0
  %4737 = vmatmul.mubr.bf16.gmra.mrb[0].mxu0 %v4396
  %v4738 = vpop.f32.mrb[0].mxu0
  %v4739 = vadd.f32 %v4002, %v4738
  %v4740 = vpop.f32.mrb[0].mxu0
  %v4741 = vpop.f32.mrb[0].mxu0
  %v4742 = vadd.f32 %v4005, %v4741
  %v4743 = vpop.f32.mrb[0].mxu0
  %4744 = vmatprep.mubr.bf16.mxu0 0
  %4745 = vmatmul.mubr.bf16.gmra.mrb[0].mxu0 %v4399
  %v4746 = vpop.f32.mrb[0].mxu0
  %v4747 = vadd.f32 %v4010, %v4746
  %v4748 = vpop.f32.mrb[0].mxu0
  %v4749 = vpop.f32.mrb[0].mxu0
  %v4750 = vadd.f32 %v4013, %v4749
  %v4751 = vpop.f32.mrb[0].mxu0
  %4752 = vmatprep.mubr.bf16.mxu0 0
  %4753 = vmatmul.mubr.bf16.gmra.mrb[0].mxu0 %v4402
  %v4754 = vpop.f32.mrb[0].mxu0
  %v4755 = vadd.f32 %v4018, %v4754
  %v4756 = vpop.f32.mrb[0].mxu0
  %v4757 = vpop.f32.mrb[0].mxu0
  %v4758 = vadd.f32 %v4021, %v4757
  %v4759 = vpop.f32.mrb[0].mxu0
  %4760 = vmatprep.mubr.bf16.mxu0 0
  %4761 = vmatmul.mubr.bf16.gmra.mrb[0].mxu0 %v4405
  %v4762 = vpop.f32.mrb[0].mxu0
  %v4763 = vadd.f32 %v4026, %v4762
  %v4764 = vpop.f32.mrb[0].mxu0
  %v4765 = vpop.f32.mrb[0].mxu0
  %v4766 = vadd.f32 %v4029, %v4765
  %v4767 = vpop.f32.mrb[0].mxu0
  %4768 = vmatprep.mubr.bf16.mxu0 0
  %4769 = vmatmul.mubr.bf16.gmra.mrb[0].mxu0 %v4408
  %v4770 = vpop.f32.mrb[0].mxu0
  %v4771 = vadd.f32 %v4034, %v4770
  %v4772 = vpop.f32.mrb[0].mxu0
  %v4773 = vpop.f32.mrb[0].mxu0
  %v4774 = vadd.f32 %v4037, %v4773
  %v4775 = vpop.f32.mrb[0].mxu0
  %4776 = vmatprep.mubr.bf16.mxu0 0
  %4777 = vmatmul.mubr.bf16.gmra.mrb[0].mxu0 %v4411
  %v4778 = vpop.f32.mrb[0].mxu0
  %v4779 = vadd.f32 %v4042, %v4778
  %v4780 = vpop.f32.mrb[0].mxu0
  %v4781 = vpop.f32.mrb[0].mxu0
  %v4782 = vadd.f32 %v4045, %v4781
  %v4783 = vpop.f32.mrb[0].mxu0
  %4784 = vmatprep.mubr.bf16.mxu0 0
  %4785 = vmatmul.mubr.bf16.gmra.mrb[0].mxu0 %v4414
  %v4786 = vpop.f32.mrb[0].mxu0
  %v4787 = vadd.f32 %v4050, %v4786
  %v4788 = vpop.f32.mrb[0].mxu0
  %v4789 = vpop.f32.mrb[0].mxu0
  %v4790 = vadd.f32 %v4053, %v4789
  %v4791 = vpop.f32.mrb[0].mxu0
  %4792 = vmatprep.mubr.bf16.mxu0 0
  %4793 = vmatmul.mubr.bf16.gmra.mrb[0].mxu0 %v4417
  %v4794 = vpop.f32.mrb[0].mxu0
  %v4795 = vadd.f32 %v4058, %v4794
  %v4796 = vpop.f32.mrb[0].mxu0
  %v4797 = vpop.f32.mrb[0].mxu0
  %v4798 = vadd.f32 %v4061, %v4797
  %v4799 = vpop.f32.mrb[0].mxu0
  %4800 = vmatprep.mubr.bf16.mxu0 0
  %4801 = vmatmul.mubr.bf16.gmra.mrb[0].mxu0 %v4420
  %v4802 = vpop.f32.mrb[0].mxu0
  %v4803 = vadd.f32 %v4066, %v4802
  %v4804 = vpop.f32.mrb[0].mxu0
  %v4805 = vpop.f32.mrb[0].mxu0
  %v4806 = vadd.f32 %v4069, %v4805
  %v4807 = vpop.f32.mrb[0].mxu0
  %4808 = vmatprep.mubr.bf16.mxu0 0
  %4809 = vmatmul.mubr.bf16.gmra.mrb[0].mxu0 %v4423
  %v4810 = vpop.f32.mrb[0].mxu0
  %v4811 = vadd.f32 %v4074, %v4810
  %v4812 = vpop.f32.mrb[0].mxu0
  %v4813 = vpop.f32.mrb[0].mxu0
  %v4814 = vadd.f32 %v4077, %v4813
  %v4815 = vpop.f32.mrb[0].mxu0
  %4816 = vmatprep.mubr.bf16.mxu0 0
  %4817 = vmatmul.mubr.bf16.gmra.mrb[0].mxu0 %v4426
  %v4818 = vpop.f32.mrb[0].mxu0
  %v4819 = vadd.f32 %v4082, %v4818
  %v4820 = vpop.f32.mrb[0].mxu0
  %v4821 = vpop.f32.mrb[0].mxu0
  %v4822 = vadd.f32 %v4085, %v4821
  %v4823 = vpop.f32.mrb[0].mxu0
  %4824 = vmatprep.mubr.bf16.mxu0 0
  %4825 = vmatmul.mubr.bf16.gmra.mrb[0].mxu0 %v4429
  %v4826 = vpop.f32.mrb[0].mxu0
  %v4827 = vadd.f32 %v4090, %v4826
  %v4828 = vpop.f32.mrb[0].mxu0
  %v4829 = vpop.f32.mrb[0].mxu0
  %v4830 = vadd.f32 %v4093, %v4829
  %v4831 = vpop.f32.mrb[0].mxu0
  %4832 = vmatprep.mubr.bf16.mxu0 0
  %4833 = vmatmul.mubr.bf16.gmra.mrb[0].mxu0 %v4432
  %v4834 = vpop.f32.mrb[0].mxu0
  %v4835 = vadd.f32 %v4098, %v4834
  %v4836 = vpop.f32.mrb[0].mxu0
  %v4837 = vpop.f32.mrb[0].mxu0
  %v4838 = vadd.f32 %v4101, %v4837
  %v4839 = vpop.f32.mrb[0].mxu0
  %4840 = vmatprep.mubr.bf16.mxu0 0
  %4841 = vmatmul.mubr.bf16.gmra.mrb[0].mxu0 %v4435
  %v4842 = vpop.f32.mrb[0].mxu0
  %v4843 = vadd.f32 %v4106, %v4842
  %v4844 = vpop.f32.mrb[0].mxu0
  %v4845 = vpop.f32.mrb[0].mxu0
  %v4846 = vadd.f32 %v4109, %v4845
  %v4847 = vpop.f32.mrb[0].mxu0
  %4848 = vmatprep.mubr.bf16.mxu0 0
  %4849 = vmatmul.mubr.bf16.gmra.mrb[0].mxu0 %v4438
  %v4850 = vpop.f32.mrb[0].mxu0
  %v4851 = vadd.f32 %v4114, %v4850
  %v4852 = vpop.f32.mrb[0].mxu0
  %v4853 = vpop.f32.mrb[0].mxu0
  %v4854 = vadd.f32 %v4117, %v4853
  %v4855 = vpop.f32.mrb[0].mxu0
  %4856 = vmatprep.mubr.bf16.mxu0 0
  %4857 = vmatmul.mubr.bf16.gmra.mrb[0].mxu0 %v4441
  %v4858 = vpop.f32.mrb[0].mxu0
  %v4859 = vadd.f32 %v4122, %v4858
  %v4860 = vpop.f32.mrb[0].mxu0
  %v4861 = vpop.f32.mrb[0].mxu0
  %v4862 = vadd.f32 %v4125, %v4861
  %v4863 = vpop.f32.mrb[0].mxu0
  %4864 = vmatprep.mubr.bf16.mxu0 0
  %4865 = vmatmul.mubr.bf16.gmra.mrb[0].mxu0 %v4444
  %v4866 = vpop.f32.mrb[0].mxu0
  %v4867 = vadd.f32 %v4130, %v4866
  %v4868 = vpop.f32.mrb[0].mxu0
  %v4869 = vpop.f32.mrb[0].mxu0
  %v4870 = vadd.f32 %v4133, %v4869
  %v4871 = vpop.f32.mrb[0].mxu0
  %4872 = vmatprep.mubr.bf16.mxu0 0
  %4873 = vmatmul.mubr.bf16.gmra.mrb[0].mxu0 %v4447
  %v4874 = vpop.f32.mrb[0].mxu0
  %v4875 = vadd.f32 %v4138, %v4874
  %v4876 = vpop.f32.mrb[0].mxu0
  %v4877 = vpop.f32.mrb[0].mxu0
  %v4878 = vadd.f32 %v4141, %v4877
  %v4879 = vpop.f32.mrb[0].mxu0
  %4880 = vmatprep.mubr.bf16.mxu0 0
  %4881 = vmatmul.mubr.bf16.gmra.mrb[0].mxu0 %v4450
  %v4882 = vpop.f32.mrb[0].mxu0
  %v4883 = vadd.f32 %v4146, %v4882
  %v4884 = vpop.f32.mrb[0].mxu0
  %v4885 = vpop.f32.mrb[0].mxu0
  %v4886 = vadd.f32 %v4149, %v4885
  %v4887 = vpop.f32.mrb[0].mxu0
  %4888 = vmatprep.mubr.bf16.mxu0 0
  %4889 = vmatmul.mubr.bf16.gmra.mrb[0].mxu0 %v4453
  %v4890 = vpop.f32.mrb[0].mxu0
  %v4891 = vadd.f32 %v4154, %v4890
  %v4892 = vpop.f32.mrb[0].mxu0
  %v4893 = vpop.f32.mrb[0].mxu0
  %v4894 = vadd.f32 %v4157, %v4893
  %v4895 = vpop.f32.mrb[0].mxu0
  %4896 = vmatprep.mubr.bf16.mxu0 0
  %4897 = vmatmul.mubr.bf16.gmra.mrb[0].mxu0 %v4456
  %v4898 = vpop.f32.mrb[0].mxu0
  %v4899 = vadd.f32 %v4162, %v4898
  %v4900 = vpop.f32.mrb[0].mxu0
  %v4901 = vpop.f32.mrb[0].mxu0
  %v4902 = vadd.f32 %v4165, %v4901
  %v4903 = vpop.f32.mrb[0].mxu0
  %4904 = vmatprep.mubr.bf16.mxu0 0
  %4905 = vmatmul.mubr.bf16.gmra.mrb[0].mxu0 %v4459
  %v4906 = vpop.f32.mrb[0].mxu0
  %v4907 = vadd.f32 %v4170, %v4906
  %v4908 = vpop.f32.mrb[0].mxu0
  %v4909 = vpop.f32.mrb[0].mxu0
  %v4910 = vadd.f32 %v4173, %v4909
  %v4911 = vpop.f32.mrb[0].mxu0
  %4912 = vmatprep.mubr.bf16.mxu0 0
  %4913 = vmatmul.mubr.bf16.gmra.mrb[0].mxu0 %v4462
  %v4914 = vpop.f32.mrb[0].mxu0
  %v4915 = vadd.f32 %v4178, %v4914
  %v4916 = vpop.f32.mrb[0].mxu0
  %v4917 = vpop.f32.mrb[0].mxu0
  %v4918 = vadd.f32 %v4181, %v4917
  %v4919 = vpop.f32.mrb[0].mxu0
  %4920 = vmatprep.mubr.bf16.mxu0 0
  %4921 = vmatmul.mubr.bf16.gmra.mrb[0].mxu0 %v4465
  %v4922 = vpop.f32.mrb[0].mxu0
  %v4923 = vadd.f32 %v4186, %v4922
  %v4924 = vpop.f32.mrb[0].mxu0
  %v4925 = vpop.f32.mrb[0].mxu0
  %v4926 = vadd.f32 %v4189, %v4925
  %v4927 = vpop.f32.mrb[0].mxu0
  %4928 = vmatprep.mubr.bf16.mxu0 0
  %4929 = vmatmul.mubr.bf16.gmra.mrb[0].mxu0 %v4468
  %v4930 = vpop.f32.mrb[0].mxu0
  %v4931 = vadd.f32 %v4194, %v4930
  %v4932 = vpop.f32.mrb[0].mxu0
  %v4933 = vpop.f32.mrb[0].mxu0
  %v4934 = vadd.f32 %v4197, %v4933
  %v4935 = vpop.f32.mrb[0].mxu0
  %4936 = vmatprep.mubr.bf16.mxu0 0
  %4937 = vmatmul.mubr.bf16.gmra.mrb[0].mxu0 %v4471
  %v4938 = vpop.f32.mrb[0].mxu0
  %v4939 = vadd.f32 %v4202, %v4938
  %v4940 = vpop.f32.mrb[0].mxu0
  %v4941 = vpop.f32.mrb[0].mxu0
  %v4942 = vadd.f32 %v4205, %v4941
  %v4943 = vpop.f32.mrb[0].mxu0
  %4944 = vmatprep.mubr.bf16.mxu0 0
  %4945 = vmatmul.mubr.bf16.gmra.mrb[0].mxu0 %v4474
  %v4946 = vpop.f32.mrb[0].mxu0
  %v4947 = vadd.f32 %v4210, %v4946
  %v4948 = vpop.f32.mrb[0].mxu0
  %v4949 = vpop.f32.mrb[0].mxu0
  %v4950 = vadd.f32 %v4213, %v4949
  %v4951 = vpop.f32.mrb[0].mxu0
  %4952 = vmatprep.mubr.bf16.mxu0 0
  %4953 = vmatmul.mubr.bf16.gmra.mrb[0].mxu0 %v4477
  %v4954 = vpop.f32.mrb[0].mxu0
  %v4955 = vadd.f32 %v4218, %v4954
  %v4956 = vpop.f32.mrb[0].mxu0
  %v4957 = vpop.f32.mrb[0].mxu0
  %v4958 = vadd.f32 %v4221, %v4957
  %v4959 = vpop.f32.mrb[0].mxu0
  %4960 = vmatprep.mubr.bf16.mxu0 0
  %4961 = vmatmul.mubr.bf16.gmra.mrb[0].mxu0 %v4480
  %v4962 = vpop.f32.mrb[0].mxu0
  %v4963 = vadd.f32 %v4226, %v4962
  %v4964 = vpop.f32.mrb[0].mxu0
  %v4965 = vpop.f32.mrb[0].mxu0
  %v4966 = vadd.f32 %v4229, %v4965
  %v4967 = vpop.f32.mrb[0].mxu0
  %4968 = vmatprep.mubr.bf16.mxu0 0
  %4969 = vmatmul.mubr.bf16.gmra.mrb[0].mxu0 %v4483
  %v4970 = vpop.f32.mrb[0].mxu0
  %v4971 = vadd.f32 %v4234, %v4970
  %v4972 = vpop.f32.mrb[0].mxu0
  %v4973 = vpop.f32.mrb[0].mxu0
  %v4974 = vadd.f32 %v4237, %v4973
  %v4975 = vpop.f32.mrb[0].mxu0
  %4976 = vmatprep.mubr.bf16.mxu0 0
  %4977 = vmatmul.mubr.bf16.gmra.mrb[0].mxu0 %v4486
  %v4978 = vpop.f32.mrb[0].mxu0
  %v4979 = vadd.f32 %v4242, %v4978
  %v4980 = vpop.f32.mrb[0].mxu0
  %v4981 = vpop.f32.mrb[0].mxu0
  %v4982 = vadd.f32 %v4245, %v4981
  %v4983 = vpop.f32.mrb[0].mxu0
  %4984 = vmatprep.mubr.bf16.mxu0 0
  %4985 = vmatmul.mubr.bf16.gmra.mrb[0].mxu0 %v4489
  %v4986 = vpop.f32.mrb[0].mxu0
  %v4987 = vadd.f32 %v4250, %v4986
  %v4988 = vpop.f32.mrb[0].mxu0
  %v4989 = vpop.f32.mrb[0].mxu0
  %v4990 = vadd.f32 %v4253, %v4989
  %v4991 = vpop.f32.mrb[0].mxu0
  %4992 = vmatprep.mubr.bf16.mxu0 0
  %4993 = vmatmul.mubr.bf16.gmra.mrb[0].mxu0 %v4492
  %v4994 = vpop.f32.mrb[0].mxu0
  %v4995 = vadd.f32 %v4258, %v4994
  %v4996 = vpop.f32.mrb[0].mxu0
  %v4997 = vpop.f32.mrb[0].mxu0
  %v4998 = vadd.f32 %v4261, %v4997
  %v4999 = vpop.f32.mrb[0].mxu0
  %5000 = vmatprep.mubr.bf16.mxu0 0
  %5001 = vmatmul.mubr.bf16.gmra.mrb[0].mxu0 %v4495
  %v5002 = vpop.f32.mrb[0].mxu0
  %v5003 = vadd.f32 %v4266, %v5002
  %v5004 = vpop.f32.mrb[0].mxu0
  %v5005 = vpop.f32.mrb[0].mxu0
  %v5006 = vadd.f32 %v4269, %v5005
  %v5007 = vpop.f32.mrb[0].mxu0
  %5008 = vmatprep.mubr.bf16.mxu0 0
  %5009 = vmatmul.mubr.bf16.gmra.mrb[0].mxu0 %v4498
  %v5010 = vpop.f32.mrb[0].mxu0
  %v5011 = vadd.f32 %v4274, %v5010
  %v5012 = vpop.f32.mrb[0].mxu0
  %v5013 = vpop.f32.mrb[0].mxu0
  %v5014 = vadd.f32 %v4277, %v5013
  %v5015 = vpop.f32.mrb[0].mxu0
  %5016 = vmatprep.mubr.bf16.mxu0 0
  %5017 = vmatmul.mubr.bf16.gmra.mrb[0].mxu0 %v4501
  %v5018 = vpop.f32.mrb[0].mxu0
  %v5019 = vadd.f32 %v4282, %v5018
  %v5020 = vpop.f32.mrb[0].mxu0
  %v5021 = vpop.f32.mrb[0].mxu0
  %v5022 = vadd.f32 %v4285, %v5021
  %v5023 = vpop.f32.mrb[0].mxu0
  %5024 = vmatprep.mubr.bf16.mxu0 0
  %5025 = vmatmul.mubr.bf16.gmra.mrb[0].mxu0 %v4504
  %v5026 = vpop.f32.mrb[0].mxu0
  %v5027 = vadd.f32 %v4290, %v5026
  %v5028 = vpop.f32.mrb[0].mxu0
  %v5029 = vpop.f32.mrb[0].mxu0
  %v5030 = vadd.f32 %v4293, %v5029
  %v5031 = vpop.f32.mrb[0].mxu0
  %5032 = vmatprep.mubr.bf16.mxu0 0
  %5033 = vmatmul.mubr.bf16.gmra.mrb[0].mxu0 %v4507
  %v5034 = vpop.f32.mrb[0].mxu0
  %v5035 = vadd.f32 %v4298, %v5034
  %v5036 = vpop.f32.mrb[0].mxu0
  %v5037 = vpop.f32.mrb[0].mxu0
  %v5038 = vadd.f32 %v4301, %v5037
  %v5039 = vpop.f32.mrb[0].mxu0
  %5040 = vmatprep.mubr.bf16.mxu0 0
  %5041 = vmatmul.mubr.bf16.gmra.mrb[0].mxu0 %v4510
  %v5042 = vpop.f32.mrb[0].mxu0
  %v5043 = vadd.f32 %v4306, %v5042
  %v5044 = vpop.f32.mrb[0].mxu0
  %v5045 = vpop.f32.mrb[0].mxu0
  %v5046 = vpop.f32.mrb[0].mxu0
  %5047 = vdwg.mxu0
  %v5048 = vld [vmem:[%s9] sm:$0x1]
  %v5050 = vlaneseq
  %v5051 = vshrl.u32 %v5050, 7
  %v5052 = vsub.s32 0, %v5051
  %v5053 = vrot.slane %v5048, %v5052
  %v5055 = vadd.f32 %v4547, %v5053
  %v5056 = vadd.f32 %v4550, %v5053
  %v5057 = vadd.f32 %v4555, %v5053
  %v5058 = vadd.f32 %v4558, %v5053
  %v5059 = vadd.f32 %v4563, %v5053
  %v5060 = vadd.f32 %v4566, %v5053
  %v5061 = vadd.f32 %v4571, %v5053
  %v5062 = vadd.f32 %v4574, %v5053
  %v5063 = vadd.f32 %v4579, %v5053
  %v5064 = vadd.f32 %v4582, %v5053
  %v5065 = vadd.f32 %v4587, %v5053
  %v5066 = vadd.f32 %v4590, %v5053
  %v5067 = vadd.f32 %v4595, %v5053
  %v5068 = vadd.f32 %v4598, %v5053
  %v5069 = vadd.f32 %v4603, %v5053
  %v5070 = vadd.f32 %v4606, %v5053
  %v5071 = vadd.f32 %v4611, %v5053
  %v5072 = vadd.f32 %v4614, %v5053
  %v5073 = vadd.f32 %v4619, %v5053
  %v5074 = vadd.f32 %v4622, %v5053
  %v5075 = vadd.f32 %v4627, %v5053
  %v5076 = vadd.f32 %v4630, %v5053
  %v5077 = vadd.f32 %v4635, %v5053
  %v5078 = vadd.f32 %v4638, %v5053
  %v5079 = vadd.f32 %v4643, %v5053
  %v5080 = vadd.f32 %v4646, %v5053
  %v5081 = vadd.f32 %v4651, %v5053
  %v5082 = vadd.f32 %v4654, %v5053
  %v5083 = vadd.f32 %v4659, %v5053
  %v5084 = vadd.f32 %v4662, %v5053
  %v5085 = vadd.f32 %v4667, %v5053
  %v5086 = vadd.f32 %v4670, %v5053
  %v5087 = vadd.f32 %v4675, %v5053
  %v5088 = vadd.f32 %v4678, %v5053
  %v5089 = vadd.f32 %v4683, %v5053
  %v5090 = vadd.f32 %v4686, %v5053
  %v5091 = vadd.f32 %v4691, %v5053
  %v5092 = vadd.f32 %v4694, %v5053
  %v5093 = vadd.f32 %v4699, %v5053
  %v5094 = vadd.f32 %v4702, %v5053
  %v5095 = vadd.f32 %v4707, %v5053
  %v5096 = vadd.f32 %v4710, %v5053
  %v5097 = vadd.f32 %v4715, %v5053
  %v5098 = vadd.f32 %v4718, %v5053
  %v5099 = vadd.f32 %v4723, %v5053
  %v5100 = vadd.f32 %v4726, %v5053
  %v5101 = vadd.f32 %v4731, %v5053
  %v5102 = vadd.f32 %v4734, %v5053
  %v5103 = vadd.f32 %v4739, %v5053
  %v5104 = vadd.f32 %v4742, %v5053
  %v5105 = vadd.f32 %v4747, %v5053
  %v5106 = vadd.f32 %v4750, %v5053
  %v5107 = vadd.f32 %v4755, %v5053
  %v5108 = vadd.f32 %v4758, %v5053
  %v5109 = vadd.f32 %v4763, %v5053
  %v5110 = vadd.f32 %v4766, %v5053
  %v5111 = vadd.f32 %v4771, %v5053
  %v5112 = vadd.f32 %v4774, %v5053
  %v5113 = vadd.f32 %v4779, %v5053
  %v5114 = vadd.f32 %v4782, %v5053
  %v5115 = vadd.f32 %v4787, %v5053
  %v5116 = vadd.f32 %v4790, %v5053
  %v5117 = vadd.f32 %v4795, %v5053
  %v5118 = vadd.f32 %v4798, %v5053
  %v5119 = vadd.f32 %v4803, %v5053
  %v5120 = vadd.f32 %v4806, %v5053
  %v5121 = vadd.f32 %v4811, %v5053
  %v5122 = vadd.f32 %v4814, %v5053
  %v5123 = vadd.f32 %v4819, %v5053
  %v5124 = vadd.f32 %v4822, %v5053
  %v5125 = vadd.f32 %v4827, %v5053
  %v5126 = vadd.f32 %v4830, %v5053
  %v5127 = vadd.f32 %v4835, %v5053
  %v5128 = vadd.f32 %v4838, %v5053
  %v5129 = vadd.f32 %v4843, %v5053
  %v5130 = vadd.f32 %v4846, %v5053
  %v5131 = vadd.f32 %v4851, %v5053
  %v5132 = vadd.f32 %v4854, %v5053
  %v5133 = vadd.f32 %v4859, %v5053
  %v5134 = vadd.f32 %v4862, %v5053
  %v5135 = vadd.f32 %v4867, %v5053
  %v5136 = vadd.f32 %v4870, %v5053
  %v5137 = vadd.f32 %v4875, %v5053
  %v5138 = vadd.f32 %v4878, %v5053
  %v5139 = vadd.f32 %v4883, %v5053
  %v5140 = vadd.f32 %v4886, %v5053
  %v5141 = vadd.f32 %v4891, %v5053
  %v5142 = vadd.f32 %v4894, %v5053
  %v5143 = vadd.f32 %v4899, %v5053
  %v5144 = vadd.f32 %v4902, %v5053
  %v5145 = vadd.f32 %v4907, %v5053
  %v5146 = vadd.f32 %v4910, %v5053
  %v5147 = vadd.f32 %v4915, %v5053
  %v5148 = vadd.f32 %v4918, %v5053
  %v5149 = vadd.f32 %v4923, %v5053
  %v5150 = vadd.f32 %v4926, %v5053
  %v5151 = vadd.f32 %v4931, %v5053
  %v5152 = vadd.f32 %v4934, %v5053
  %v5153 = vadd.f32 %v4939, %v5053
  %v5154 = vadd.f32 %v4942, %v5053
  %v5155 = vadd.f32 %v4947, %v5053
  %v5156 = vadd.f32 %v4950, %v5053
  %v5157 = vadd.f32 %v4955, %v5053
  %v5158 = vadd.f32 %v4958, %v5053
  %v5159 = vadd.f32 %v4963, %v5053
  %v5160 = vadd.f32 %v4966, %v5053
  %v5161 = vadd.f32 %v4971, %v5053
  %v5162 = vadd.f32 %v4974, %v5053
  %v5163 = vadd.f32 %v4979, %v5053
  %v5164 = vadd.f32 %v4982, %v5053
  %v5165 = vadd.f32 %v4987, %v5053
  %v5166 = vadd.f32 %v4990, %v5053
  %v5167 = vadd.f32 %v4995, %v5053
  %v5168 = vadd.f32 %v4998, %v5053
  %v5169 = vadd.f32 %v5003, %v5053
  %v5170 = vadd.f32 %v5006, %v5053
  %v5171 = vadd.f32 %v5011, %v5053
  %v5172 = vadd.f32 %v5014, %v5053
  %v5173 = vadd.f32 %v5019, %v5053
  %v5174 = vadd.f32 %v5022, %v5053
  %v5175 = vadd.f32 %v5027, %v5053
  %v5176 = vadd.f32 %v5030, %v5053
  %v5177 = vadd.f32 %v5035, %v5053
  %v5178 = vadd.f32 %v5038, %v5053
  %v5179 = vadd.f32 %v5043, %v5053
  %5180 = vst.msk [vmem:[%s11] sm:$0xff] %vm2095, %v5055
  %5181 = vst.msk [vmem:[%s11 + $0x8] sm:$0xff] %vm2095, %v5056
  %5182 = vst.msk [vmem:[%s11 + $0x10] sm:$0xff] %vm2095, %v5057
  %5183 = vst.msk [vmem:[%s11 + $0x18] sm:$0xff] %vm2095, %v5058
  %5184 = vst.msk [vmem:[%s11 + $0x20] sm:$0xff] %vm2095, %v5059
  %5185 = vst.msk [vmem:[%s11 + $0x28] sm:$0xff] %vm2095, %v5060
  %5186 = vst.msk [vmem:[%s11 + $0x30] sm:$0xff] %vm2095, %v5061
  %5187 = vst.msk [vmem:[%s11 + $0x38] sm:$0xff] %vm2095, %v5062
  %5188 = vst.msk [vmem:[%s11 + $0x40] sm:$0xff] %vm2095, %v5063
  %5189 = vst.msk [vmem:[%s11 + $0x48] sm:$0xff] %vm2095, %v5064
  %5190 = vst.msk [vmem:[%s11 + $0x50] sm:$0xff] %vm2095, %v5065
  %5191 = vst.msk [vmem:[%s11 + $0x58] sm:$0xff] %vm2095, %v5066
  %5192 = vst.msk [vmem:[%s11 + $0x60] sm:$0xff] %vm2095, %v5067
  %5193 = vst.msk [vmem:[%s11 + $0x68] sm:$0xff] %vm2095, %v5068
  %5194 = vst.msk [vmem:[%s11 + $0x70] sm:$0xff] %vm2095, %v5069
  %5195 = vst.msk [vmem:[%s11 + $0x78] sm:$0xff] %vm2095, %v5070
  %5196 = vst.msk [vmem:[%s11 + $0x80] sm:$0xff] %vm2095, %v5071
  %5197 = vst.msk [vmem:[%s11 + $0x88] sm:$0xff] %vm2095, %v5072
  %5198 = vst.msk [vmem:[%s11 + $0x90] sm:$0xff] %vm2095, %v5073
  %5199 = vst.msk [vmem:[%s11 + $0x98] sm:$0xff] %vm2095, %v5074
  %5200 = vst.msk [vmem:[%s11 + $0xa0] sm:$0xff] %vm2095, %v5075
  %5201 = vst.msk [vmem:[%s11 + $0xa8] sm:$0xff] %vm2095, %v5076
  %5202 = vst.msk [vmem:[%s11 + $0xb0] sm:$0xff] %vm2095, %v5077
  %5203 = vst.msk [vmem:[%s11 + $0xb8] sm:$0xff] %vm2095, %v5078
  %5204 = vst.msk [vmem:[%s11 + $0xc0] sm:$0xff] %vm2095, %v5079
  %5205 = vst.msk [vmem:[%s11 + $0xc8] sm:$0xff] %vm2095, %v5080
  %5206 = vst.msk [vmem:[%s11 + $0xd0] sm:$0xff] %vm2095, %v5081
  %5207 = vst.msk [vmem:[%s11 + $0xd8] sm:$0xff] %vm2095, %v5082
  %5208 = vst.msk [vmem:[%s11 + $0xe0] sm:$0xff] %vm2095, %v5083
  %5209 = vst.msk [vmem:[%s11 + $0xe8] sm:$0xff] %vm2095, %v5084
  %5210 = vst.msk [vmem:[%s11 + $0xf0] sm:$0xff] %vm2095, %v5085
  %5211 = vst.msk [vmem:[%s11 + $0xf8] sm:$0xff] %vm2095, %v5086
  %5212 = vst.msk [vmem:[%s11 + $0x100] sm:$0xff] %vm2095, %v5087
  %5213 = vst.msk [vmem:[%s11 + $0x108] sm:$0xff] %vm2095, %v5088
  %5214 = vst.msk [vmem:[%s11 + $0x110] sm:$0xff] %vm2095, %v5089
  %5215 = vst.msk [vmem:[%s11 + $0x118] sm:$0xff] %vm2095, %v5090
  %5216 = vst.msk [vmem:[%s11 + $0x120] sm:$0xff] %vm2095, %v5091
  %5217 = vst.msk [vmem:[%s11 + $0x128] sm:$0xff] %vm2095, %v5092
  %5218 = vst.msk [vmem:[%s11 + $0x130] sm:$0xff] %vm2095, %v5093
  %5219 = vst.msk [vmem:[%s11 + $0x138] sm:$0xff] %vm2095, %v5094
  %5220 = vst.msk [vmem:[%s11 + $0x140] sm:$0xff] %vm2095, %v5095
  %5221 = vst.msk [vmem:[%s11 + $0x148] sm:$0xff] %vm2095, %v5096
  %5222 = vst.msk [vmem:[%s11 + $0x150] sm:$0xff] %vm2095, %v5097
  %5223 = vst.msk [vmem:[%s11 + $0x158] sm:$0xff] %vm2095, %v5098
  %5224 = vst.msk [vmem:[%s11 + $0x160] sm:$0xff] %vm2095, %v5099
  %5225 = vst.msk [vmem:[%s11 + $0x168] sm:$0xff] %vm2095, %v5100
  %5226 = vst.msk [vmem:[%s11 + $0x170] sm:$0xff] %vm2095, %v5101
  %5227 = vst.msk [vmem:[%s11 + $0x178] sm:$0xff] %vm2095, %v5102
  %5228 = vst.msk [vmem:[%s11 + $0x180] sm:$0xff] %vm2095, %v5103
  %5229 = vst.msk [vmem:[%s11 + $0x188] sm:$0xff] %vm2095, %v5104
  %5230 = vst.msk [vmem:[%s11 + $0x190] sm:$0xff] %vm2095, %v5105
  %5231 = vst.msk [vmem:[%s11 + $0x198] sm:$0xff] %vm2095, %v5106
  %5232 = vst.msk [vmem:[%s11 + $0x1a0] sm:$0xff] %vm2095, %v5107
  %5233 = vst.msk [vmem:[%s11 + $0x1a8] sm:$0xff] %vm2095, %v5108
  %5234 = vst.msk [vmem:[%s11 + $0x1b0] sm:$0xff] %vm2095, %v5109
  %5235 = vst.msk [vmem:[%s11 + $0x1b8] sm:$0xff] %vm2095, %v5110
  %5236 = vst.msk [vmem:[%s11 + $0x1c0] sm:$0xff] %vm2095, %v5111
  %5237 = vst.msk [vmem:[%s11 + $0x1c8] sm:$0xff] %vm2095, %v5112
  %5238 = vst.msk [vmem:[%s11 + $0x1d0] sm:$0xff] %vm2095, %v5113
  %5239 = vst.msk [vmem:[%s11 + $0x1d8] sm:$0xff] %vm2095, %v5114
  %5240 = vst.msk [vmem:[%s11 + $0x1e0] sm:$0xff] %vm2095, %v5115
  %5241 = vst.msk [vmem:[%s11 + $0x1e8] sm:$0xff] %vm2095, %v5116
  %5242 = vst.msk [vmem:[%s11 + $0x1f0] sm:$0xff] %vm2095, %v5117
  %5243 = vst.msk [vmem:[%s11 + $0x1f8] sm:$0xff] %vm2095, %v5118
  %5244 = vst.msk [vmem:[%s11 + $0x200] sm:$0xff] %vm2095, %v5119
  %5245 = vst.msk [vmem:[%s11 + $0x208] sm:$0xff] %vm2095, %v5120
  %5246 = vst.msk [vmem:[%s11 + $0x210] sm:$0xff] %vm2095, %v5121
  %5247 = vst.msk [vmem:[%s11 + $0x218] sm:$0xff] %vm2095, %v5122
  %5248 = vst.msk [vmem:[%s11 + $0x220] sm:$0xff] %vm2095, %v5123
  %5249 = vst.msk [vmem:[%s11 + $0x228] sm:$0xff] %vm2095, %v5124
  %5250 = vst.msk [vmem:[%s11 + $0x230] sm:$0xff] %vm2095, %v5125
  %5251 = vst.msk [vmem:[%s11 + $0x238] sm:$0xff] %vm2095, %v5126
  %5252 = vst.msk [vmem:[%s11 + $0x240] sm:$0xff] %vm2095, %v5127
  %5253 = vst.msk [vmem:[%s11 + $0x248] sm:$0xff] %vm2095, %v5128
  %5254 = vst.msk [vmem:[%s11 + $0x250] sm:$0xff] %vm2095, %v5129
  %5255 = vst.msk [vmem:[%s11 + $0x258] sm:$0xff] %vm2095, %v5130
  %5256 = vst.msk [vmem:[%s11 + $0x260] sm:$0xff] %vm2095, %v5131
  %5257 = vst.msk [vmem:[%s11 + $0x268] sm:$0xff] %vm2095, %v5132
  %5258 = vst.msk [vmem:[%s11 + $0x270] sm:$0xff] %vm2095, %v5133
  %5259 = vst.msk [vmem:[%s11 + $0x278] sm:$0xff] %vm2095, %v5134
  %5260 = vst.msk [vmem:[%s11 + $0x280] sm:$0xff] %vm2095, %v5135
  %5261 = vst.msk [vmem:[%s11 + $0x288] sm:$0xff] %vm2095, %v5136
  %5262 = vst.msk [vmem:[%s11 + $0x290] sm:$0xff] %vm2095, %v5137
  %5263 = vst.msk [vmem:[%s11 + $0x298] sm:$0xff] %vm2095, %v5138
  %5264 = vst.msk [vmem:[%s11 + $0x2a0] sm:$0xff] %vm2095, %v5139
  %5265 = vst.msk [vmem:[%s11 + $0x2a8] sm:$0xff] %vm2095, %v5140
  %5266 = vst.msk [vmem:[%s11 + $0x2b0] sm:$0xff] %vm2095, %v5141
  %5267 = vst.msk [vmem:[%s11 + $0x2b8] sm:$0xff] %vm2095, %v5142
  %5268 = vst.msk [vmem:[%s11 + $0x2c0] sm:$0xff] %vm2095, %v5143
  %5269 = vst.msk [vmem:[%s11 + $0x2c8] sm:$0xff] %vm2095, %v5144
  %5270 = vst.msk [vmem:[%s11 + $0x2d0] sm:$0xff] %vm2095, %v5145
  %5271 = vst.msk [vmem:[%s11 + $0x2d8] sm:$0xff] %vm2095, %v5146
  %5272 = vst.msk [vmem:[%s11 + $0x2e0] sm:$0xff] %vm2095, %v5147
  %5273 = vst.msk [vmem:[%s11 + $0x2e8] sm:$0xff] %vm2095, %v5148
  %5274 = vst.msk [vmem:[%s11 + $0x2f0] sm:$0xff] %vm2095, %v5149
  %5275 = vst.msk [vmem:[%s11 + $0x2f8] sm:$0xff] %vm2095, %v5150
  %5276 = vst.msk [vmem:[%s11 + $0x300] sm:$0xff] %vm2095, %v5151
  %5277 = vst.msk [vmem:[%s11 + $0x308] sm:$0xff] %vm2095, %v5152
  %5278 = vst.msk [vmem:[%s11 + $0x310] sm:$0xff] %vm2095, %v5153
  %5279 = vst.msk [vmem:[%s11 + $0x318] sm:$0xff] %vm2095, %v5154
  %5280 = vst.msk [vmem:[%s11 + $0x320] sm:$0xff] %vm2095, %v5155
  %5281 = vst.msk [vmem:[%s11 + $0x328] sm:$0xff] %vm2095, %v5156
  %5282 = vst.msk [vmem:[%s11 + $0x330] sm:$0xff] %vm2095, %v5157
  %5283 = vst.msk [vmem:[%s11 + $0x338] sm:$0xff] %vm2095, %v5158
  %5284 = vst.msk [vmem:[%s11 + $0x340] sm:$0xff] %vm2095, %v5159
  %5285 = vst.msk [vmem:[%s11 + $0x348] sm:$0xff] %vm2095, %v5160
  %5286 = vst.msk [vmem:[%s11 + $0x350] sm:$0xff] %vm2095, %v5161
  %5287 = vst.msk [vmem:[%s11 + $0x358] sm:$0xff] %vm2095, %v5162
  %5288 = vst.msk [vmem:[%s11 + $0x360] sm:$0xff] %vm2095, %v5163
  %5289 = vst.msk [vmem:[%s11 + $0x368] sm:$0xff] %vm2095, %v5164
  %5290 = vst.msk [vmem:[%s11 + $0x370] sm:$0xff] %vm2095, %v5165
  %5291 = vst.msk [vmem:[%s11 + $0x378] sm:$0xff] %vm2095, %v5166
  %5292 = vst.msk [vmem:[%s11 + $0x380] sm:$0xff] %vm2095, %v5167
  %5293 = vst.msk [vmem:[%s11 + $0x388] sm:$0xff] %vm2095, %v5168
  %5294 = vst.msk [vmem:[%s11 + $0x390] sm:$0xff] %vm2095, %v5169
  %5295 = vst.msk [vmem:[%s11 + $0x398] sm:$0xff] %vm2095, %v5170
  %5296 = vst.msk [vmem:[%s11 + $0x3a0] sm:$0xff] %vm2095, %v5171
  %5297 = vst.msk [vmem:[%s11 + $0x3a8] sm:$0xff] %vm2095, %v5172
  %5298 = vst.msk [vmem:[%s11 + $0x3b0] sm:$0xff] %vm2095, %v5173
  %5299 = vst.msk [vmem:[%s11 + $0x3b8] sm:$0xff] %vm2095, %v5174
  %5300 = vst.msk [vmem:[%s11 + $0x3c0] sm:$0xff] %vm2095, %v5175
  %5301 = vst.msk [vmem:[%s11 + $0x3c8] sm:$0xff] %vm2095, %v5176
  %5302 = vst.msk [vmem:[%s11 + $0x3d0] sm:$0xff] %vm2095, %v5177
  %5303 = vst.msk [vmem:[%s11 + $0x3d8] sm:$0xff] %vm2095, %v5178
  %5304 = vst.msk [vmem:[%s11 + $0x3e0] sm:$0xff] %vm2095, %v5179
  // Predicated region
  $region46: #{tpu_custom_call.1} parent=0 // pred_check
    _
  $region47: #{tpu_custom_call.1} parent=0 // pred_check_branch
    %5306 = sbr.rel (0) target = $region49
  $region48: #{tpu_custom_call.1} parent=0 // pred_region
    _
  $region49: #{tpu_custom_call.1} parent=0 // pred_fallthru
    _
  // Predicated region
  $region50: #{tpu_custom_call.1} parent=0 // pred_check
    _
  $region51: #{tpu_custom_call.1} parent=0 // pred_check_branch
    %5308 = sbr.rel (0) target = $region53
  $region52: #{tpu_custom_call.1} parent=0 // pred_region
    _
  $region53: #{tpu_custom_call.1} parent=0 // pred_fallthru
    _

</llo_original>
